<compile_context>
chip_gen: v7x
topology: tpu7x:2x2x1
jax: 0.10.0
libtpu: 0.0.40
codegen_flags: <defaults>
</compile_context>

<pallas_src>
import functools

import jax
import jax.numpy as jnp
from jax.experimental import pallas as pl
from jax.experimental.pallas import tpu as pltpu


def make_actor_kernel(upper_bound, precision):
    """Kernel closing over the static upper_bound scalar and dot precision."""
    ub = float(upper_bound)

    def actor_kernel(x_ref, w1_ref, b1_ref, w2_ref, b2_ref, w3_ref, b3_ref,
                     o_ref):
        # Cast x to the weight dtype on the VPU (no-op on the f32 path; on the
        # bf16 path this avoids a separate wrapper-side cast pass over HBM).
        x = x_ref[...].astype(w1_ref.dtype)
        # Layer 1: relu(x @ W1 + b1)   (MXU matmul, f32 accumulate)
        h1 = jnp.dot(x, w1_ref[...],
                     preferred_element_type=jnp.float32, precision=precision)
        h1 = jnp.maximum(h1 + b1_ref[...], 0.0)
        # Layer 2: relu(h1 @ W2 + b2)
        h2 = jnp.dot(h1.astype(w2_ref.dtype), w2_ref[...],
                     preferred_element_type=jnp.float32, precision=precision)
        h2 = jnp.maximum(h2 + b2_ref[...], 0.0)
        # Layer 3: tanh(h2 @ W3 + b3) * upper_bound  (tanh on EUP, f32)
        h3 = jnp.dot(h2.astype(w3_ref.dtype), w3_ref[...],
                     preferred_element_type=jnp.float32, precision=precision)
        o_ref[...] = (jnp.tanh(h3 + b3_ref[...]) * ub).astype(o_ref.dtype)

    return actor_kernel


@functools.lru_cache(maxsize=None)
def _build_actor_call(B, obs_dim, hidden, actions_dim, tile_b, upper_bound,
                      w_dtype_name):
    """Build (and cache) the pallas_call for a static Actor configuration."""
    num_tiles = pl.cdiv(B, tile_b)
    # Faithful f32 matmul semantics when weights are f32; default otherwise.
    precision = (jax.lax.Precision.HIGHEST
                 if w_dtype_name == "float32" else jax.lax.Precision.DEFAULT)

    return pl.pallas_call(
        make_actor_kernel(upper_bound, precision),
        out_shape=jax.ShapeDtypeStruct((B, actions_dim), jnp.float32),
        grid_spec=pl.GridSpec(
            grid=(num_tiles,),
            in_specs=[
                pl.BlockSpec((tile_b, obs_dim), lambda i: (i, 0)),    # x tile
                pl.BlockSpec((obs_dim, hidden), lambda i: (0, 0)),    # W1
                pl.BlockSpec((1, hidden), lambda i: (0, 0)),          # b1
                pl.BlockSpec((hidden, hidden), lambda i: (0, 0)),     # W2
                pl.BlockSpec((1, hidden), lambda i: (0, 0)),          # b2
                pl.BlockSpec((hidden, actions_dim), lambda i: (0, 0)),  # W3
                pl.BlockSpec((1, actions_dim), lambda i: (0, 0)),       # b3
            ],
            # Output stored lane-narrow (actions_dim == full last dim) — no
            # padding; masked stores are cheap here (store slot not binding).
            out_specs=pl.BlockSpec((tile_b, actions_dim), lambda i: (i, 0)),
        ),
        compiler_params=pltpu.CompilerParams(
            dimension_semantics=("parallel",)),  # megacore-shard batch (v7x)
    )


def prepare_actor_params(params, mxu_dtype=jnp.float32):
    """One-time weight preprocessing (hoisted out of the per-step forward).

    Casts weights to the MXU input dtype; biases stay f32 because the
    bias/ReLU/tanh epilogue runs in f32 on the VPU/EUP."""
    w1, b1, w2, b2, w3, b3 = params
    return (w1.astype(mxu_dtype), b1, w2.astype(mxu_dtype), b2,
            w3.astype(mxu_dtype), b3)


def actor_forward(x, params, upper_bound, *, tile_b=512):
    """Fused forward pass of the Actor MLP in a single Pallas kernel.

    x: (B, obs_dim) f32. Weights stored (in_features, out_features)."""
    w1, b1, w2, b2, w3, b3 = params
    B, obs_dim = x.shape
    hidden = w1.shape[1]
    actions_dim = w3.shape[1]

    # Batch tiling: big tiles (amortize ~0.35us/step overhead), but clamp so
    # there are >= 2 grid steps when possible — lets v7x's two TensorCores
    # split the batch.  Tile rows stay a multiple of 8 (sublane).
    half_b = (-(-B // 2) + 7) // 8 * 8           # round_up(cdiv(B, 2), 8)
    tb = max(8, min(int(tile_b), half_b))

    call = _build_actor_call(B, obs_dim, hidden, actions_dim, tb,
                             float(upper_bound), jnp.dtype(w1.dtype).name)
    # No wrapper-side batch padding: ragged last block is handled by Pallas
    # (out-of-bounds stores masked; no batch reductions so garbage rows are
    # never consumed by real outputs).
    return call(x, w1, b1, w2, b2, w3, b3)


def init_actor_params(key, obs_dim, actions_dim, hidden=64):
    """Deterministic init mimicking nn.Linear's U(-1/sqrt(fan_in), 1/sqrt(fan_in)).

    Weights are stored as (in_features, out_features) for x @ W."""
    ks = jax.random.split(key, 6)

    def linear(kw, kb, fan_in, fan_out):
        bound = 1.0 / jnp.sqrt(fan_in)
        w = jax.random.uniform(kw, (fan_in, fan_out), jnp.float32, -bound, bound)
        b = jax.random.uniform(kb, (1, fan_out), jnp.float32, -bound, bound)
        return w, b

    w1, b1 = linear(ks[0], ks[1], obs_dim, hidden)
    w2, b2 = linear(ks[2], ks[3], hidden, hidden)
    w3, b3 = linear(ks[4], ks[5], hidden, actions_dim)
    return (w1, b1, w2, b2, w3, b3)


def actor_reference(x, params, upper_bound):
    """Pure-JAX reference of the same forward semantics (PyTorch Actor.forward)."""
    w1, b1, w2, b2, w3, b3 = params
    h = jnp.maximum(x @ w1 + b1, 0.0)
    h = jnp.maximum(h @ w2 + b2, 0.0)
    return jnp.tanh(h @ w3 + b3) * upper_bound


# TODO(synk): noisy_forward (stateful torch.randn_like noise cached on layer3)
# is not implemented; it would just be an extra f32 noise operand added to the
# layer-3 pre-activation before tanh.

if __name__ == "__main__":
    obs_dim = 24
    actions_dim = 4
    upper_bound = 2.0
    batch = 200  # not a multiple of the tile -> exercises the ragged edge block

    key = jax.random.PRNGKey(0)
    kx, kp = jax.random.split(key)
    x = jax.random.normal(kx, (batch, obs_dim), dtype=jnp.float32)
    params = init_actor_params(kp, obs_dim, actions_dim)

    ref = actor_reference(x, params, upper_bound)

    # f32 MXU path (precision=HIGHEST): must match the PyTorch-equivalent
    # reference tightly.
    fwd = jax.jit(functools.partial(actor_forward, upper_bound=upper_bound))
    out_f32 = jax.block_until_ready(fwd(x, params))
    assert out_f32.shape == (batch, actions_dim)
    assert jnp.allclose(out_f32, ref, atol=1e-5), "f32 path mismatch vs reference"

    # bf16 MXU path: weights cast ONCE outside the hot path; x cast in-kernel.
    params_bf16 = prepare_actor_params(params, jnp.bfloat16)
    out_bf16 = jax.block_until_ready(fwd(x, params_bf16))
    assert out_bf16.shape == (batch, actions_dim)
    assert jnp.allclose(out_bf16, ref, atol=5e-2), "bf16 path mismatch vs reference"

    print("KERNEL_OK")
</pallas_src>

<mosaic_0001>
module attributes {stable_mosaic.version = 11 : i64} {
  func.func @actor_kernel(%arg0: i32, %arg1: memref<104x24xf32, #tpu.memory_space<vmem>>, %arg2: memref<24x64xf32, #tpu.memory_space<vmem>>, %arg3: memref<1x64xf32, #tpu.memory_space<vmem>>, %arg4: memref<64x64xf32, #tpu.memory_space<vmem>>, %arg5: memref<1x64xf32, #tpu.memory_space<vmem>>, %arg6: memref<64x4xf32, #tpu.memory_space<vmem>>, %arg7: memref<1x4xf32, #tpu.memory_space<vmem>>, %arg8: memref<104x4xf32, #tpu.memory_space<vmem>>) attributes {dimension_semantics = [#tpu.dimension_semantics<parallel>], iteration_bounds = array<i64: 2>, scalar_prefetch = 0 : i64, scratch_operands = 0 : i64, tpu.core_type = #tpu.core_type<tc>, window_params = [{transform_indices = @transform_0, window_bounds = array<i64: 104, 24>}, {pipeline_mode = #tpu.pipeline_mode<synchronous>, transform_indices = @transform_1, window_bounds = array<i64: 24, 64>}, {pipeline_mode = #tpu.pipeline_mode<synchronous>, transform_indices = @transform_2, window_bounds = array<i64: 1, 64>}, {pipeline_mode = #tpu.pipeline_mode<synchronous>, transform_indices = @transform_3, window_bounds = array<i64: 64, 64>}, {pipeline_mode = #tpu.pipeline_mode<synchronous>, transform_indices = @transform_4, window_bounds = array<i64: 1, 64>}, {pipeline_mode = #tpu.pipeline_mode<synchronous>, transform_indices = @transform_5, window_bounds = array<i64: 64, 4>}, {pipeline_mode = #tpu.pipeline_mode<synchronous>, transform_indices = @transform_6, window_bounds = array<i64: 1, 4>}, {transform_indices = @transform_7, window_bounds = array<i64: 104, 4>}]} {
    %c0 = arith.constant 0 : index
    %c0_0 = arith.constant 0 : index
    %0 = vector.load %arg1[%c0, %c0_0] : memref<104x24xf32, #tpu.memory_space<vmem>>, vector<104x24xf32>
    %c0_1 = arith.constant 0 : index
    %c0_2 = arith.constant 0 : index
    %1 = vector.load %arg2[%c0_1, %c0_2] : memref<24x64xf32, #tpu.memory_space<vmem>>, vector<24x64xf32>
    %cst = arith.constant dense<0.000000e+00> : vector<104x64xf32>
    %2 = tpu.matmul %0, %1, %cst {dimension_numbers = #tpu.dot_dimension_numbers<[1], [0], [0], [1], [0, 0, 1, 1], [], []>, precision = #tpu.contract_precision<fp32>} : vector<104x24xf32>, vector<24x64xf32>, vector<104x64xf32> -> vector<104x64xf32>
    %c0_3 = arith.constant 0 : index
    %c0_4 = arith.constant 0 : index
    %3 = vector.load %arg3[%c0_3, %c0_4] : memref<1x64xf32, #tpu.memory_space<vmem>>, vector<1x64xf32>
    %4 = vector.broadcast %3 : vector<1x64xf32> to vector<104x64xf32>
    %5 = arith.addf %2, %4 : vector<104x64xf32>
    %cst_5 = arith.constant 0.000000e+00 : f32
    %6 = vector.broadcast %cst_5 : f32 to vector<104x64xf32>
    %7 = arith.maximumf %5, %6 : vector<104x64xf32>
    %c0_6 = arith.constant 0 : index
    %c0_7 = arith.constant 0 : index
    %8 = vector.load %arg4[%c0_6, %c0_7] : memref<64x64xf32, #tpu.memory_space<vmem>>, vector<64x64xf32>
    %cst_8 = arith.constant dense<0.000000e+00> : vector<104x64xf32>
    %9 = tpu.matmul %7, %8, %cst_8 {dimension_numbers = #tpu.dot_dimension_numbers<[1], [0], [0], [1], [0, 0, 1, 1], [], []>, precision = #tpu.contract_precision<fp32>} : vector<104x64xf32>, vector<64x64xf32>, vector<104x64xf32> -> vector<104x64xf32>
    %c0_9 = arith.constant 0 : index
    %c0_10 = arith.constant 0 : index
    %10 = vector.load %arg5[%c0_9, %c0_10] : memref<1x64xf32, #tpu.memory_space<vmem>>, vector<1x64xf32>
    %11 = vector.broadcast %10 : vector<1x64xf32> to vector<104x64xf32>
    %12 = arith.addf %9, %11 : vector<104x64xf32>
    %cst_11 = arith.constant 0.000000e+00 : f32
    %13 = vector.broadcast %cst_11 : f32 to vector<104x64xf32>
    %14 = arith.maximumf %12, %13 : vector<104x64xf32>
    %c0_12 = arith.constant 0 : index
    %c0_13 = arith.constant 0 : index
    %15 = vector.load %arg6[%c0_12, %c0_13] : memref<64x4xf32, #tpu.memory_space<vmem>>, vector<64x4xf32>
    %cst_14 = arith.constant dense<0.000000e+00> : vector<104x4xf32>
    %16 = tpu.matmul %14, %15, %cst_14 {dimension_numbers = #tpu.dot_dimension_numbers<[1], [0], [0], [1], [0, 0, 1, 1], [], []>, precision = #tpu.contract_precision<fp32>} : vector<104x64xf32>, vector<64x4xf32>, vector<104x4xf32> -> vector<104x4xf32>
    %c0_15 = arith.constant 0 : index
    %c0_16 = arith.constant 0 : index
    %17 = vector.load %arg7[%c0_15, %c0_16] : memref<1x4xf32, #tpu.memory_space<vmem>>, vector<1x4xf32>
    %18 = vector.broadcast %17 : vector<1x4xf32> to vector<104x4xf32>
    %19 = arith.addf %16, %18 : vector<104x4xf32>
    %20 = math.tanh %19 : vector<104x4xf32>
    %cst_17 = arith.constant 2.000000e+00 : f32
    %21 = vector.broadcast %cst_17 : f32 to vector<104x4xf32>
    %22 = arith.mulf %20, %21 : vector<104x4xf32>
    %c0_18 = arith.constant 0 : index
    %c0_19 = arith.constant 0 : index
    %23 = vector.load %arg8[%c0_18, %c0_19] : memref<104x4xf32, #tpu.memory_space<vmem>>, vector<104x4xf32>
    tpu.vector_store %arg8[%c0_18, %c0_19], %22 {strides = array<i32>} : memref<104x4xf32, #tpu.memory_space<vmem>>, vector<104x4xf32>,
    return
  }
  func.func @transform_0(%arg0: i32) -> (i32, i32) {
    %c0_i32 = arith.constant 0 : i32
    %c0_i32_0 = arith.constant 0 : i32
    return %arg0, %c0_i32 : i32, i32
  }
  func.func @transform_1(%arg0: i32) -> (i32, i32) {
    %c0_i32 = arith.constant 0 : i32
    %c0_i32_0 = arith.constant 0 : i32
    %c0_i32_1 = arith.constant 0 : i32
    return %c0_i32, %c0_i32_0 : i32, i32
  }
  func.func @transform_2(%arg0: i32) -> (i32, i32) {
    %c0_i32 = arith.constant 0 : i32
    %c0_i32_0 = arith.constant 0 : i32
    %c0_i32_1 = arith.constant 0 : i32
    return %c0_i32, %c0_i32_0 : i32, i32
  }
  func.func @transform_3(%arg0: i32) -> (i32, i32) {
    %c0_i32 = arith.constant 0 : i32
    %c0_i32_0 = arith.constant 0 : i32
    %c0_i32_1 = arith.constant 0 : i32
    return %c0_i32, %c0_i32_0 : i32, i32
  }
  func.func @transform_4(%arg0: i32) -> (i32, i32) {
    %c0_i32 = arith.constant 0 : i32
    %c0_i32_0 = arith.constant 0 : i32
    %c0_i32_1 = arith.constant 0 : i32
    return %c0_i32, %c0_i32_0 : i32, i32
  }
  func.func @transform_5(%arg0: i32) -> (i32, i32) {
    %c0_i32 = arith.constant 0 : i32
    %c0_i32_0 = arith.constant 0 : i32
    %c0_i32_1 = arith.constant 0 : i32
    return %c0_i32, %c0_i32_0 : i32, i32
  }
  func.func @transform_6(%arg0: i32) -> (i32, i32) {
    %c0_i32 = arith.constant 0 : i32
    %c0_i32_0 = arith.constant 0 : i32
    %c0_i32_1 = arith.constant 0 : i32
    return %c0_i32, %c0_i32_0 : i32, i32
  }
  func.func @transform_7(%arg0: i32) -> (i32, i32) {
    %c0_i32 = arith.constant 0 : i32
    %c0_i32_0 = arith.constant 0 : i32
    return %arg0, %c0_i32 : i32, i32
  }
}

</mosaic_0001>

<llo_original>
// kernel: actor_forward.1
$region0: #{actor_forward.1}
  #allocation0 [shape = 'u32[]', space=smem, size = 0x4, offset = 0x4, fixed_abs, tag = 'smem constant byte address 0x4 - core index']
  #allocation1 [shape = 'u32[144,128]{1,0:T(1,128)}', space=vmem, size = 0x12000, scoped, tag = 'internal scratch']
  %s0 = inlined_call_operand.vmem [shape: f32[200,24], index: 0, kind: input, shape index: {}]
  %s1 = inlined_call_operand.vmem [shape: f32[24,64], index: 1, kind: input, shape index: {}]
  %s2 = inlined_call_operand.vmem [shape: f32[1,64], index: 2, kind: input, shape index: {}]
  %s3 = inlined_call_operand.vmem [shape: f32[64,64], index: 3, kind: input, shape index: {}]
  %s4 = inlined_call_operand.vmem [shape: f32[1,64], index: 4, kind: input, shape index: {}]
  %s5 = inlined_call_operand.vmem [shape: f32[64,4], index: 5, kind: input, shape index: {}]
  %s6 = inlined_call_operand.vmem [shape: f32[1,4], index: 6, kind: input, shape index: {}]
  %s7 = inlined_call_operand.vmem [shape: f32[200,4], index: 7, kind: output, shape index: {}]
  %s8 = sld [smem:[#allocation0]]
  $region109: #{actor_forward.1} parent=0
    _
  %s10 = ssub.s32 1, %s8
  %s11 = scalar_select 0, %s10, %s8
  $region1: #{actor_forward.1} parent=0
    #allocation2 [shape = 'u8[106496]{0}', space=vmem, size = 0x1a000, scoped, tag = 'output window, operand 0']
    loop: start=0, step=1, limit=4
    $region2: #{actor_forward.1} parent=1 // loop_pre_header
      _
    $region3: #{actor_forward.1} parent=1 // loop_header
      %s13 = sphi 0, %s17
      %p14 = scmp.ge.s32.totalorder %s13, 4
      %s23 = sphi 0, %s25
      %s26 = sphi 0, %s23
      %s27 = sphi 0, %s26
      %s43 = sphi 0, %s27
      %s47 = sphi 0, %s47
      %s49 = sphi 0, %s47
      %s50 = sphi 0, %s49
      %s64 = sphi 0, %s50
      %s68 = sphi 0, %s68
      %s70 = sphi 0, %s68
      %s71 = sphi 0, %s70
      %s85 = sphi 0, %s71
      %s89 = sphi 0, %s89
      %s91 = sphi 0, %s89
      %s92 = sphi 0, %s91
      %s106 = sphi 0, %s92
      %s110 = sphi 0, %s110
      %s112 = sphi 0, %s110
      %s113 = sphi 0, %s112
      %s127 = sphi 0, %s113
      %s131 = sphi 0, %s131
      %s133 = sphi 0, %s131
      %s134 = sphi 0, %s133
      %s148 = sphi 0, %s134
      %s152 = sphi 0, %s152
      %s154 = sphi 0, %s152
      %s155 = sphi 0, %s154
      %s169 = sphi 0, %s155
      %s175 = sphi 0, %s177
      %s178 = sphi 0, %s175
      %s179 = sphi 0, %s178
      %s195 = sphi 0, %s179
    $region4: #{actor_forward.1} parent=1 // loop_header_branch
      %16 = sbr.rel (%p14) target = $region8
    $region5: #{actor_forward.1} parent=1 // loop_body
      %s18 = ssub.s32 %s13, 1
      %s19 = ssub.s32 %s13, 2
      %s20 = sadd.s32 %s13, 1
      %s21 = ssub.s32 %s13, %s20
      %p22 = scmp.eq.s32.totalorder %s21, 0
      %s24 = sadd.s32 %s23, 1
      %s25 = scalar_select %p22, %s23, %s24
      %p28 = pneg %p22
      %p29 = scmp.eq.s32.totalorder %s13, 1
      %p30 = por %p28, %p29
      %p31 = scmp.ne.s32.totalorder %s23, %s26
      %p32 = scmp.eq.s32.totalorder %s13, 0
      %p33 = por %p31, %p32
      %p34 = scmp.ne.s32.totalorder %s23, %s26
      %p35 = scmp.eq.s32.totalorder %s18, 1
      %p36 = por %p34, %p35
      %p37 = scmp.ne.s32.totalorder %s26, %s27
      %p38 = scmp.eq.s32.totalorder %s18, 0
      %p39 = por %p37, %p38
      %p40 = scmp.ne.s32.totalorder %s26, %s27
      %p41 = scmp.eq.s32.totalorder %s19, 1
      %p42 = por %p40, %p41
      %p44 = scmp.ne.s32.totalorder %s27, %s43
      %p45 = scmp.eq.s32.totalorder %s19, 0
      %p46 = por %p44, %p45
      %s48 = sadd.s32 %s47, 1
      %p51 = scmp.eq.s32.totalorder %s13, 1
      %p52 = scmp.ne.s32.totalorder %s47, %s49
      %p53 = scmp.eq.s32.totalorder %s13, 0
      %p54 = por %p52, %p53
      %p55 = scmp.ne.s32.totalorder %s47, %s49
      %p56 = scmp.eq.s32.totalorder %s18, 1
      %p57 = por %p55, %p56
      %p58 = scmp.ne.s32.totalorder %s49, %s50
      %p59 = scmp.eq.s32.totalorder %s18, 0
      %p60 = por %p58, %p59
      %p61 = scmp.ne.s32.totalorder %s49, %s50
      %p62 = scmp.eq.s32.totalorder %s19, 1
      %p63 = por %p61, %p62
      %p65 = scmp.ne.s32.totalorder %s50, %s64
      %p66 = scmp.eq.s32.totalorder %s19, 0
      %p67 = por %p65, %p66
      %s69 = sadd.s32 %s68, 1
      %p72 = scmp.eq.s32.totalorder %s13, 1
      %p73 = scmp.ne.s32.totalorder %s68, %s70
      %p74 = scmp.eq.s32.totalorder %s13, 0
      %p75 = por %p73, %p74
      %p76 = scmp.ne.s32.totalorder %s68, %s70
      %p77 = scmp.eq.s32.totalorder %s18, 1
      %p78 = por %p76, %p77
      %p79 = scmp.ne.s32.totalorder %s70, %s71
      %p80 = scmp.eq.s32.totalorder %s18, 0
      %p81 = por %p79, %p80
      %p82 = scmp.ne.s32.totalorder %s70, %s71
      %p83 = scmp.eq.s32.totalorder %s19, 1
      %p84 = por %p82, %p83
      %p86 = scmp.ne.s32.totalorder %s71, %s85
      %p87 = scmp.eq.s32.totalorder %s19, 0
      %p88 = por %p86, %p87
      %s90 = sadd.s32 %s89, 1
      %p93 = scmp.eq.s32.totalorder %s13, 1
      %p94 = scmp.ne.s32.totalorder %s89, %s91
      %p95 = scmp.eq.s32.totalorder %s13, 0
      %p96 = por %p94, %p95
      %p97 = scmp.ne.s32.totalorder %s89, %s91
      %p98 = scmp.eq.s32.totalorder %s18, 1
      %p99 = por %p97, %p98
      %p100 = scmp.ne.s32.totalorder %s91, %s92
      %p101 = scmp.eq.s32.totalorder %s18, 0
      %p102 = por %p100, %p101
      %p103 = scmp.ne.s32.totalorder %s91, %s92
      %p104 = scmp.eq.s32.totalorder %s19, 1
      %p105 = por %p103, %p104
      %p107 = scmp.ne.s32.totalorder %s92, %s106
      %p108 = scmp.eq.s32.totalorder %s19, 0
      %p109 = por %p107, %p108
      %s111 = sadd.s32 %s110, 1
      %p114 = scmp.eq.s32.totalorder %s13, 1
      %p115 = scmp.ne.s32.totalorder %s110, %s112
      %p116 = scmp.eq.s32.totalorder %s13, 0
      %p117 = por %p115, %p116
      %p118 = scmp.ne.s32.totalorder %s110, %s112
      %p119 = scmp.eq.s32.totalorder %s18, 1
      %p120 = por %p118, %p119
      %p121 = scmp.ne.s32.totalorder %s112, %s113
      %p122 = scmp.eq.s32.totalorder %s18, 0
      %p123 = por %p121, %p122
      %p124 = scmp.ne.s32.totalorder %s112, %s113
      %p125 = scmp.eq.s32.totalorder %s19, 1
      %p126 = por %p124, %p125
      %p128 = scmp.ne.s32.totalorder %s113, %s127
      %p129 = scmp.eq.s32.totalorder %s19, 0
      %p130 = por %p128, %p129
      %s132 = sadd.s32 %s131, 1
      %p135 = scmp.eq.s32.totalorder %s13, 1
      %p136 = scmp.ne.s32.totalorder %s131, %s133
      %p137 = scmp.eq.s32.totalorder %s13, 0
      %p138 = por %p136, %p137
      %p139 = scmp.ne.s32.totalorder %s131, %s133
      %p140 = scmp.eq.s32.totalorder %s18, 1
      %p141 = por %p139, %p140
      %p142 = scmp.ne.s32.totalorder %s133, %s134
      %p143 = scmp.eq.s32.totalorder %s18, 0
      %p144 = por %p142, %p143
      %p145 = scmp.ne.s32.totalorder %s133, %s134
      %p146 = scmp.eq.s32.totalorder %s19, 1
      %p147 = por %p145, %p146
      %p149 = scmp.ne.s32.totalorder %s134, %s148
      %p150 = scmp.eq.s32.totalorder %s19, 0
      %p151 = por %p149, %p150
      %s153 = sadd.s32 %s152, 1
      %p156 = scmp.eq.s32.totalorder %s13, 1
      %p157 = scmp.ne.s32.totalorder %s152, %s154
      %p158 = scmp.eq.s32.totalorder %s13, 0
      %p159 = por %p157, %p158
      %p160 = scmp.ne.s32.totalorder %s152, %s154
      %p161 = scmp.eq.s32.totalorder %s18, 1
      %p162 = por %p160, %p161
      %p163 = scmp.ne.s32.totalorder %s154, %s155
      %p164 = scmp.eq.s32.totalorder %s18, 0
      %p165 = por %p163, %p164
      %p166 = scmp.ne.s32.totalorder %s154, %s155
      %p167 = scmp.eq.s32.totalorder %s19, 1
      %p168 = por %p166, %p167
      %p170 = scmp.ne.s32.totalorder %s155, %s169
      %p171 = scmp.eq.s32.totalorder %s19, 0
      %p172 = por %p170, %p171
      %s173 = ssub.s32 %s13, %s20
      %p174 = scmp.eq.s32.totalorder %s173, 0
      %s176 = sadd.s32 %s175, 1
      %s177 = scalar_select %p174, %s175, %s176
      %p180 = pneg %p174
      %p181 = scmp.eq.s32.totalorder %s13, 1
      %p182 = por %p180, %p181
      %p183 = scmp.ne.s32.totalorder %s175, %s178
      %p184 = scmp.eq.s32.totalorder %s13, 0
      %p185 = por %p183, %p184
      %p186 = scmp.ne.s32.totalorder %s175, %s178
      %p187 = scmp.eq.s32.totalorder %s18, 1
      %p188 = por %p186, %p187
      %p189 = scmp.ne.s32.totalorder %s178, %s179
      %p190 = scmp.eq.s32.totalorder %s18, 0
      %p191 = por %p189, %p190
      %p192 = scmp.ne.s32.totalorder %s178, %s179
      %p193 = scmp.eq.s32.totalorder %s19, 1
      %p194 = por %p192, %p193
      %p196 = scmp.ne.s32.totalorder %s179, %s195
      %p197 = scmp.eq.s32.totalorder %s19, 0
      %p198 = por %p196, %p197
      %p199 = scmp.le.s32.totalorder 1, %s13
      %p200 = scmp.lt.s32.totalorder %s13, 3
      %p201 = pnand %p199, %p200
      %p202 = pneg %p201
      // Predicated region
      $region9: #{actor_forward.1} parent=5 // pred_check
        _
      $region10: #{actor_forward.1} parent=5 // pred_check_branch
        %204 = sbr.rel (%p201) target = $region12
      $region11: #{actor_forward.1} parent=5 // pred_region
        %s205 = ssub.s32 %s13, 1
        // Predicated region
        $region13: #{actor_forward.1} parent=11 // pred_check
          %p206 = pneg %p60
        $region14: #{actor_forward.1} parent=11 // pred_check_branch
          %208 = sbr.rel (%p206) target = $region16
        $region15: #{actor_forward.1} parent=11 // pred_region
          _
        $region16: #{actor_forward.1} parent=11 // pred_fallthru
          _
        // Predicated region
        $region17: #{actor_forward.1} parent=11 // pred_check
          %p209 = pneg %p81
        $region18: #{actor_forward.1} parent=11 // pred_check_branch
          %211 = sbr.rel (%p209) target = $region20
        $region19: #{actor_forward.1} parent=11 // pred_region
          _
        $region20: #{actor_forward.1} parent=11 // pred_fallthru
          _
        // Predicated region
        $region21: #{actor_forward.1} parent=11 // pred_check
          %p212 = pneg %p102
        $region22: #{actor_forward.1} parent=11 // pred_check_branch
          %214 = sbr.rel (%p212) target = $region24
        $region23: #{actor_forward.1} parent=11 // pred_region
          _
        $region24: #{actor_forward.1} parent=11 // pred_fallthru
          _
        // Predicated region
        $region25: #{actor_forward.1} parent=11 // pred_check
          %p215 = pneg %p123
        $region26: #{actor_forward.1} parent=11 // pred_check_branch
          %217 = sbr.rel (%p215) target = $region28
        $region27: #{actor_forward.1} parent=11 // pred_region
          _
        $region28: #{actor_forward.1} parent=11 // pred_fallthru
          _
        // Predicated region
        $region29: #{actor_forward.1} parent=11 // pred_check
          %p218 = pneg %p144
        $region30: #{actor_forward.1} parent=11 // pred_check_branch
          %220 = sbr.rel (%p218) target = $region32
        $region31: #{actor_forward.1} parent=11 // pred_region
          _
        $region32: #{actor_forward.1} parent=11 // pred_fallthru
          _
        // Predicated region
        $region33: #{actor_forward.1} parent=11 // pred_check
          %p221 = pneg %p165
        $region34: #{actor_forward.1} parent=11 // pred_check_branch
          %223 = sbr.rel (%p221) target = $region36
        $region35: #{actor_forward.1} parent=11 // pred_region
          _
        $region36: #{actor_forward.1} parent=11 // pred_fallthru
          _
      $region12: #{actor_forward.1} parent=5 // pred_fallthru
        _
      %p224 = scmp.lt.s32.totalorder %s13, 2
      // Predicated region
      $region37: #{actor_forward.1} parent=5 // pred_check
        %p225 = pneg %p224
      $region38: #{actor_forward.1} parent=5 // pred_check_branch
        %227 = sbr.rel (%p225) target = $region40
      $region39: #{actor_forward.1} parent=5 // pred_region
        // Predicated region
        $region41: #{actor_forward.1} parent=39 // pred_check
          %p228 = pneg %p33
        $region42: #{actor_forward.1} parent=39 // pred_check_branch
          %230 = sbr.rel (%p228) target = $region44
        $region43: #{actor_forward.1} parent=39 // pred_region
          %s231 = smul.u32 13, %s13
          %s232 = ssub.s32 25, %s231
          %p233 = scmp.lt.s32.totalorder %s232, 13
          %s234 = scalar_select %p233, %s232, 13
          %s235 = smul.u32 128, %s234
          %p236 = scmp.lt.s32.totalorder %s231, 24
          %s237 = scalar_select %p236, %s231, 24
          %s238 = smul.addr %s237, 8
          %s239 = scalar_lea.vmem %s0, %s238
          %s240 = smul.u32 13, %s13
          %s241 = ssub.s32 25, %s240
          %p242 = scmp.lt.s32.totalorder %s241, 13
          %s243 = scalar_select %p242, %s241, 13
          %s244 = smul.u32 128, %s243
        $region44: #{actor_forward.1} parent=39 // pred_fallthru
          _
      $region40: #{actor_forward.1} parent=5 // pred_fallthru
        _
      %p245 = scmp.le.s32.totalorder 1, %s13
      %p246 = scmp.lt.s32.totalorder %s13, 3
      %p247 = pnand %p245, %p246
      %p248 = pneg %p247
      // Predicated region
      $region45: #{actor_forward.1} parent=5 // pred_check
        _
      $region46: #{actor_forward.1} parent=5 // pred_check_branch
        %250 = sbr.rel (%p247) target = $region48
      $region47: #{actor_forward.1} parent=5 // pred_region
        %s251 = ssub.s32 %s13, 1
        %s252 = smul.u32 13, %s18
        %s253 = ssub.s32 25, %s252
        %p254 = scmp.lt.s32.totalorder %s253, 13
        %s255 = scalar_select %p254, %s253, 13
        %s256 = smul.u32 128, %s255
        %p257 = scmp.lt.s32.totalorder %s252, 24
        %s258 = scalar_select %p257, %s252, 24
        %s259 = smul.addr %s258, 8
        %s260 = scalar_lea.vmem %s0, %s259
        %p261 = pneg %p39
        %p262 = pneg %p36
        %p263 = pneg %p60
        %p264 = pneg %p57
        %p265 = pneg %p81
        %p266 = pneg %p78
        %p267 = pneg %p102
        %p268 = pneg %p99
        %p269 = pneg %p123
        %p270 = pneg %p120
        %p271 = pneg %p144
        %p272 = pneg %p141
        %p273 = pneg %p165
        %p274 = pneg %p162
        %p275 = pneg %p191
        %p276 = pneg %p188
        %s277 = sand.u32 %s178, 1
        %s278 = sand.u32 %s178, 1
        %s279 = smul.addr %s278, 104
        %s280 = scalar_lea.vmem [#allocation2], %s279
        %s281 = smul.u32 13, %s18
        %s282 = ssub.s32 25, %s281
        %p283 = scmp.lt.s32.totalorder %s282, 13
        %s284 = scalar_select %p283, %s282, 13
        %s285 = smul.u32 128, %s284
        %p286 = scmp.lt.s32.totalorder %s281, 24
        %s287 = scalar_select %p286, %s281, 24
        %s288 = smul.addr %s287, 8
        %s289 = scalar_lea.vmem %s0, %s288
        %s290 = smul.u32 13, %s18
        %s291 = ssub.s32 25, %s290
        %p292 = scmp.lt.s32.totalorder %s291, 13
        %s293 = scalar_select %p292, %s291, 13
        %s294 = smul.u32 128, %s293
        %s295 = smul.u32 13, %s18
        %s296 = ssub.s32 25, %s295
        %p297 = scmp.lt.s32.totalorder %s296, 13
        %s298 = scalar_select %p297, %s296, 13
        %s299 = smul.u32 128, %s298
        %v300 = vld [vmem:[%s289] sm:$0xff]
        %v301 = vld [vmem:[%s289 + $0x8] sm:$0xff]
        %v302 = vld [vmem:[%s289 + $0x10] sm:$0xff]
        %v303 = vld [vmem:[%s289 + $0x18] sm:$0xff]
        %v304 = vld [vmem:[%s289 + $0x20] sm:$0xff]
        %v305 = vld [vmem:[%s289 + $0x28] sm:$0xff]
        %v306 = vld [vmem:[%s289 + $0x30] sm:$0xff]
        %v307 = vld [vmem:[%s289 + $0x38] sm:$0xff]
        %v308 = vld [vmem:[%s289 + $0x40] sm:$0xff]
        %v309 = vld [vmem:[%s289 + $0x48] sm:$0xff]
        %v310 = vld [vmem:[%s289 + $0x50] sm:$0xff]
        %v311 = vld [vmem:[%s289 + $0x58] sm:$0xff]
        %v312 = vld [vmem:[%s289 + $0x60] sm:$0xff]
        %v313 = vld [vmem:[%s1] sm:$0xff]
        %v314 = vld [vmem:[%s1 + $0x8] sm:$0xff]
        %v315 = vld [vmem:[%s1 + $0x10] sm:$0xff]
        %v316 = vld [vmem:[%s2] sm:$0x1]
        %v318 = vlaneseq
        %v319 = vshrl.u32 %v318, 7
        %v320 = vsub.s32 0, %v319
        %v321 = vrot.slane %v316, %v320
        %vm323 = vcmask 195584
        %v325 = vsel %vm323, %v300, 0
        %v328 = vsel %vm323, %v301, 0
        %v331 = vsel %vm323, %v302, 0
        %v334 = vsel %vm323, %v303, 0
        %v337 = vsel %vm323, %v304, 0
        %v340 = vsel %vm323, %v305, 0
        %v343 = vsel %vm323, %v306, 0
        %v346 = vsel %vm323, %v307, 0
        %v349 = vsel %vm323, %v308, 0
        %v352 = vsel %vm323, %v309, 0
        %v355 = vsel %vm323, %v310, 0
        %v358 = vsel %vm323, %v311, 0
        %v361 = vsel %vm323, %v312, 0
        %363 = vmatprep.subr.mxu0 0.0
        %v364 = vand.u32 %v313, 4294901760
        %365 = vmatpush1.msra.mxu0 %v364
        %366 = vmatprep.subr.mxu0 0.0
        %v367 = vand.u32 %v314, 4294901760
        %368 = vmatpush1.msra.mxu0 %v367
        %369 = vmatprep.subr.mxu0 0.0
        %v370 = vand.u32 %v315, 4294901760
        %371 = vmatpush1.msra.mxu0 %v370
        %372 = vmatprep.subr.mxu0 0.0
        %373 = vmatpush1.msra.mxu0 0.0
        %374 = vmatprep.subr.mxu0 0.0
        %375 = vmatpush1.msra.mxu0 0.0
        %376 = vmatprep.subr.mxu0 0.0
        %377 = vmatpush1.msra.mxu0 0.0
        %378 = vmatprep.subr.mxu0 0.0
        %379 = vmatpush1.msra.mxu0 0.0
        %380 = vmatprep.subr.mxu0 0.0
        %381 = vmatpush1.msra.mxu0 0.0
        %382 = vmatprep.subr.mxu0 0.0
        %383 = vmatpush1.msra.mxu0 0.0
        %384 = vmatprep.subr.mxu0 0.0
        %385 = vmatpush1.msra.mxu0 0.0
        %386 = vmatprep.subr.mxu0 0.0
        %387 = vmatpush1.msra.mxu0 0.0
        %388 = vmatprep.subr.mxu0 0.0
        %389 = vmatpush1.msra.mxu0 0.0
        %390 = vmatprep.subr.mxu0 0.0
        %391 = vmatpush1.msra.mxu0 0.0
        %392 = vmatprep.subr.mxu0 0.0
        %393 = vmatpush1.msra.mxu0 0.0
        %394 = vmatprep.subr.mxu0 0.0
        %395 = vmatpush1.msra.mxu0 0.0
        %396 = vmatprep.subr.mxu0 0.0
        %397 = vmatpush1.msra.mxu0 0.0
        %398 = vmatprep.subr.mxu0 0.0
        %399 = vmatpush1.msra.mxu0 0.0
        %400 = vmatprep.subr.mxu0 0.0
        %401 = vmatpush1.msra.mxu0 0.0
        %402 = vmatprep.subr.mxu0 0.0
        %403 = vmatpush1.msra.mxu0 0.0
        %404 = vmatprep.subr.mxu0 0.0
        %405 = vmatpush1.msra.mxu0 0.0
        %406 = vmatprep.subr.mxu0 0.0
        %407 = vmatpush1.msra.mxu0 0.0
        %408 = vmatprep.subr.mxu0 0.0
        %409 = vmatpush1.msra.mxu0 0.0
        %410 = vmatprep.subr.mxu0 0.0
        %411 = vmatpush1.msra.mxu0 0.0
        %412 = vmatprep.subr.mxu0 0.0
        %413 = vmatpush1.msra.mxu0 0.0
        %414 = vmatprep.subr.mxu0 0.0
        %415 = vmatpush1.msra.mxu0 0.0
        %416 = vmatprep.subr.mxu0 0.0
        %417 = vmatpush1.msra.mxu0 0.0
        %418 = vmatprep.subr.mxu0 0.0
        %419 = vmatpush1.msra.mxu0 0.0
        %420 = vmatprep.subr.mxu0 0.0
        %421 = vmatpush1.msra.mxu0 0.0
        %422 = vmatprep.subr.mxu0 0.0
        %423 = vmatpush1.msra.mxu0 0.0
        %424 = vmatprep.subr.mxu0 0.0
        %425 = vmatpush1.msra.mxu0 0.0
        %426 = vmatprep.subr.mxu0 0.0
        %427 = vmatpush1.msra.mxu0 0.0
        %428 = vmatprep.subr.mxu0 0.0
        %429 = vmatpush1.msra.mxu0 0.0
        %430 = vmatprep.mubr.f32.mxu0 0.0
        %v431 = vand.u32 %v325, 4294901760
        %v432 = vsub.f32 %v325, %v431
        %v433 = vand.u32 %v432, 4294901760
        %v434 = vsub.f32 %v432, %v433
        %v435 = vand.u32 %v434, 4294901760
        %436 = vmatmul.mubr.f32.gmra.mrb[0].mxu0 %v435
        %v437 = vpop.f32.mrb[0].mxu0
        %v438 = vadd.f32 %v321, %v437
        %v439 = vpop.f32.mrb[0].mxu0
        %440 = vmatprep.mubr.f32.mxu0 0.0
        %v441 = vand.u32 %v328, 4294901760
        %v442 = vsub.f32 %v328, %v441
        %v443 = vand.u32 %v442, 4294901760
        %v444 = vsub.f32 %v442, %v443
        %v445 = vand.u32 %v444, 4294901760
        %446 = vmatmul.mubr.f32.gmra.mrb[0].mxu0 %v445
        %v447 = vpop.f32.mrb[0].mxu0
        %v448 = vadd.f32 %v321, %v447
        %v449 = vpop.f32.mrb[0].mxu0
        %450 = vmatprep.mubr.f32.mxu0 0.0
        %v451 = vand.u32 %v331, 4294901760
        %v452 = vsub.f32 %v331, %v451
        %v453 = vand.u32 %v452, 4294901760
        %v454 = vsub.f32 %v452, %v453
        %v455 = vand.u32 %v454, 4294901760
        %456 = vmatmul.mubr.f32.gmra.mrb[0].mxu0 %v455
        %v457 = vpop.f32.mrb[0].mxu0
        %v458 = vadd.f32 %v321, %v457
        %v459 = vpop.f32.mrb[0].mxu0
        %460 = vmatprep.mubr.f32.mxu0 0.0
        %v461 = vand.u32 %v334, 4294901760
        %v462 = vsub.f32 %v334, %v461
        %v463 = vand.u32 %v462, 4294901760
        %v464 = vsub.f32 %v462, %v463
        %v465 = vand.u32 %v464, 4294901760
        %466 = vmatmul.mubr.f32.gmra.mrb[0].mxu0 %v465
        %v467 = vpop.f32.mrb[0].mxu0
        %v468 = vadd.f32 %v321, %v467
        %v469 = vpop.f32.mrb[0].mxu0
        %470 = vmatprep.mubr.f32.mxu0 0.0
        %v471 = vand.u32 %v337, 4294901760
        %v472 = vsub.f32 %v337, %v471
        %v473 = vand.u32 %v472, 4294901760
        %v474 = vsub.f32 %v472, %v473
        %v475 = vand.u32 %v474, 4294901760
        %476 = vmatmul.mubr.f32.gmra.mrb[0].mxu0 %v475
        %v477 = vpop.f32.mrb[0].mxu0
        %v478 = vadd.f32 %v321, %v477
        %v479 = vpop.f32.mrb[0].mxu0
        %480 = vmatprep.mubr.f32.mxu0 0.0
        %v481 = vand.u32 %v340, 4294901760
        %v482 = vsub.f32 %v340, %v481
        %v483 = vand.u32 %v482, 4294901760
        %v484 = vsub.f32 %v482, %v483
        %v485 = vand.u32 %v484, 4294901760
        %486 = vmatmul.mubr.f32.gmra.mrb[0].mxu0 %v485
        %v487 = vpop.f32.mrb[0].mxu0
        %v488 = vadd.f32 %v321, %v487
        %v489 = vpop.f32.mrb[0].mxu0
        %490 = vmatprep.mubr.f32.mxu0 0.0
        %v491 = vand.u32 %v343, 4294901760
        %v492 = vsub.f32 %v343, %v491
        %v493 = vand.u32 %v492, 4294901760
        %v494 = vsub.f32 %v492, %v493
        %v495 = vand.u32 %v494, 4294901760
        %496 = vmatmul.mubr.f32.gmra.mrb[0].mxu0 %v495
        %v497 = vpop.f32.mrb[0].mxu0
        %v498 = vadd.f32 %v321, %v497
        %v499 = vpop.f32.mrb[0].mxu0
        %500 = vmatprep.mubr.f32.mxu0 0.0
        %v501 = vand.u32 %v346, 4294901760
        %v502 = vsub.f32 %v346, %v501
        %v503 = vand.u32 %v502, 4294901760
        %v504 = vsub.f32 %v502, %v503
        %v505 = vand.u32 %v504, 4294901760
        %506 = vmatmul.mubr.f32.gmra.mrb[0].mxu0 %v505
        %v507 = vpop.f32.mrb[0].mxu0
        %v508 = vadd.f32 %v321, %v507
        %v509 = vpop.f32.mrb[0].mxu0
        %510 = vmatprep.mubr.f32.mxu0 0.0
        %v511 = vand.u32 %v349, 4294901760
        %v512 = vsub.f32 %v349, %v511
        %v513 = vand.u32 %v512, 4294901760
        %v514 = vsub.f32 %v512, %v513
        %v515 = vand.u32 %v514, 4294901760
        %516 = vmatmul.mubr.f32.gmra.mrb[0].mxu0 %v515
        %v517 = vpop.f32.mrb[0].mxu0
        %v518 = vadd.f32 %v321, %v517
        %v519 = vpop.f32.mrb[0].mxu0
        %520 = vmatprep.mubr.f32.mxu0 0.0
        %v521 = vand.u32 %v352, 4294901760
        %v522 = vsub.f32 %v352, %v521
        %v523 = vand.u32 %v522, 4294901760
        %v524 = vsub.f32 %v522, %v523
        %v525 = vand.u32 %v524, 4294901760
        %526 = vmatmul.mubr.f32.gmra.mrb[0].mxu0 %v525
        %v527 = vpop.f32.mrb[0].mxu0
        %v528 = vadd.f32 %v321, %v527
        %v529 = vpop.f32.mrb[0].mxu0
        %530 = vmatprep.mubr.f32.mxu0 0.0
        %v531 = vand.u32 %v355, 4294901760
        %v532 = vsub.f32 %v355, %v531
        %v533 = vand.u32 %v532, 4294901760
        %v534 = vsub.f32 %v532, %v533
        %v535 = vand.u32 %v534, 4294901760
        %536 = vmatmul.mubr.f32.gmra.mrb[0].mxu0 %v535
        %v537 = vpop.f32.mrb[0].mxu0
        %v538 = vadd.f32 %v321, %v537
        %v539 = vpop.f32.mrb[0].mxu0
        %540 = vmatprep.mubr.f32.mxu0 0.0
        %v541 = vand.u32 %v358, 4294901760
        %v542 = vsub.f32 %v358, %v541
        %v543 = vand.u32 %v542, 4294901760
        %v544 = vsub.f32 %v542, %v543
        %v545 = vand.u32 %v544, 4294901760
        %546 = vmatmul.mubr.f32.gmra.mrb[0].mxu0 %v545
        %v547 = vpop.f32.mrb[0].mxu0
        %v548 = vadd.f32 %v321, %v547
        %v549 = vpop.f32.mrb[0].mxu0
        %550 = vmatprep.mubr.f32.mxu0 0.0
        %v551 = vand.u32 %v361, 4294901760
        %v552 = vsub.f32 %v361, %v551
        %v553 = vand.u32 %v552, 4294901760
        %v554 = vsub.f32 %v552, %v553
        %v555 = vand.u32 %v554, 4294901760
        %556 = vmatmul.mubr.f32.gmra.mrb[0].mxu0 %v555
        %v557 = vpop.f32.mrb[0].mxu0
        %v558 = vadd.f32 %v321, %v557
        %v559 = vpop.f32.mrb[0].mxu0
        %560 = vdwg.mxu0
        %561 = vmatprep.subr.mxu0 0.0
        %v562 = vand.u32 %v313, 4294901760
        %v563 = vsub.f32 %v313, %v562
        %v564 = vand.u32 %v563, 4294901760
        %v565 = vsub.f32 %v563, %v564
        %v566 = vand.u32 %v565, 4294901760
        %567 = vmatpush1.msra.mxu0 %v566
        %568 = vmatprep.subr.mxu0 0.0
        %v569 = vand.u32 %v314, 4294901760
        %v570 = vsub.f32 %v314, %v569
        %v571 = vand.u32 %v570, 4294901760
        %v572 = vsub.f32 %v570, %v571
        %v573 = vand.u32 %v572, 4294901760
        %574 = vmatpush1.msra.mxu0 %v573
        %575 = vmatprep.subr.mxu0 0.0
        %v576 = vand.u32 %v315, 4294901760
        %v577 = vsub.f32 %v315, %v576
        %v578 = vand.u32 %v577, 4294901760
        %v579 = vsub.f32 %v577, %v578
        %v580 = vand.u32 %v579, 4294901760
        %581 = vmatpush1.msra.mxu0 %v580
        %582 = vmatprep.subr.mxu0 0.0
        %583 = vmatpush1.msra.mxu0 0.0
        %584 = vmatprep.subr.mxu0 0.0
        %585 = vmatpush1.msra.mxu0 0.0
        %586 = vmatprep.subr.mxu0 0.0
        %587 = vmatpush1.msra.mxu0 0.0
        %588 = vmatprep.subr.mxu0 0.0
        %589 = vmatpush1.msra.mxu0 0.0
        %590 = vmatprep.subr.mxu0 0.0
        %591 = vmatpush1.msra.mxu0 0.0
        %592 = vmatprep.subr.mxu0 0.0
        %593 = vmatpush1.msra.mxu0 0.0
        %594 = vmatprep.subr.mxu0 0.0
        %595 = vmatpush1.msra.mxu0 0.0
        %596 = vmatprep.subr.mxu0 0.0
        %597 = vmatpush1.msra.mxu0 0.0
        %598 = vmatprep.subr.mxu0 0.0
        %599 = vmatpush1.msra.mxu0 0.0
        %600 = vmatprep.subr.mxu0 0.0
        %601 = vmatpush1.msra.mxu0 0.0
        %602 = vmatprep.subr.mxu0 0.0
        %603 = vmatpush1.msra.mxu0 0.0
        %604 = vmatprep.subr.mxu0 0.0
        %605 = vmatpush1.msra.mxu0 0.0
        %606 = vmatprep.subr.mxu0 0.0
        %607 = vmatpush1.msra.mxu0 0.0
        %608 = vmatprep.subr.mxu0 0.0
        %609 = vmatpush1.msra.mxu0 0.0
        %610 = vmatprep.subr.mxu0 0.0
        %611 = vmatpush1.msra.mxu0 0.0
        %612 = vmatprep.subr.mxu0 0.0
        %613 = vmatpush1.msra.mxu0 0.0
        %614 = vmatprep.subr.mxu0 0.0
        %615 = vmatpush1.msra.mxu0 0.0
        %616 = vmatprep.subr.mxu0 0.0
        %617 = vmatpush1.msra.mxu0 0.0
        %618 = vmatprep.subr.mxu0 0.0
        %619 = vmatpush1.msra.mxu0 0.0
        %620 = vmatprep.subr.mxu0 0.0
        %621 = vmatpush1.msra.mxu0 0.0
        %622 = vmatprep.subr.mxu0 0.0
        %623 = vmatpush1.msra.mxu0 0.0
        %624 = vmatprep.subr.mxu0 0.0
        %625 = vmatpush1.msra.mxu0 0.0
        %626 = vmatprep.subr.mxu0 0.0
        %627 = vmatpush1.msra.mxu0 0.0
        %628 = vmatprep.subr.mxu0 0.0
        %629 = vmatpush1.msra.mxu0 0.0
        %630 = vmatprep.subr.mxu0 0.0
        %631 = vmatpush1.msra.mxu0 0.0
        %632 = vmatprep.subr.mxu0 0.0
        %633 = vmatpush1.msra.mxu0 0.0
        %634 = vmatprep.subr.mxu0 0.0
        %635 = vmatpush1.msra.mxu0 0.0
        %636 = vmatprep.subr.mxu0 0.0
        %637 = vmatpush1.msra.mxu0 0.0
        %638 = vmatprep.subr.mxu0 0.0
        %639 = vmatpush1.msra.mxu0 0.0
        %640 = vmatprep.mubr.f32.mxu0 0.0
        %v641 = vand.u32 %v325, 4294901760
        %642 = vmatmul.mubr.f32.gmra.mrb[0].mxu0 %v641
        %v643 = vpop.f32.mrb[0].mxu0
        %v644 = vadd.f32 %v438, %v643
        %v645 = vpop.f32.mrb[0].mxu0
        %646 = vmatprep.mubr.f32.mxu0 0.0
        %v647 = vand.u32 %v328, 4294901760
        %648 = vmatmul.mubr.f32.gmra.mrb[0].mxu0 %v647
        %v649 = vpop.f32.mrb[0].mxu0
        %v650 = vadd.f32 %v448, %v649
        %v651 = vpop.f32.mrb[0].mxu0
        %652 = vmatprep.mubr.f32.mxu0 0.0
        %v653 = vand.u32 %v331, 4294901760
        %654 = vmatmul.mubr.f32.gmra.mrb[0].mxu0 %v653
        %v655 = vpop.f32.mrb[0].mxu0
        %v656 = vadd.f32 %v458, %v655
        %v657 = vpop.f32.mrb[0].mxu0
        %658 = vmatprep.mubr.f32.mxu0 0.0
        %v659 = vand.u32 %v334, 4294901760
        %660 = vmatmul.mubr.f32.gmra.mrb[0].mxu0 %v659
        %v661 = vpop.f32.mrb[0].mxu0
        %v662 = vadd.f32 %v468, %v661
        %v663 = vpop.f32.mrb[0].mxu0
        %664 = vmatprep.mubr.f32.mxu0 0.0
        %v665 = vand.u32 %v337, 4294901760
        %666 = vmatmul.mubr.f32.gmra.mrb[0].mxu0 %v665
        %v667 = vpop.f32.mrb[0].mxu0
        %v668 = vadd.f32 %v478, %v667
        %v669 = vpop.f32.mrb[0].mxu0
        %670 = vmatprep.mubr.f32.mxu0 0.0
        %v671 = vand.u32 %v340, 4294901760
        %672 = vmatmul.mubr.f32.gmra.mrb[0].mxu0 %v671
        %v673 = vpop.f32.mrb[0].mxu0
        %v674 = vadd.f32 %v488, %v673
        %v675 = vpop.f32.mrb[0].mxu0
        %676 = vmatprep.mubr.f32.mxu0 0.0
        %v677 = vand.u32 %v343, 4294901760
        %678 = vmatmul.mubr.f32.gmra.mrb[0].mxu0 %v677
        %v679 = vpop.f32.mrb[0].mxu0
        %v680 = vadd.f32 %v498, %v679
        %v681 = vpop.f32.mrb[0].mxu0
        %682 = vmatprep.mubr.f32.mxu0 0.0
        %v683 = vand.u32 %v346, 4294901760
        %684 = vmatmul.mubr.f32.gmra.mrb[0].mxu0 %v683
        %v685 = vpop.f32.mrb[0].mxu0
        %v686 = vadd.f32 %v508, %v685
        %v687 = vpop.f32.mrb[0].mxu0
        %688 = vmatprep.mubr.f32.mxu0 0.0
        %v689 = vand.u32 %v349, 4294901760
        %690 = vmatmul.mubr.f32.gmra.mrb[0].mxu0 %v689
        %v691 = vpop.f32.mrb[0].mxu0
        %v692 = vadd.f32 %v518, %v691
        %v693 = vpop.f32.mrb[0].mxu0
        %694 = vmatprep.mubr.f32.mxu0 0.0
        %v695 = vand.u32 %v352, 4294901760
        %696 = vmatmul.mubr.f32.gmra.mrb[0].mxu0 %v695
        %v697 = vpop.f32.mrb[0].mxu0
        %v698 = vadd.f32 %v528, %v697
        %v699 = vpop.f32.mrb[0].mxu0
        %700 = vmatprep.mubr.f32.mxu0 0.0
        %v701 = vand.u32 %v355, 4294901760
        %702 = vmatmul.mubr.f32.gmra.mrb[0].mxu0 %v701
        %v703 = vpop.f32.mrb[0].mxu0
        %v704 = vadd.f32 %v538, %v703
        %v705 = vpop.f32.mrb[0].mxu0
        %706 = vmatprep.mubr.f32.mxu0 0.0
        %v707 = vand.u32 %v358, 4294901760
        %708 = vmatmul.mubr.f32.gmra.mrb[0].mxu0 %v707
        %v709 = vpop.f32.mrb[0].mxu0
        %v710 = vadd.f32 %v548, %v709
        %v711 = vpop.f32.mrb[0].mxu0
        %712 = vmatprep.mubr.f32.mxu0 0.0
        %v713 = vand.u32 %v361, 4294901760
        %714 = vmatmul.mubr.f32.gmra.mrb[0].mxu0 %v713
        %v715 = vpop.f32.mrb[0].mxu0
        %v716 = vadd.f32 %v558, %v715
        %v717 = vpop.f32.mrb[0].mxu0
        %718 = vdwg.mxu0
        %719 = vmatprep.subr.mxu0 0.0
        %v720 = vand.u32 %v313, 4294901760
        %v721 = vsub.f32 %v313, %v720
        %722 = vmatpush1.msra.mxu0 %v721
        %723 = vmatprep.subr.mxu0 0.0
        %v724 = vand.u32 %v314, 4294901760
        %v725 = vsub.f32 %v314, %v724
        %726 = vmatpush1.msra.mxu0 %v725
        %727 = vmatprep.subr.mxu0 0.0
        %v728 = vand.u32 %v315, 4294901760
        %v729 = vsub.f32 %v315, %v728
        %730 = vmatpush1.msra.mxu0 %v729
        %731 = vmatprep.subr.mxu0 0.0
        %732 = vmatpush1.msra.mxu0 0.0
        %733 = vmatprep.subr.mxu0 0.0
        %734 = vmatpush1.msra.mxu0 0.0
        %735 = vmatprep.subr.mxu0 0.0
        %736 = vmatpush1.msra.mxu0 0.0
        %737 = vmatprep.subr.mxu0 0.0
        %738 = vmatpush1.msra.mxu0 0.0
        %739 = vmatprep.subr.mxu0 0.0
        %740 = vmatpush1.msra.mxu0 0.0
        %741 = vmatprep.subr.mxu0 0.0
        %742 = vmatpush1.msra.mxu0 0.0
        %743 = vmatprep.subr.mxu0 0.0
        %744 = vmatpush1.msra.mxu0 0.0
        %745 = vmatprep.subr.mxu0 0.0
        %746 = vmatpush1.msra.mxu0 0.0
        %747 = vmatprep.subr.mxu0 0.0
        %748 = vmatpush1.msra.mxu0 0.0
        %749 = vmatprep.subr.mxu0 0.0
        %750 = vmatpush1.msra.mxu0 0.0
        %751 = vmatprep.subr.mxu0 0.0
        %752 = vmatpush1.msra.mxu0 0.0
        %753 = vmatprep.subr.mxu0 0.0
        %754 = vmatpush1.msra.mxu0 0.0
        %755 = vmatprep.subr.mxu0 0.0
        %756 = vmatpush1.msra.mxu0 0.0
        %757 = vmatprep.subr.mxu0 0.0
        %758 = vmatpush1.msra.mxu0 0.0
        %759 = vmatprep.subr.mxu0 0.0
        %760 = vmatpush1.msra.mxu0 0.0
        %761 = vmatprep.subr.mxu0 0.0
        %762 = vmatpush1.msra.mxu0 0.0
        %763 = vmatprep.subr.mxu0 0.0
        %764 = vmatpush1.msra.mxu0 0.0
        %765 = vmatprep.subr.mxu0 0.0
        %766 = vmatpush1.msra.mxu0 0.0
        %767 = vmatprep.subr.mxu0 0.0
        %768 = vmatpush1.msra.mxu0 0.0
        %769 = vmatprep.subr.mxu0 0.0
        %770 = vmatpush1.msra.mxu0 0.0
        %771 = vmatprep.subr.mxu0 0.0
        %772 = vmatpush1.msra.mxu0 0.0
        %773 = vmatprep.subr.mxu0 0.0
        %774 = vmatpush1.msra.mxu0 0.0
        %775 = vmatprep.subr.mxu0 0.0
        %776 = vmatpush1.msra.mxu0 0.0
        %777 = vmatprep.subr.mxu0 0.0
        %778 = vmatpush1.msra.mxu0 0.0
        %779 = vmatprep.subr.mxu0 0.0
        %780 = vmatpush1.msra.mxu0 0.0
        %781 = vmatprep.subr.mxu0 0.0
        %782 = vmatpush1.msra.mxu0 0.0
        %783 = vmatprep.subr.mxu0 0.0
        %784 = vmatpush1.msra.mxu0 0.0
        %785 = vmatprep.subr.mxu0 0.0
        %786 = vmatpush1.msra.mxu0 0.0
        %787 = vmatprep.subr.mxu0 0.0
        %788 = vmatpush1.msra.mxu0 0.0
        %789 = vmatprep.mubr.f32.mxu0 0.0
        %v790 = vand.u32 %v325, 4294901760
        %v791 = vsub.f32 %v325, %v790
        %792 = vmatmul.mubr.f32.gmra.mrb[0].mxu0 %v791
        %v793 = vpop.f32.mrb[0].mxu0
        %v794 = vadd.f32 %v644, %v793
        %v795 = vpop.f32.mrb[0].mxu0
        %796 = vmatprep.mubr.f32.mxu0 0.0
        %v797 = vand.u32 %v328, 4294901760
        %v798 = vsub.f32 %v328, %v797
        %799 = vmatmul.mubr.f32.gmra.mrb[0].mxu0 %v798
        %v800 = vpop.f32.mrb[0].mxu0
        %v801 = vadd.f32 %v650, %v800
        %v802 = vpop.f32.mrb[0].mxu0
        %803 = vmatprep.mubr.f32.mxu0 0.0
        %v804 = vand.u32 %v331, 4294901760
        %v805 = vsub.f32 %v331, %v804
        %806 = vmatmul.mubr.f32.gmra.mrb[0].mxu0 %v805
        %v807 = vpop.f32.mrb[0].mxu0
        %v808 = vadd.f32 %v656, %v807
        %v809 = vpop.f32.mrb[0].mxu0
        %810 = vmatprep.mubr.f32.mxu0 0.0
        %v811 = vand.u32 %v334, 4294901760
        %v812 = vsub.f32 %v334, %v811
        %813 = vmatmul.mubr.f32.gmra.mrb[0].mxu0 %v812
        %v814 = vpop.f32.mrb[0].mxu0
        %v815 = vadd.f32 %v662, %v814
        %v816 = vpop.f32.mrb[0].mxu0
        %817 = vmatprep.mubr.f32.mxu0 0.0
        %v818 = vand.u32 %v337, 4294901760
        %v819 = vsub.f32 %v337, %v818
        %820 = vmatmul.mubr.f32.gmra.mrb[0].mxu0 %v819
        %v821 = vpop.f32.mrb[0].mxu0
        %v822 = vadd.f32 %v668, %v821
        %v823 = vpop.f32.mrb[0].mxu0
        %824 = vmatprep.mubr.f32.mxu0 0.0
        %v825 = vand.u32 %v340, 4294901760
        %v826 = vsub.f32 %v340, %v825
        %827 = vmatmul.mubr.f32.gmra.mrb[0].mxu0 %v826
        %v828 = vpop.f32.mrb[0].mxu0
        %v829 = vadd.f32 %v674, %v828
        %v830 = vpop.f32.mrb[0].mxu0
        %831 = vmatprep.mubr.f32.mxu0 0.0
        %v832 = vand.u32 %v343, 4294901760
        %v833 = vsub.f32 %v343, %v832
        %834 = vmatmul.mubr.f32.gmra.mrb[0].mxu0 %v833
        %v835 = vpop.f32.mrb[0].mxu0
        %v836 = vadd.f32 %v680, %v835
        %v837 = vpop.f32.mrb[0].mxu0
        %838 = vmatprep.mubr.f32.mxu0 0.0
        %v839 = vand.u32 %v346, 4294901760
        %v840 = vsub.f32 %v346, %v839
        %841 = vmatmul.mubr.f32.gmra.mrb[0].mxu0 %v840
        %v842 = vpop.f32.mrb[0].mxu0
        %v843 = vadd.f32 %v686, %v842
        %v844 = vpop.f32.mrb[0].mxu0
        %845 = vmatprep.mubr.f32.mxu0 0.0
        %v846 = vand.u32 %v349, 4294901760
        %v847 = vsub.f32 %v349, %v846
        %848 = vmatmul.mubr.f32.gmra.mrb[0].mxu0 %v847
        %v849 = vpop.f32.mrb[0].mxu0
        %v850 = vadd.f32 %v692, %v849
        %v851 = vpop.f32.mrb[0].mxu0
        %852 = vmatprep.mubr.f32.mxu0 0.0
        %v853 = vand.u32 %v352, 4294901760
        %v854 = vsub.f32 %v352, %v853
        %855 = vmatmul.mubr.f32.gmra.mrb[0].mxu0 %v854
        %v856 = vpop.f32.mrb[0].mxu0
        %v857 = vadd.f32 %v698, %v856
        %v858 = vpop.f32.mrb[0].mxu0
        %859 = vmatprep.mubr.f32.mxu0 0.0
        %v860 = vand.u32 %v355, 4294901760
        %v861 = vsub.f32 %v355, %v860
        %862 = vmatmul.mubr.f32.gmra.mrb[0].mxu0 %v861
        %v863 = vpop.f32.mrb[0].mxu0
        %v864 = vadd.f32 %v704, %v863
        %v865 = vpop.f32.mrb[0].mxu0
        %866 = vmatprep.mubr.f32.mxu0 0.0
        %v867 = vand.u32 %v358, 4294901760
        %v868 = vsub.f32 %v358, %v867
        %869 = vmatmul.mubr.f32.gmra.mrb[0].mxu0 %v868
        %v870 = vpop.f32.mrb[0].mxu0
        %v871 = vadd.f32 %v710, %v870
        %v872 = vpop.f32.mrb[0].mxu0
        %873 = vmatprep.mubr.f32.mxu0 0.0
        %v874 = vand.u32 %v361, 4294901760
        %v875 = vsub.f32 %v361, %v874
        %876 = vmatmul.mubr.f32.gmra.mrb[0].mxu0 %v875
        %v877 = vpop.f32.mrb[0].mxu0
        %v878 = vadd.f32 %v716, %v877
        %v879 = vpop.f32.mrb[0].mxu0
        %880 = vdwg.mxu0
        %881 = vmatprep.subr.mxu0 0.0
        %v882 = vand.u32 %v313, 4294901760
        %883 = vmatpush1.msra.mxu0 %v882
        %884 = vmatprep.subr.mxu0 0.0
        %v885 = vand.u32 %v314, 4294901760
        %886 = vmatpush1.msra.mxu0 %v885
        %887 = vmatprep.subr.mxu0 0.0
        %v888 = vand.u32 %v315, 4294901760
        %889 = vmatpush1.msra.mxu0 %v888
        %890 = vmatprep.subr.mxu0 0.0
        %891 = vmatpush1.msra.mxu0 0.0
        %892 = vmatprep.subr.mxu0 0.0
        %893 = vmatpush1.msra.mxu0 0.0
        %894 = vmatprep.subr.mxu0 0.0
        %895 = vmatpush1.msra.mxu0 0.0
        %896 = vmatprep.subr.mxu0 0.0
        %897 = vmatpush1.msra.mxu0 0.0
        %898 = vmatprep.subr.mxu0 0.0
        %899 = vmatpush1.msra.mxu0 0.0
        %900 = vmatprep.subr.mxu0 0.0
        %901 = vmatpush1.msra.mxu0 0.0
        %902 = vmatprep.subr.mxu0 0.0
        %903 = vmatpush1.msra.mxu0 0.0
        %904 = vmatprep.subr.mxu0 0.0
        %905 = vmatpush1.msra.mxu0 0.0
        %906 = vmatprep.subr.mxu0 0.0
        %907 = vmatpush1.msra.mxu0 0.0
        %908 = vmatprep.subr.mxu0 0.0
        %909 = vmatpush1.msra.mxu0 0.0
        %910 = vmatprep.subr.mxu0 0.0
        %911 = vmatpush1.msra.mxu0 0.0
        %912 = vmatprep.subr.mxu0 0.0
        %913 = vmatpush1.msra.mxu0 0.0
        %914 = vmatprep.subr.mxu0 0.0
        %915 = vmatpush1.msra.mxu0 0.0
        %916 = vmatprep.subr.mxu0 0.0
        %917 = vmatpush1.msra.mxu0 0.0
        %918 = vmatprep.subr.mxu0 0.0
        %919 = vmatpush1.msra.mxu0 0.0
        %920 = vmatprep.subr.mxu0 0.0
        %921 = vmatpush1.msra.mxu0 0.0
        %922 = vmatprep.subr.mxu0 0.0
        %923 = vmatpush1.msra.mxu0 0.0
        %924 = vmatprep.subr.mxu0 0.0
        %925 = vmatpush1.msra.mxu0 0.0
        %926 = vmatprep.subr.mxu0 0.0
        %927 = vmatpush1.msra.mxu0 0.0
        %928 = vmatprep.subr.mxu0 0.0
        %929 = vmatpush1.msra.mxu0 0.0
        %930 = vmatprep.subr.mxu0 0.0
        %931 = vmatpush1.msra.mxu0 0.0
        %932 = vmatprep.subr.mxu0 0.0
        %933 = vmatpush1.msra.mxu0 0.0
        %934 = vmatprep.subr.mxu0 0.0
        %935 = vmatpush1.msra.mxu0 0.0
        %936 = vmatprep.subr.mxu0 0.0
        %937 = vmatpush1.msra.mxu0 0.0
        %938 = vmatprep.subr.mxu0 0.0
        %939 = vmatpush1.msra.mxu0 0.0
        %940 = vmatprep.subr.mxu0 0.0
        %941 = vmatpush1.msra.mxu0 0.0
        %942 = vmatprep.subr.mxu0 0.0
        %943 = vmatpush1.msra.mxu0 0.0
        %944 = vmatprep.subr.mxu0 0.0
        %945 = vmatpush1.msra.mxu0 0.0
        %946 = vmatprep.subr.mxu0 0.0
        %947 = vmatpush1.msra.mxu0 0.0
        %948 = vmatprep.mubr.f32.mxu0 0.0
        %v949 = vand.u32 %v325, 4294901760
        %v950 = vsub.f32 %v325, %v949
        %v951 = vand.u32 %v950, 4294901760
        %952 = vmatmul.mubr.f32.gmra.mrb[0].mxu0 %v951
        %v953 = vpop.f32.mrb[0].mxu0
        %v954 = vadd.f32 %v794, %v953
        %v955 = vpop.f32.mrb[0].mxu0
        %956 = vmatprep.mubr.f32.mxu0 0.0
        %v957 = vand.u32 %v328, 4294901760
        %v958 = vsub.f32 %v328, %v957
        %v959 = vand.u32 %v958, 4294901760
        %960 = vmatmul.mubr.f32.gmra.mrb[0].mxu0 %v959
        %v961 = vpop.f32.mrb[0].mxu0
        %v962 = vadd.f32 %v801, %v961
        %v963 = vpop.f32.mrb[0].mxu0
        %964 = vmatprep.mubr.f32.mxu0 0.0
        %v965 = vand.u32 %v331, 4294901760
        %v966 = vsub.f32 %v331, %v965
        %v967 = vand.u32 %v966, 4294901760
        %968 = vmatmul.mubr.f32.gmra.mrb[0].mxu0 %v967
        %v969 = vpop.f32.mrb[0].mxu0
        %v970 = vadd.f32 %v808, %v969
        %v971 = vpop.f32.mrb[0].mxu0
        %972 = vmatprep.mubr.f32.mxu0 0.0
        %v973 = vand.u32 %v334, 4294901760
        %v974 = vsub.f32 %v334, %v973
        %v975 = vand.u32 %v974, 4294901760
        %976 = vmatmul.mubr.f32.gmra.mrb[0].mxu0 %v975
        %v977 = vpop.f32.mrb[0].mxu0
        %v978 = vadd.f32 %v815, %v977
        %v979 = vpop.f32.mrb[0].mxu0
        %980 = vmatprep.mubr.f32.mxu0 0.0
        %v981 = vand.u32 %v337, 4294901760
        %v982 = vsub.f32 %v337, %v981
        %v983 = vand.u32 %v982, 4294901760
        %984 = vmatmul.mubr.f32.gmra.mrb[0].mxu0 %v983
        %v985 = vpop.f32.mrb[0].mxu0
        %v986 = vadd.f32 %v822, %v985
        %v987 = vpop.f32.mrb[0].mxu0
        %988 = vmatprep.mubr.f32.mxu0 0.0
        %v989 = vand.u32 %v340, 4294901760
        %v990 = vsub.f32 %v340, %v989
        %v991 = vand.u32 %v990, 4294901760
        %992 = vmatmul.mubr.f32.gmra.mrb[0].mxu0 %v991
        %v993 = vpop.f32.mrb[0].mxu0
        %v994 = vadd.f32 %v829, %v993
        %v995 = vpop.f32.mrb[0].mxu0
        %996 = vmatprep.mubr.f32.mxu0 0.0
        %v997 = vand.u32 %v343, 4294901760
        %v998 = vsub.f32 %v343, %v997
        %v999 = vand.u32 %v998, 4294901760
        %1000 = vmatmul.mubr.f32.gmra.mrb[0].mxu0 %v999
        %v1001 = vpop.f32.mrb[0].mxu0
        %v1002 = vadd.f32 %v836, %v1001
        %v1003 = vpop.f32.mrb[0].mxu0
        %1004 = vmatprep.mubr.f32.mxu0 0.0
        %v1005 = vand.u32 %v346, 4294901760
        %v1006 = vsub.f32 %v346, %v1005
        %v1007 = vand.u32 %v1006, 4294901760
        %1008 = vmatmul.mubr.f32.gmra.mrb[0].mxu0 %v1007
        %v1009 = vpop.f32.mrb[0].mxu0
        %v1010 = vadd.f32 %v843, %v1009
        %v1011 = vpop.f32.mrb[0].mxu0
        %1012 = vmatprep.mubr.f32.mxu0 0.0
        %v1013 = vand.u32 %v349, 4294901760
        %v1014 = vsub.f32 %v349, %v1013
        %v1015 = vand.u32 %v1014, 4294901760
        %1016 = vmatmul.mubr.f32.gmra.mrb[0].mxu0 %v1015
        %v1017 = vpop.f32.mrb[0].mxu0
        %v1018 = vadd.f32 %v850, %v1017
        %v1019 = vpop.f32.mrb[0].mxu0
        %1020 = vmatprep.mubr.f32.mxu0 0.0
        %v1021 = vand.u32 %v352, 4294901760
        %v1022 = vsub.f32 %v352, %v1021
        %v1023 = vand.u32 %v1022, 4294901760
        %1024 = vmatmul.mubr.f32.gmra.mrb[0].mxu0 %v1023
        %v1025 = vpop.f32.mrb[0].mxu0
        %v1026 = vadd.f32 %v857, %v1025
        %v1027 = vpop.f32.mrb[0].mxu0
        %1028 = vmatprep.mubr.f32.mxu0 0.0
        %v1029 = vand.u32 %v355, 4294901760
        %v1030 = vsub.f32 %v355, %v1029
        %v1031 = vand.u32 %v1030, 4294901760
        %1032 = vmatmul.mubr.f32.gmra.mrb[0].mxu0 %v1031
        %v1033 = vpop.f32.mrb[0].mxu0
        %v1034 = vadd.f32 %v864, %v1033
        %v1035 = vpop.f32.mrb[0].mxu0
        %1036 = vmatprep.mubr.f32.mxu0 0.0
        %v1037 = vand.u32 %v358, 4294901760
        %v1038 = vsub.f32 %v358, %v1037
        %v1039 = vand.u32 %v1038, 4294901760
        %1040 = vmatmul.mubr.f32.gmra.mrb[0].mxu0 %v1039
        %v1041 = vpop.f32.mrb[0].mxu0
        %v1042 = vadd.f32 %v871, %v1041
        %v1043 = vpop.f32.mrb[0].mxu0
        %1044 = vmatprep.mubr.f32.mxu0 0.0
        %v1045 = vand.u32 %v361, 4294901760
        %v1046 = vsub.f32 %v361, %v1045
        %v1047 = vand.u32 %v1046, 4294901760
        %1048 = vmatmul.mubr.f32.gmra.mrb[0].mxu0 %v1047
        %v1049 = vpop.f32.mrb[0].mxu0
        %v1050 = vadd.f32 %v878, %v1049
        %v1051 = vpop.f32.mrb[0].mxu0
        %1052 = vdwg.mxu0
        %1053 = vmatprep.subr.mxu0 0.0
        %v1054 = vand.u32 %v313, 4294901760
        %v1055 = vsub.f32 %v313, %v1054
        %v1056 = vand.u32 %v1055, 4294901760
        %1057 = vmatpush1.msra.mxu0 %v1056
        %1058 = vmatprep.subr.mxu0 0.0
        %v1059 = vand.u32 %v314, 4294901760
        %v1060 = vsub.f32 %v314, %v1059
        %v1061 = vand.u32 %v1060, 4294901760
        %1062 = vmatpush1.msra.mxu0 %v1061
        %1063 = vmatprep.subr.mxu0 0.0
        %v1064 = vand.u32 %v315, 4294901760
        %v1065 = vsub.f32 %v315, %v1064
        %v1066 = vand.u32 %v1065, 4294901760
        %1067 = vmatpush1.msra.mxu0 %v1066
        %1068 = vmatprep.subr.mxu0 0.0
        %1069 = vmatpush1.msra.mxu0 0.0
        %1070 = vmatprep.subr.mxu0 0.0
        %1071 = vmatpush1.msra.mxu0 0.0
        %1072 = vmatprep.subr.mxu0 0.0
        %1073 = vmatpush1.msra.mxu0 0.0
        %1074 = vmatprep.subr.mxu0 0.0
        %1075 = vmatpush1.msra.mxu0 0.0
        %1076 = vmatprep.subr.mxu0 0.0
        %1077 = vmatpush1.msra.mxu0 0.0
        %1078 = vmatprep.subr.mxu0 0.0
        %1079 = vmatpush1.msra.mxu0 0.0
        %1080 = vmatprep.subr.mxu0 0.0
        %1081 = vmatpush1.msra.mxu0 0.0
        %1082 = vmatprep.subr.mxu0 0.0
        %1083 = vmatpush1.msra.mxu0 0.0
        %1084 = vmatprep.subr.mxu0 0.0
        %1085 = vmatpush1.msra.mxu0 0.0
        %1086 = vmatprep.subr.mxu0 0.0
        %1087 = vmatpush1.msra.mxu0 0.0
        %1088 = vmatprep.subr.mxu0 0.0
        %1089 = vmatpush1.msra.mxu0 0.0
        %1090 = vmatprep.subr.mxu0 0.0
        %1091 = vmatpush1.msra.mxu0 0.0
        %1092 = vmatprep.subr.mxu0 0.0
        %1093 = vmatpush1.msra.mxu0 0.0
        %1094 = vmatprep.subr.mxu0 0.0
        %1095 = vmatpush1.msra.mxu0 0.0
        %1096 = vmatprep.subr.mxu0 0.0
        %1097 = vmatpush1.msra.mxu0 0.0
        %1098 = vmatprep.subr.mxu0 0.0
        %1099 = vmatpush1.msra.mxu0 0.0
        %1100 = vmatprep.subr.mxu0 0.0
        %1101 = vmatpush1.msra.mxu0 0.0
        %1102 = vmatprep.subr.mxu0 0.0
        %1103 = vmatpush1.msra.mxu0 0.0
        %1104 = vmatprep.subr.mxu0 0.0
        %1105 = vmatpush1.msra.mxu0 0.0
        %1106 = vmatprep.subr.mxu0 0.0
        %1107 = vmatpush1.msra.mxu0 0.0
        %1108 = vmatprep.subr.mxu0 0.0
        %1109 = vmatpush1.msra.mxu0 0.0
        %1110 = vmatprep.subr.mxu0 0.0
        %1111 = vmatpush1.msra.mxu0 0.0
        %1112 = vmatprep.subr.mxu0 0.0
        %1113 = vmatpush1.msra.mxu0 0.0
        %1114 = vmatprep.subr.mxu0 0.0
        %1115 = vmatpush1.msra.mxu0 0.0
        %1116 = vmatprep.subr.mxu0 0.0
        %1117 = vmatpush1.msra.mxu0 0.0
        %1118 = vmatprep.subr.mxu0 0.0
        %1119 = vmatpush1.msra.mxu0 0.0
        %1120 = vmatprep.subr.mxu0 0.0
        %1121 = vmatpush1.msra.mxu0 0.0
        %1122 = vmatprep.subr.mxu0 0.0
        %1123 = vmatpush1.msra.mxu0 0.0
        %1124 = vmatprep.subr.mxu0 0.0
        %1125 = vmatpush1.msra.mxu0 0.0
        %1126 = vmatprep.mubr.f32.mxu0 0.0
        %v1127 = vand.u32 %v325, 4294901760
        %1128 = vmatmul.mubr.f32.gmra.mrb[0].mxu0 %v1127
        %v1129 = vpop.f32.mrb[0].mxu0
        %v1130 = vadd.f32 %v954, %v1129
        %v1131 = vpop.f32.mrb[0].mxu0
        %1132 = vmatprep.mubr.f32.mxu0 0.0
        %v1133 = vand.u32 %v328, 4294901760
        %1134 = vmatmul.mubr.f32.gmra.mrb[0].mxu0 %v1133
        %v1135 = vpop.f32.mrb[0].mxu0
        %v1136 = vadd.f32 %v962, %v1135
        %v1137 = vpop.f32.mrb[0].mxu0
        %1138 = vmatprep.mubr.f32.mxu0 0.0
        %v1139 = vand.u32 %v331, 4294901760
        %1140 = vmatmul.mubr.f32.gmra.mrb[0].mxu0 %v1139
        %v1141 = vpop.f32.mrb[0].mxu0
        %v1142 = vadd.f32 %v970, %v1141
        %v1143 = vpop.f32.mrb[0].mxu0
        %1144 = vmatprep.mubr.f32.mxu0 0.0
        %v1145 = vand.u32 %v334, 4294901760
        %1146 = vmatmul.mubr.f32.gmra.mrb[0].mxu0 %v1145
        %v1147 = vpop.f32.mrb[0].mxu0
        %v1148 = vadd.f32 %v978, %v1147
        %v1149 = vpop.f32.mrb[0].mxu0
        %1150 = vmatprep.mubr.f32.mxu0 0.0
        %v1151 = vand.u32 %v337, 4294901760
        %1152 = vmatmul.mubr.f32.gmra.mrb[0].mxu0 %v1151
        %v1153 = vpop.f32.mrb[0].mxu0
        %v1154 = vadd.f32 %v986, %v1153
        %v1155 = vpop.f32.mrb[0].mxu0
        %1156 = vmatprep.mubr.f32.mxu0 0.0
        %v1157 = vand.u32 %v340, 4294901760
        %1158 = vmatmul.mubr.f32.gmra.mrb[0].mxu0 %v1157
        %v1159 = vpop.f32.mrb[0].mxu0
        %v1160 = vadd.f32 %v994, %v1159
        %v1161 = vpop.f32.mrb[0].mxu0
        %1162 = vmatprep.mubr.f32.mxu0 0.0
        %v1163 = vand.u32 %v343, 4294901760
        %1164 = vmatmul.mubr.f32.gmra.mrb[0].mxu0 %v1163
        %v1165 = vpop.f32.mrb[0].mxu0
        %v1166 = vadd.f32 %v1002, %v1165
        %v1167 = vpop.f32.mrb[0].mxu0
        %1168 = vmatprep.mubr.f32.mxu0 0.0
        %v1169 = vand.u32 %v346, 4294901760
        %1170 = vmatmul.mubr.f32.gmra.mrb[0].mxu0 %v1169
        %v1171 = vpop.f32.mrb[0].mxu0
        %v1172 = vadd.f32 %v1010, %v1171
        %v1173 = vpop.f32.mrb[0].mxu0
        %1174 = vmatprep.mubr.f32.mxu0 0.0
        %v1175 = vand.u32 %v349, 4294901760
        %1176 = vmatmul.mubr.f32.gmra.mrb[0].mxu0 %v1175
        %v1177 = vpop.f32.mrb[0].mxu0
        %v1178 = vadd.f32 %v1018, %v1177
        %v1179 = vpop.f32.mrb[0].mxu0
        %1180 = vmatprep.mubr.f32.mxu0 0.0
        %v1181 = vand.u32 %v352, 4294901760
        %1182 = vmatmul.mubr.f32.gmra.mrb[0].mxu0 %v1181
        %v1183 = vpop.f32.mrb[0].mxu0
        %v1184 = vadd.f32 %v1026, %v1183
        %v1185 = vpop.f32.mrb[0].mxu0
        %1186 = vmatprep.mubr.f32.mxu0 0.0
        %v1187 = vand.u32 %v355, 4294901760
        %1188 = vmatmul.mubr.f32.gmra.mrb[0].mxu0 %v1187
        %v1189 = vpop.f32.mrb[0].mxu0
        %v1190 = vadd.f32 %v1034, %v1189
        %v1191 = vpop.f32.mrb[0].mxu0
        %1192 = vmatprep.mubr.f32.mxu0 0.0
        %v1193 = vand.u32 %v358, 4294901760
        %1194 = vmatmul.mubr.f32.gmra.mrb[0].mxu0 %v1193
        %v1195 = vpop.f32.mrb[0].mxu0
        %v1196 = vadd.f32 %v1042, %v1195
        %v1197 = vpop.f32.mrb[0].mxu0
        %1198 = vmatprep.mubr.f32.mxu0 0.0
        %v1199 = vand.u32 %v361, 4294901760
        %1200 = vmatmul.mubr.f32.gmra.mrb[0].mxu0 %v1199
        %v1201 = vpop.f32.mrb[0].mxu0
        %v1202 = vadd.f32 %v1050, %v1201
        %v1203 = vpop.f32.mrb[0].mxu0
        %1204 = vdwg.mxu0
        %1205 = vmatprep.subr.mxu0 0.0
        %v1206 = vand.u32 %v313, 4294901760
        %1207 = vmatpush1.msra.mxu0 %v1206
        %1208 = vmatprep.subr.mxu0 0.0
        %v1209 = vand.u32 %v314, 4294901760
        %1210 = vmatpush1.msra.mxu0 %v1209
        %1211 = vmatprep.subr.mxu0 0.0
        %v1212 = vand.u32 %v315, 4294901760
        %1213 = vmatpush1.msra.mxu0 %v1212
        %1214 = vmatprep.subr.mxu0 0.0
        %1215 = vmatpush1.msra.mxu0 0.0
        %1216 = vmatprep.subr.mxu0 0.0
        %1217 = vmatpush1.msra.mxu0 0.0
        %1218 = vmatprep.subr.mxu0 0.0
        %1219 = vmatpush1.msra.mxu0 0.0
        %1220 = vmatprep.subr.mxu0 0.0
        %1221 = vmatpush1.msra.mxu0 0.0
        %1222 = vmatprep.subr.mxu0 0.0
        %1223 = vmatpush1.msra.mxu0 0.0
        %1224 = vmatprep.subr.mxu0 0.0
        %1225 = vmatpush1.msra.mxu0 0.0
        %1226 = vmatprep.subr.mxu0 0.0
        %1227 = vmatpush1.msra.mxu0 0.0
        %1228 = vmatprep.subr.mxu0 0.0
        %1229 = vmatpush1.msra.mxu0 0.0
        %1230 = vmatprep.subr.mxu0 0.0
        %1231 = vmatpush1.msra.mxu0 0.0
        %1232 = vmatprep.subr.mxu0 0.0
        %1233 = vmatpush1.msra.mxu0 0.0
        %1234 = vmatprep.subr.mxu0 0.0
        %1235 = vmatpush1.msra.mxu0 0.0
        %1236 = vmatprep.subr.mxu0 0.0
        %1237 = vmatpush1.msra.mxu0 0.0
        %1238 = vmatprep.subr.mxu0 0.0
        %1239 = vmatpush1.msra.mxu0 0.0
        %1240 = vmatprep.subr.mxu0 0.0
        %1241 = vmatpush1.msra.mxu0 0.0
        %1242 = vmatprep.subr.mxu0 0.0
        %1243 = vmatpush1.msra.mxu0 0.0
        %1244 = vmatprep.subr.mxu0 0.0
        %1245 = vmatpush1.msra.mxu0 0.0
        %1246 = vmatprep.subr.mxu0 0.0
        %1247 = vmatpush1.msra.mxu0 0.0
        %1248 = vmatprep.subr.mxu0 0.0
        %1249 = vmatpush1.msra.mxu0 0.0
        %1250 = vmatprep.subr.mxu0 0.0
        %1251 = vmatpush1.msra.mxu0 0.0
        %1252 = vmatprep.subr.mxu0 0.0
        %1253 = vmatpush1.msra.mxu0 0.0
        %1254 = vmatprep.subr.mxu0 0.0
        %1255 = vmatpush1.msra.mxu0 0.0
        %1256 = vmatprep.subr.mxu0 0.0
        %1257 = vmatpush1.msra.mxu0 0.0
        %1258 = vmatprep.subr.mxu0 0.0
        %1259 = vmatpush1.msra.mxu0 0.0
        %1260 = vmatprep.subr.mxu0 0.0
        %1261 = vmatpush1.msra.mxu0 0.0
        %1262 = vmatprep.subr.mxu0 0.0
        %1263 = vmatpush1.msra.mxu0 0.0
        %1264 = vmatprep.subr.mxu0 0.0
        %1265 = vmatpush1.msra.mxu0 0.0
        %1266 = vmatprep.subr.mxu0 0.0
        %1267 = vmatpush1.msra.mxu0 0.0
        %1268 = vmatprep.subr.mxu0 0.0
        %1269 = vmatpush1.msra.mxu0 0.0
        %1270 = vmatprep.subr.mxu0 0.0
        %1271 = vmatpush1.msra.mxu0 0.0
        %1272 = vmatprep.mubr.f32.mxu0 0.0
        %v1273 = vand.u32 %v325, 4294901760
        %1274 = vmatmul.mubr.f32.gmra.mrb[0].mxu0 %v1273
        %v1275 = vpop.f32.mrb[0].mxu0
        %v1276 = vadd.f32 %v1130, %v1275
        %v1277 = vpop.f32.mrb[0].mxu0
        %1278 = vmatprep.mubr.f32.mxu0 0.0
        %v1279 = vand.u32 %v328, 4294901760
        %1280 = vmatmul.mubr.f32.gmra.mrb[0].mxu0 %v1279
        %v1281 = vpop.f32.mrb[0].mxu0
        %v1282 = vadd.f32 %v1136, %v1281
        %v1283 = vpop.f32.mrb[0].mxu0
        %1284 = vmatprep.mubr.f32.mxu0 0.0
        %v1285 = vand.u32 %v331, 4294901760
        %1286 = vmatmul.mubr.f32.gmra.mrb[0].mxu0 %v1285
        %v1287 = vpop.f32.mrb[0].mxu0
        %v1288 = vadd.f32 %v1142, %v1287
        %v1289 = vpop.f32.mrb[0].mxu0
        %1290 = vmatprep.mubr.f32.mxu0 0.0
        %v1291 = vand.u32 %v334, 4294901760
        %1292 = vmatmul.mubr.f32.gmra.mrb[0].mxu0 %v1291
        %v1293 = vpop.f32.mrb[0].mxu0
        %v1294 = vadd.f32 %v1148, %v1293
        %v1295 = vpop.f32.mrb[0].mxu0
        %1296 = vmatprep.mubr.f32.mxu0 0.0
        %v1297 = vand.u32 %v337, 4294901760
        %1298 = vmatmul.mubr.f32.gmra.mrb[0].mxu0 %v1297
        %v1299 = vpop.f32.mrb[0].mxu0
        %v1300 = vadd.f32 %v1154, %v1299
        %v1301 = vpop.f32.mrb[0].mxu0
        %1302 = vmatprep.mubr.f32.mxu0 0.0
        %v1303 = vand.u32 %v340, 4294901760
        %1304 = vmatmul.mubr.f32.gmra.mrb[0].mxu0 %v1303
        %v1305 = vpop.f32.mrb[0].mxu0
        %v1306 = vadd.f32 %v1160, %v1305
        %v1307 = vpop.f32.mrb[0].mxu0
        %1308 = vmatprep.mubr.f32.mxu0 0.0
        %v1309 = vand.u32 %v343, 4294901760
        %1310 = vmatmul.mubr.f32.gmra.mrb[0].mxu0 %v1309
        %v1311 = vpop.f32.mrb[0].mxu0
        %v1312 = vadd.f32 %v1166, %v1311
        %v1313 = vpop.f32.mrb[0].mxu0
        %1314 = vmatprep.mubr.f32.mxu0 0.0
        %v1315 = vand.u32 %v346, 4294901760
        %1316 = vmatmul.mubr.f32.gmra.mrb[0].mxu0 %v1315
        %v1317 = vpop.f32.mrb[0].mxu0
        %v1318 = vadd.f32 %v1172, %v1317
        %v1319 = vpop.f32.mrb[0].mxu0
        %1320 = vmatprep.mubr.f32.mxu0 0.0
        %v1321 = vand.u32 %v349, 4294901760
        %1322 = vmatmul.mubr.f32.gmra.mrb[0].mxu0 %v1321
        %v1323 = vpop.f32.mrb[0].mxu0
        %v1324 = vadd.f32 %v1178, %v1323
        %v1325 = vpop.f32.mrb[0].mxu0
        %1326 = vmatprep.mubr.f32.mxu0 0.0
        %v1327 = vand.u32 %v352, 4294901760
        %1328 = vmatmul.mubr.f32.gmra.mrb[0].mxu0 %v1327
        %v1329 = vpop.f32.mrb[0].mxu0
        %v1330 = vadd.f32 %v1184, %v1329
        %v1331 = vpop.f32.mrb[0].mxu0
        %1332 = vmatprep.mubr.f32.mxu0 0.0
        %v1333 = vand.u32 %v355, 4294901760
        %1334 = vmatmul.mubr.f32.gmra.mrb[0].mxu0 %v1333
        %v1335 = vpop.f32.mrb[0].mxu0
        %v1336 = vadd.f32 %v1190, %v1335
        %v1337 = vpop.f32.mrb[0].mxu0
        %1338 = vmatprep.mubr.f32.mxu0 0.0
        %v1339 = vand.u32 %v358, 4294901760
        %1340 = vmatmul.mubr.f32.gmra.mrb[0].mxu0 %v1339
        %v1341 = vpop.f32.mrb[0].mxu0
        %v1342 = vadd.f32 %v1196, %v1341
        %v1343 = vpop.f32.mrb[0].mxu0
        %1344 = vmatprep.mubr.f32.mxu0 0.0
        %v1345 = vand.u32 %v361, 4294901760
        %1346 = vmatmul.mubr.f32.gmra.mrb[0].mxu0 %v1345
        %v1347 = vpop.f32.mrb[0].mxu0
        %v1348 = vadd.f32 %v1202, %v1347
        %v1349 = vpop.f32.mrb[0].mxu0
        %1350 = vdwg.mxu0
        %v1351 = vmax.f32 %v1276, 0.0
        %v1352 = vmax.f32 %v1282, 0.0
        %v1353 = vmax.f32 %v1288, 0.0
        %v1354 = vmax.f32 %v1294, 0.0
        %v1355 = vmax.f32 %v1300, 0.0
        %v1356 = vmax.f32 %v1306, 0.0
        %v1357 = vmax.f32 %v1312, 0.0
        %v1358 = vmax.f32 %v1318, 0.0
        %v1359 = vmax.f32 %v1324, 0.0
        %v1360 = vmax.f32 %v1330, 0.0
        %v1361 = vmax.f32 %v1336, 0.0
        %v1362 = vmax.f32 %v1342, 0.0
        %v1363 = vmax.f32 %v1348, 0.0
        %v1364 = vld [vmem:[%s3] sm:$0xff]
        %v1365 = vld [vmem:[%s3 + $0x8] sm:$0xff]
        %v1366 = vld [vmem:[%s3 + $0x10] sm:$0xff]
        %v1367 = vld [vmem:[%s3 + $0x18] sm:$0xff]
        %v1368 = vld [vmem:[%s3 + $0x20] sm:$0xff]
        %v1369 = vld [vmem:[%s3 + $0x28] sm:$0xff]
        %v1370 = vld [vmem:[%s3 + $0x30] sm:$0xff]
        %v1371 = vld [vmem:[%s3 + $0x38] sm:$0xff]
        %v1372 = vld [vmem:[%s4] sm:$0x1]
        %v1374 = vlaneseq
        %v1375 = vshrl.u32 %v1374, 7
        %v1376 = vsub.s32 0, %v1375
        %v1377 = vrot.slane %v1372, %v1376
        %vm1379 = vcmask 523264
        %v1381 = vsel %vm1379, %v1351, 0
        %v1384 = vsel %vm1379, %v1352, 0
        %v1387 = vsel %vm1379, %v1353, 0
        %v1390 = vsel %vm1379, %v1354, 0
        %v1393 = vsel %vm1379, %v1355, 0
        %v1396 = vsel %vm1379, %v1356, 0
        %v1399 = vsel %vm1379, %v1357, 0
        %v1402 = vsel %vm1379, %v1358, 0
        %v1405 = vsel %vm1379, %v1359, 0
        %v1408 = vsel %vm1379, %v1360, 0
        %v1411 = vsel %vm1379, %v1361, 0
        %v1414 = vsel %vm1379, %v1362, 0
        %v1417 = vsel %vm1379, %v1363, 0
        %1419 = vmatprep.subr.mxu0 0.0
        %v1420 = vand.u32 %v1364, 4294901760
        %1421 = vmatpush1.msra.mxu0 %v1420
        %1422 = vmatprep.subr.mxu0 0.0
        %v1423 = vand.u32 %v1365, 4294901760
        %1424 = vmatpush1.msra.mxu0 %v1423
        %1425 = vmatprep.subr.mxu0 0.0
        %v1426 = vand.u32 %v1366, 4294901760
        %1427 = vmatpush1.msra.mxu0 %v1426
        %1428 = vmatprep.subr.mxu0 0.0
        %v1429 = vand.u32 %v1367, 4294901760
        %1430 = vmatpush1.msra.mxu0 %v1429
        %1431 = vmatprep.subr.mxu0 0.0
        %v1432 = vand.u32 %v1368, 4294901760
        %1433 = vmatpush1.msra.mxu0 %v1432
        %1434 = vmatprep.subr.mxu0 0.0
        %v1435 = vand.u32 %v1369, 4294901760
        %1436 = vmatpush1.msra.mxu0 %v1435
        %1437 = vmatprep.subr.mxu0 0.0
        %v1438 = vand.u32 %v1370, 4294901760
        %1439 = vmatpush1.msra.mxu0 %v1438
        %1440 = vmatprep.subr.mxu0 0.0
        %v1441 = vand.u32 %v1371, 4294901760
        %1442 = vmatpush1.msra.mxu0 %v1441
        %1443 = vmatprep.subr.mxu0 0.0
        %1444 = vmatpush1.msra.mxu0 0.0
        %1445 = vmatprep.subr.mxu0 0.0
        %1446 = vmatpush1.msra.mxu0 0.0
        %1447 = vmatprep.subr.mxu0 0.0
        %1448 = vmatpush1.msra.mxu0 0.0
        %1449 = vmatprep.subr.mxu0 0.0
        %1450 = vmatpush1.msra.mxu0 0.0
        %1451 = vmatprep.subr.mxu0 0.0
        %1452 = vmatpush1.msra.mxu0 0.0
        %1453 = vmatprep.subr.mxu0 0.0
        %1454 = vmatpush1.msra.mxu0 0.0
        %1455 = vmatprep.subr.mxu0 0.0
        %1456 = vmatpush1.msra.mxu0 0.0
        %1457 = vmatprep.subr.mxu0 0.0
        %1458 = vmatpush1.msra.mxu0 0.0
        %1459 = vmatprep.subr.mxu0 0.0
        %1460 = vmatpush1.msra.mxu0 0.0
        %1461 = vmatprep.subr.mxu0 0.0
        %1462 = vmatpush1.msra.mxu0 0.0
        %1463 = vmatprep.subr.mxu0 0.0
        %1464 = vmatpush1.msra.mxu0 0.0
        %1465 = vmatprep.subr.mxu0 0.0
        %1466 = vmatpush1.msra.mxu0 0.0
        %1467 = vmatprep.subr.mxu0 0.0
        %1468 = vmatpush1.msra.mxu0 0.0
        %1469 = vmatprep.subr.mxu0 0.0
        %1470 = vmatpush1.msra.mxu0 0.0
        %1471 = vmatprep.subr.mxu0 0.0
        %1472 = vmatpush1.msra.mxu0 0.0
        %1473 = vmatprep.subr.mxu0 0.0
        %1474 = vmatpush1.msra.mxu0 0.0
        %1475 = vmatprep.subr.mxu0 0.0
        %1476 = vmatpush1.msra.mxu0 0.0
        %1477 = vmatprep.subr.mxu0 0.0
        %1478 = vmatpush1.msra.mxu0 0.0
        %1479 = vmatprep.subr.mxu0 0.0
        %1480 = vmatpush1.msra.mxu0 0.0
        %1481 = vmatprep.subr.mxu0 0.0
        %1482 = vmatpush1.msra.mxu0 0.0
        %1483 = vmatprep.subr.mxu0 0.0
        %1484 = vmatpush1.msra.mxu0 0.0
        %1485 = vmatprep.subr.mxu0 0.0
        %1486 = vmatpush1.msra.mxu0 0.0
        %1487 = vmatprep.subr.mxu0 0.0
        %1488 = vmatpush1.msra.mxu0 0.0
        %1489 = vmatprep.subr.mxu0 0.0
        %1490 = vmatpush1.msra.mxu0 0.0
        %1491 = vmatprep.mubr.f32.mxu0 0.0
        %v1492 = vand.u32 %v1381, 4294901760
        %v1493 = vsub.f32 %v1381, %v1492
        %v1494 = vand.u32 %v1493, 4294901760
        %v1495 = vsub.f32 %v1493, %v1494
        %v1496 = vand.u32 %v1495, 4294901760
        %1497 = vmatmul.mubr.f32.gmra.mrb[0].mxu0 %v1496
        %v1498 = vpop.f32.mrb[0].mxu0
        %v1499 = vadd.f32 %v1377, %v1498
        %v1500 = vpop.f32.mrb[0].mxu0
        %1501 = vmatprep.mubr.f32.mxu0 0.0
        %v1502 = vand.u32 %v1384, 4294901760
        %v1503 = vsub.f32 %v1384, %v1502
        %v1504 = vand.u32 %v1503, 4294901760
        %v1505 = vsub.f32 %v1503, %v1504
        %v1506 = vand.u32 %v1505, 4294901760
        %1507 = vmatmul.mubr.f32.gmra.mrb[0].mxu0 %v1506
        %v1508 = vpop.f32.mrb[0].mxu0
        %v1509 = vadd.f32 %v1377, %v1508
        %v1510 = vpop.f32.mrb[0].mxu0
        %1511 = vmatprep.mubr.f32.mxu0 0.0
        %v1512 = vand.u32 %v1387, 4294901760
        %v1513 = vsub.f32 %v1387, %v1512
        %v1514 = vand.u32 %v1513, 4294901760
        %v1515 = vsub.f32 %v1513, %v1514
        %v1516 = vand.u32 %v1515, 4294901760
        %1517 = vmatmul.mubr.f32.gmra.mrb[0].mxu0 %v1516
        %v1518 = vpop.f32.mrb[0].mxu0
        %v1519 = vadd.f32 %v1377, %v1518
        %v1520 = vpop.f32.mrb[0].mxu0
        %1521 = vmatprep.mubr.f32.mxu0 0.0
        %v1522 = vand.u32 %v1390, 4294901760
        %v1523 = vsub.f32 %v1390, %v1522
        %v1524 = vand.u32 %v1523, 4294901760
        %v1525 = vsub.f32 %v1523, %v1524
        %v1526 = vand.u32 %v1525, 4294901760
        %1527 = vmatmul.mubr.f32.gmra.mrb[0].mxu0 %v1526
        %v1528 = vpop.f32.mrb[0].mxu0
        %v1529 = vadd.f32 %v1377, %v1528
        %v1530 = vpop.f32.mrb[0].mxu0
        %1531 = vmatprep.mubr.f32.mxu0 0.0
        %v1532 = vand.u32 %v1393, 4294901760
        %v1533 = vsub.f32 %v1393, %v1532
        %v1534 = vand.u32 %v1533, 4294901760
        %v1535 = vsub.f32 %v1533, %v1534
        %v1536 = vand.u32 %v1535, 4294901760
        %1537 = vmatmul.mubr.f32.gmra.mrb[0].mxu0 %v1536
        %v1538 = vpop.f32.mrb[0].mxu0
        %v1539 = vadd.f32 %v1377, %v1538
        %v1540 = vpop.f32.mrb[0].mxu0
        %1541 = vmatprep.mubr.f32.mxu0 0.0
        %v1542 = vand.u32 %v1396, 4294901760
        %v1543 = vsub.f32 %v1396, %v1542
        %v1544 = vand.u32 %v1543, 4294901760
        %v1545 = vsub.f32 %v1543, %v1544
        %v1546 = vand.u32 %v1545, 4294901760
        %1547 = vmatmul.mubr.f32.gmra.mrb[0].mxu0 %v1546
        %v1548 = vpop.f32.mrb[0].mxu0
        %v1549 = vadd.f32 %v1377, %v1548
        %v1550 = vpop.f32.mrb[0].mxu0
        %1551 = vmatprep.mubr.f32.mxu0 0.0
        %v1552 = vand.u32 %v1399, 4294901760
        %v1553 = vsub.f32 %v1399, %v1552
        %v1554 = vand.u32 %v1553, 4294901760
        %v1555 = vsub.f32 %v1553, %v1554
        %v1556 = vand.u32 %v1555, 4294901760
        %1557 = vmatmul.mubr.f32.gmra.mrb[0].mxu0 %v1556
        %v1558 = vpop.f32.mrb[0].mxu0
        %v1559 = vadd.f32 %v1377, %v1558
        %v1560 = vpop.f32.mrb[0].mxu0
        %1561 = vmatprep.mubr.f32.mxu0 0.0
        %v1562 = vand.u32 %v1402, 4294901760
        %v1563 = vsub.f32 %v1402, %v1562
        %v1564 = vand.u32 %v1563, 4294901760
        %v1565 = vsub.f32 %v1563, %v1564
        %v1566 = vand.u32 %v1565, 4294901760
        %1567 = vmatmul.mubr.f32.gmra.mrb[0].mxu0 %v1566
        %v1568 = vpop.f32.mrb[0].mxu0
        %v1569 = vadd.f32 %v1377, %v1568
        %v1570 = vpop.f32.mrb[0].mxu0
        %1571 = vmatprep.mubr.f32.mxu0 0.0
        %v1572 = vand.u32 %v1405, 4294901760
        %v1573 = vsub.f32 %v1405, %v1572
        %v1574 = vand.u32 %v1573, 4294901760
        %v1575 = vsub.f32 %v1573, %v1574
        %v1576 = vand.u32 %v1575, 4294901760
        %1577 = vmatmul.mubr.f32.gmra.mrb[0].mxu0 %v1576
        %v1578 = vpop.f32.mrb[0].mxu0
        %v1579 = vadd.f32 %v1377, %v1578
        %v1580 = vpop.f32.mrb[0].mxu0
        %1581 = vmatprep.mubr.f32.mxu0 0.0
        %v1582 = vand.u32 %v1408, 4294901760
        %v1583 = vsub.f32 %v1408, %v1582
        %v1584 = vand.u32 %v1583, 4294901760
        %v1585 = vsub.f32 %v1583, %v1584
        %v1586 = vand.u32 %v1585, 4294901760
        %1587 = vmatmul.mubr.f32.gmra.mrb[0].mxu0 %v1586
        %v1588 = vpop.f32.mrb[0].mxu0
        %v1589 = vadd.f32 %v1377, %v1588
        %v1590 = vpop.f32.mrb[0].mxu0
        %1591 = vmatprep.mubr.f32.mxu0 0.0
        %v1592 = vand.u32 %v1411, 4294901760
        %v1593 = vsub.f32 %v1411, %v1592
        %v1594 = vand.u32 %v1593, 4294901760
        %v1595 = vsub.f32 %v1593, %v1594
        %v1596 = vand.u32 %v1595, 4294901760
        %1597 = vmatmul.mubr.f32.gmra.mrb[0].mxu0 %v1596
        %v1598 = vpop.f32.mrb[0].mxu0
        %v1599 = vadd.f32 %v1377, %v1598
        %v1600 = vpop.f32.mrb[0].mxu0
        %1601 = vmatprep.mubr.f32.mxu0 0.0
        %v1602 = vand.u32 %v1414, 4294901760
        %v1603 = vsub.f32 %v1414, %v1602
        %v1604 = vand.u32 %v1603, 4294901760
        %v1605 = vsub.f32 %v1603, %v1604
        %v1606 = vand.u32 %v1605, 4294901760
        %1607 = vmatmul.mubr.f32.gmra.mrb[0].mxu0 %v1606
        %v1608 = vpop.f32.mrb[0].mxu0
        %v1609 = vadd.f32 %v1377, %v1608
        %v1610 = vpop.f32.mrb[0].mxu0
        %1611 = vmatprep.mubr.f32.mxu0 0.0
        %v1612 = vand.u32 %v1417, 4294901760
        %v1613 = vsub.f32 %v1417, %v1612
        %v1614 = vand.u32 %v1613, 4294901760
        %v1615 = vsub.f32 %v1613, %v1614
        %v1616 = vand.u32 %v1615, 4294901760
        %1617 = vmatmul.mubr.f32.gmra.mrb[0].mxu0 %v1616
        %v1618 = vpop.f32.mrb[0].mxu0
        %v1619 = vadd.f32 %v1377, %v1618
        %v1620 = vpop.f32.mrb[0].mxu0
        %1621 = vdwg.mxu0
        %1622 = vmatprep.subr.mxu0 0.0
        %v1623 = vand.u32 %v1364, 4294901760
        %v1624 = vsub.f32 %v1364, %v1623
        %v1625 = vand.u32 %v1624, 4294901760
        %v1626 = vsub.f32 %v1624, %v1625
        %v1627 = vand.u32 %v1626, 4294901760
        %1628 = vmatpush1.msra.mxu0 %v1627
        %1629 = vmatprep.subr.mxu0 0.0
        %v1630 = vand.u32 %v1365, 4294901760
        %v1631 = vsub.f32 %v1365, %v1630
        %v1632 = vand.u32 %v1631, 4294901760
        %v1633 = vsub.f32 %v1631, %v1632
        %v1634 = vand.u32 %v1633, 4294901760
        %1635 = vmatpush1.msra.mxu0 %v1634
        %1636 = vmatprep.subr.mxu0 0.0
        %v1637 = vand.u32 %v1366, 4294901760
        %v1638 = vsub.f32 %v1366, %v1637
        %v1639 = vand.u32 %v1638, 4294901760
        %v1640 = vsub.f32 %v1638, %v1639
        %v1641 = vand.u32 %v1640, 4294901760
        %1642 = vmatpush1.msra.mxu0 %v1641
        %1643 = vmatprep.subr.mxu0 0.0
        %v1644 = vand.u32 %v1367, 4294901760
        %v1645 = vsub.f32 %v1367, %v1644
        %v1646 = vand.u32 %v1645, 4294901760
        %v1647 = vsub.f32 %v1645, %v1646
        %v1648 = vand.u32 %v1647, 4294901760
        %1649 = vmatpush1.msra.mxu0 %v1648
        %1650 = vmatprep.subr.mxu0 0.0
        %v1651 = vand.u32 %v1368, 4294901760
        %v1652 = vsub.f32 %v1368, %v1651
        %v1653 = vand.u32 %v1652, 4294901760
        %v1654 = vsub.f32 %v1652, %v1653
        %v1655 = vand.u32 %v1654, 4294901760
        %1656 = vmatpush1.msra.mxu0 %v1655
        %1657 = vmatprep.subr.mxu0 0.0
        %v1658 = vand.u32 %v1369, 4294901760
        %v1659 = vsub.f32 %v1369, %v1658
        %v1660 = vand.u32 %v1659, 4294901760
        %v1661 = vsub.f32 %v1659, %v1660
        %v1662 = vand.u32 %v1661, 4294901760
        %1663 = vmatpush1.msra.mxu0 %v1662
        %1664 = vmatprep.subr.mxu0 0.0
        %v1665 = vand.u32 %v1370, 4294901760
        %v1666 = vsub.f32 %v1370, %v1665
        %v1667 = vand.u32 %v1666, 4294901760
        %v1668 = vsub.f32 %v1666, %v1667
        %v1669 = vand.u32 %v1668, 4294901760
        %1670 = vmatpush1.msra.mxu0 %v1669
        %1671 = vmatprep.subr.mxu0 0.0
        %v1672 = vand.u32 %v1371, 4294901760
        %v1673 = vsub.f32 %v1371, %v1672
        %v1674 = vand.u32 %v1673, 4294901760
        %v1675 = vsub.f32 %v1673, %v1674
        %v1676 = vand.u32 %v1675, 4294901760
        %1677 = vmatpush1.msra.mxu0 %v1676
        %1678 = vmatprep.subr.mxu0 0.0
        %1679 = vmatpush1.msra.mxu0 0.0
        %1680 = vmatprep.subr.mxu0 0.0
        %1681 = vmatpush1.msra.mxu0 0.0
        %1682 = vmatprep.subr.mxu0 0.0
        %1683 = vmatpush1.msra.mxu0 0.0
        %1684 = vmatprep.subr.mxu0 0.0
        %1685 = vmatpush1.msra.mxu0 0.0
        %1686 = vmatprep.subr.mxu0 0.0
        %1687 = vmatpush1.msra.mxu0 0.0
        %1688 = vmatprep.subr.mxu0 0.0
        %1689 = vmatpush1.msra.mxu0 0.0
        %1690 = vmatprep.subr.mxu0 0.0
        %1691 = vmatpush1.msra.mxu0 0.0
        %1692 = vmatprep.subr.mxu0 0.0
        %1693 = vmatpush1.msra.mxu0 0.0
        %1694 = vmatprep.subr.mxu0 0.0
        %1695 = vmatpush1.msra.mxu0 0.0
        %1696 = vmatprep.subr.mxu0 0.0
        %1697 = vmatpush1.msra.mxu0 0.0
        %1698 = vmatprep.subr.mxu0 0.0
        %1699 = vmatpush1.msra.mxu0 0.0
        %1700 = vmatprep.subr.mxu0 0.0
        %1701 = vmatpush1.msra.mxu0 0.0
        %1702 = vmatprep.subr.mxu0 0.0
        %1703 = vmatpush1.msra.mxu0 0.0
        %1704 = vmatprep.subr.mxu0 0.0
        %1705 = vmatpush1.msra.mxu0 0.0
        %1706 = vmatprep.subr.mxu0 0.0
        %1707 = vmatpush1.msra.mxu0 0.0
        %1708 = vmatprep.subr.mxu0 0.0
        %1709 = vmatpush1.msra.mxu0 0.0
        %1710 = vmatprep.subr.mxu0 0.0
        %1711 = vmatpush1.msra.mxu0 0.0
        %1712 = vmatprep.subr.mxu0 0.0
        %1713 = vmatpush1.msra.mxu0 0.0
        %1714 = vmatprep.subr.mxu0 0.0
        %1715 = vmatpush1.msra.mxu0 0.0
        %1716 = vmatprep.subr.mxu0 0.0
        %1717 = vmatpush1.msra.mxu0 0.0
        %1718 = vmatprep.subr.mxu0 0.0
        %1719 = vmatpush1.msra.mxu0 0.0
        %1720 = vmatprep.subr.mxu0 0.0
        %1721 = vmatpush1.msra.mxu0 0.0
        %1722 = vmatprep.subr.mxu0 0.0
        %1723 = vmatpush1.msra.mxu0 0.0
        %1724 = vmatprep.subr.mxu0 0.0
        %1725 = vmatpush1.msra.mxu0 0.0
        %1726 = vmatprep.mubr.f32.mxu0 0.0
        %v1727 = vand.u32 %v1381, 4294901760
        %1728 = vmatmul.mubr.f32.gmra.mrb[0].mxu0 %v1727
        %v1729 = vpop.f32.mrb[0].mxu0
        %v1730 = vadd.f32 %v1499, %v1729
        %v1731 = vpop.f32.mrb[0].mxu0
        %1732 = vmatprep.mubr.f32.mxu0 0.0
        %v1733 = vand.u32 %v1384, 4294901760
        %1734 = vmatmul.mubr.f32.gmra.mrb[0].mxu0 %v1733
        %v1735 = vpop.f32.mrb[0].mxu0
        %v1736 = vadd.f32 %v1509, %v1735
        %v1737 = vpop.f32.mrb[0].mxu0
        %1738 = vmatprep.mubr.f32.mxu0 0.0
        %v1739 = vand.u32 %v1387, 4294901760
        %1740 = vmatmul.mubr.f32.gmra.mrb[0].mxu0 %v1739
        %v1741 = vpop.f32.mrb[0].mxu0
        %v1742 = vadd.f32 %v1519, %v1741
        %v1743 = vpop.f32.mrb[0].mxu0
        %1744 = vmatprep.mubr.f32.mxu0 0.0
        %v1745 = vand.u32 %v1390, 4294901760
        %1746 = vmatmul.mubr.f32.gmra.mrb[0].mxu0 %v1745
        %v1747 = vpop.f32.mrb[0].mxu0
        %v1748 = vadd.f32 %v1529, %v1747
        %v1749 = vpop.f32.mrb[0].mxu0
        %1750 = vmatprep.mubr.f32.mxu0 0.0
        %v1751 = vand.u32 %v1393, 4294901760
        %1752 = vmatmul.mubr.f32.gmra.mrb[0].mxu0 %v1751
        %v1753 = vpop.f32.mrb[0].mxu0
        %v1754 = vadd.f32 %v1539, %v1753
        %v1755 = vpop.f32.mrb[0].mxu0
        %1756 = vmatprep.mubr.f32.mxu0 0.0
        %v1757 = vand.u32 %v1396, 4294901760
        %1758 = vmatmul.mubr.f32.gmra.mrb[0].mxu0 %v1757
        %v1759 = vpop.f32.mrb[0].mxu0
        %v1760 = vadd.f32 %v1549, %v1759
        %v1761 = vpop.f32.mrb[0].mxu0
        %1762 = vmatprep.mubr.f32.mxu0 0.0
        %v1763 = vand.u32 %v1399, 4294901760
        %1764 = vmatmul.mubr.f32.gmra.mrb[0].mxu0 %v1763
        %v1765 = vpop.f32.mrb[0].mxu0
        %v1766 = vadd.f32 %v1559, %v1765
        %v1767 = vpop.f32.mrb[0].mxu0
        %1768 = vmatprep.mubr.f32.mxu0 0.0
        %v1769 = vand.u32 %v1402, 4294901760
        %1770 = vmatmul.mubr.f32.gmra.mrb[0].mxu0 %v1769
        %v1771 = vpop.f32.mrb[0].mxu0
        %v1772 = vadd.f32 %v1569, %v1771
        %v1773 = vpop.f32.mrb[0].mxu0
        %1774 = vmatprep.mubr.f32.mxu0 0.0
        %v1775 = vand.u32 %v1405, 4294901760
        %1776 = vmatmul.mubr.f32.gmra.mrb[0].mxu0 %v1775
        %v1777 = vpop.f32.mrb[0].mxu0
        %v1778 = vadd.f32 %v1579, %v1777
        %v1779 = vpop.f32.mrb[0].mxu0
        %1780 = vmatprep.mubr.f32.mxu0 0.0
        %v1781 = vand.u32 %v1408, 4294901760
        %1782 = vmatmul.mubr.f32.gmra.mrb[0].mxu0 %v1781
        %v1783 = vpop.f32.mrb[0].mxu0
        %v1784 = vadd.f32 %v1589, %v1783
        %v1785 = vpop.f32.mrb[0].mxu0
        %1786 = vmatprep.mubr.f32.mxu0 0.0
        %v1787 = vand.u32 %v1411, 4294901760
        %1788 = vmatmul.mubr.f32.gmra.mrb[0].mxu0 %v1787
        %v1789 = vpop.f32.mrb[0].mxu0
        %v1790 = vadd.f32 %v1599, %v1789
        %v1791 = vpop.f32.mrb[0].mxu0
        %1792 = vmatprep.mubr.f32.mxu0 0.0
        %v1793 = vand.u32 %v1414, 4294901760
        %1794 = vmatmul.mubr.f32.gmra.mrb[0].mxu0 %v1793
        %v1795 = vpop.f32.mrb[0].mxu0
        %v1796 = vadd.f32 %v1609, %v1795
        %v1797 = vpop.f32.mrb[0].mxu0
        %1798 = vmatprep.mubr.f32.mxu0 0.0
        %v1799 = vand.u32 %v1417, 4294901760
        %1800 = vmatmul.mubr.f32.gmra.mrb[0].mxu0 %v1799
        %v1801 = vpop.f32.mrb[0].mxu0
        %v1802 = vadd.f32 %v1619, %v1801
        %v1803 = vpop.f32.mrb[0].mxu0
        %1804 = vdwg.mxu0
        %1805 = vmatprep.subr.mxu0 0.0
        %v1806 = vand.u32 %v1364, 4294901760
        %v1807 = vsub.f32 %v1364, %v1806
        %1808 = vmatpush1.msra.mxu0 %v1807
        %1809 = vmatprep.subr.mxu0 0.0
        %v1810 = vand.u32 %v1365, 4294901760
        %v1811 = vsub.f32 %v1365, %v1810
        %1812 = vmatpush1.msra.mxu0 %v1811
        %1813 = vmatprep.subr.mxu0 0.0
        %v1814 = vand.u32 %v1366, 4294901760
        %v1815 = vsub.f32 %v1366, %v1814
        %1816 = vmatpush1.msra.mxu0 %v1815
        %1817 = vmatprep.subr.mxu0 0.0
        %v1818 = vand.u32 %v1367, 4294901760
        %v1819 = vsub.f32 %v1367, %v1818
        %1820 = vmatpush1.msra.mxu0 %v1819
        %1821 = vmatprep.subr.mxu0 0.0
        %v1822 = vand.u32 %v1368, 4294901760
        %v1823 = vsub.f32 %v1368, %v1822
        %1824 = vmatpush1.msra.mxu0 %v1823
        %1825 = vmatprep.subr.mxu0 0.0
        %v1826 = vand.u32 %v1369, 4294901760
        %v1827 = vsub.f32 %v1369, %v1826
        %1828 = vmatpush1.msra.mxu0 %v1827
        %1829 = vmatprep.subr.mxu0 0.0
        %v1830 = vand.u32 %v1370, 4294901760
        %v1831 = vsub.f32 %v1370, %v1830
        %1832 = vmatpush1.msra.mxu0 %v1831
        %1833 = vmatprep.subr.mxu0 0.0
        %v1834 = vand.u32 %v1371, 4294901760
        %v1835 = vsub.f32 %v1371, %v1834
        %1836 = vmatpush1.msra.mxu0 %v1835
        %1837 = vmatprep.subr.mxu0 0.0
        %1838 = vmatpush1.msra.mxu0 0.0
        %1839 = vmatprep.subr.mxu0 0.0
        %1840 = vmatpush1.msra.mxu0 0.0
        %1841 = vmatprep.subr.mxu0 0.0
        %1842 = vmatpush1.msra.mxu0 0.0
        %1843 = vmatprep.subr.mxu0 0.0
        %1844 = vmatpush1.msra.mxu0 0.0
        %1845 = vmatprep.subr.mxu0 0.0
        %1846 = vmatpush1.msra.mxu0 0.0
        %1847 = vmatprep.subr.mxu0 0.0
        %1848 = vmatpush1.msra.mxu0 0.0
        %1849 = vmatprep.subr.mxu0 0.0
        %1850 = vmatpush1.msra.mxu0 0.0
        %1851 = vmatprep.subr.mxu0 0.0
        %1852 = vmatpush1.msra.mxu0 0.0
        %1853 = vmatprep.subr.mxu0 0.0
        %1854 = vmatpush1.msra.mxu0 0.0
        %1855 = vmatprep.subr.mxu0 0.0
        %1856 = vmatpush1.msra.mxu0 0.0
        %1857 = vmatprep.subr.mxu0 0.0
        %1858 = vmatpush1.msra.mxu0 0.0
        %1859 = vmatprep.subr.mxu0 0.0
        %1860 = vmatpush1.msra.mxu0 0.0
        %1861 = vmatprep.subr.mxu0 0.0
        %1862 = vmatpush1.msra.mxu0 0.0
        %1863 = vmatprep.subr.mxu0 0.0
        %1864 = vmatpush1.msra.mxu0 0.0
        %1865 = vmatprep.subr.mxu0 0.0
        %1866 = vmatpush1.msra.mxu0 0.0
        %1867 = vmatprep.subr.mxu0 0.0
        %1868 = vmatpush1.msra.mxu0 0.0
        %1869 = vmatprep.subr.mxu0 0.0
        %1870 = vmatpush1.msra.mxu0 0.0
        %1871 = vmatprep.subr.mxu0 0.0
        %1872 = vmatpush1.msra.mxu0 0.0
        %1873 = vmatprep.subr.mxu0 0.0
        %1874 = vmatpush1.msra.mxu0 0.0
        %1875 = vmatprep.subr.mxu0 0.0
        %1876 = vmatpush1.msra.mxu0 0.0
        %1877 = vmatprep.subr.mxu0 0.0
        %1878 = vmatpush1.msra.mxu0 0.0
        %1879 = vmatprep.subr.mxu0 0.0
        %1880 = vmatpush1.msra.mxu0 0.0
        %1881 = vmatprep.subr.mxu0 0.0
        %1882 = vmatpush1.msra.mxu0 0.0
        %1883 = vmatprep.subr.mxu0 0.0
        %1884 = vmatpush1.msra.mxu0 0.0
        %1885 = vmatprep.mubr.f32.mxu0 0.0
        %v1886 = vand.u32 %v1381, 4294901760
        %v1887 = vsub.f32 %v1381, %v1886
        %1888 = vmatmul.mubr.f32.gmra.mrb[0].mxu0 %v1887
        %v1889 = vpop.f32.mrb[0].mxu0
        %v1890 = vadd.f32 %v1730, %v1889
        %v1891 = vpop.f32.mrb[0].mxu0
        %1892 = vmatprep.mubr.f32.mxu0 0.0
        %v1893 = vand.u32 %v1384, 4294901760
        %v1894 = vsub.f32 %v1384, %v1893
        %1895 = vmatmul.mubr.f32.gmra.mrb[0].mxu0 %v1894
        %v1896 = vpop.f32.mrb[0].mxu0
        %v1897 = vadd.f32 %v1736, %v1896
        %v1898 = vpop.f32.mrb[0].mxu0
        %1899 = vmatprep.mubr.f32.mxu0 0.0
        %v1900 = vand.u32 %v1387, 4294901760
        %v1901 = vsub.f32 %v1387, %v1900
        %1902 = vmatmul.mubr.f32.gmra.mrb[0].mxu0 %v1901
        %v1903 = vpop.f32.mrb[0].mxu0
        %v1904 = vadd.f32 %v1742, %v1903
        %v1905 = vpop.f32.mrb[0].mxu0
        %1906 = vmatprep.mubr.f32.mxu0 0.0
        %v1907 = vand.u32 %v1390, 4294901760
        %v1908 = vsub.f32 %v1390, %v1907
        %1909 = vmatmul.mubr.f32.gmra.mrb[0].mxu0 %v1908
        %v1910 = vpop.f32.mrb[0].mxu0
        %v1911 = vadd.f32 %v1748, %v1910
        %v1912 = vpop.f32.mrb[0].mxu0
        %1913 = vmatprep.mubr.f32.mxu0 0.0
        %v1914 = vand.u32 %v1393, 4294901760
        %v1915 = vsub.f32 %v1393, %v1914
        %1916 = vmatmul.mubr.f32.gmra.mrb[0].mxu0 %v1915
        %v1917 = vpop.f32.mrb[0].mxu0
        %v1918 = vadd.f32 %v1754, %v1917
        %v1919 = vpop.f32.mrb[0].mxu0
        %1920 = vmatprep.mubr.f32.mxu0 0.0
        %v1921 = vand.u32 %v1396, 4294901760
        %v1922 = vsub.f32 %v1396, %v1921
        %1923 = vmatmul.mubr.f32.gmra.mrb[0].mxu0 %v1922
        %v1924 = vpop.f32.mrb[0].mxu0
        %v1925 = vadd.f32 %v1760, %v1924
        %v1926 = vpop.f32.mrb[0].mxu0
        %1927 = vmatprep.mubr.f32.mxu0 0.0
        %v1928 = vand.u32 %v1399, 4294901760
        %v1929 = vsub.f32 %v1399, %v1928
        %1930 = vmatmul.mubr.f32.gmra.mrb[0].mxu0 %v1929
        %v1931 = vpop.f32.mrb[0].mxu0
        %v1932 = vadd.f32 %v1766, %v1931
        %v1933 = vpop.f32.mrb[0].mxu0
        %1934 = vmatprep.mubr.f32.mxu0 0.0
        %v1935 = vand.u32 %v1402, 4294901760
        %v1936 = vsub.f32 %v1402, %v1935
        %1937 = vmatmul.mubr.f32.gmra.mrb[0].mxu0 %v1936
        %v1938 = vpop.f32.mrb[0].mxu0
        %v1939 = vadd.f32 %v1772, %v1938
        %v1940 = vpop.f32.mrb[0].mxu0
        %1941 = vmatprep.mubr.f32.mxu0 0.0
        %v1942 = vand.u32 %v1405, 4294901760
        %v1943 = vsub.f32 %v1405, %v1942
        %1944 = vmatmul.mubr.f32.gmra.mrb[0].mxu0 %v1943
        %v1945 = vpop.f32.mrb[0].mxu0
        %v1946 = vadd.f32 %v1778, %v1945
        %v1947 = vpop.f32.mrb[0].mxu0
        %1948 = vmatprep.mubr.f32.mxu0 0.0
        %v1949 = vand.u32 %v1408, 4294901760
        %v1950 = vsub.f32 %v1408, %v1949
        %1951 = vmatmul.mubr.f32.gmra.mrb[0].mxu0 %v1950
        %v1952 = vpop.f32.mrb[0].mxu0
        %v1953 = vadd.f32 %v1784, %v1952
        %v1954 = vpop.f32.mrb[0].mxu0
        %1955 = vmatprep.mubr.f32.mxu0 0.0
        %v1956 = vand.u32 %v1411, 4294901760
        %v1957 = vsub.f32 %v1411, %v1956
        %1958 = vmatmul.mubr.f32.gmra.mrb[0].mxu0 %v1957
        %v1959 = vpop.f32.mrb[0].mxu0
        %v1960 = vadd.f32 %v1790, %v1959
        %v1961 = vpop.f32.mrb[0].mxu0
        %1962 = vmatprep.mubr.f32.mxu0 0.0
        %v1963 = vand.u32 %v1414, 4294901760
        %v1964 = vsub.f32 %v1414, %v1963
        %1965 = vmatmul.mubr.f32.gmra.mrb[0].mxu0 %v1964
        %v1966 = vpop.f32.mrb[0].mxu0
        %v1967 = vadd.f32 %v1796, %v1966
        %v1968 = vpop.f32.mrb[0].mxu0
        %1969 = vmatprep.mubr.f32.mxu0 0.0
        %v1970 = vand.u32 %v1417, 4294901760
        %v1971 = vsub.f32 %v1417, %v1970
        %1972 = vmatmul.mubr.f32.gmra.mrb[0].mxu0 %v1971
        %v1973 = vpop.f32.mrb[0].mxu0
        %v1974 = vadd.f32 %v1802, %v1973
        %v1975 = vpop.f32.mrb[0].mxu0
        %1976 = vdwg.mxu0
        %1977 = vmatprep.subr.mxu0 0.0
        %v1978 = vand.u32 %v1364, 4294901760
        %1979 = vmatpush1.msra.mxu0 %v1978
        %1980 = vmatprep.subr.mxu0 0.0
        %v1981 = vand.u32 %v1365, 4294901760
        %1982 = vmatpush1.msra.mxu0 %v1981
        %1983 = vmatprep.subr.mxu0 0.0
        %v1984 = vand.u32 %v1366, 4294901760
        %1985 = vmatpush1.msra.mxu0 %v1984
        %1986 = vmatprep.subr.mxu0 0.0
        %v1987 = vand.u32 %v1367, 4294901760
        %1988 = vmatpush1.msra.mxu0 %v1987
        %1989 = vmatprep.subr.mxu0 0.0
        %v1990 = vand.u32 %v1368, 4294901760
        %1991 = vmatpush1.msra.mxu0 %v1990
        %1992 = vmatprep.subr.mxu0 0.0
        %v1993 = vand.u32 %v1369, 4294901760
        %1994 = vmatpush1.msra.mxu0 %v1993
        %1995 = vmatprep.subr.mxu0 0.0
        %v1996 = vand.u32 %v1370, 4294901760
        %1997 = vmatpush1.msra.mxu0 %v1996
        %1998 = vmatprep.subr.mxu0 0.0
        %v1999 = vand.u32 %v1371, 4294901760
        %2000 = vmatpush1.msra.mxu0 %v1999
        %2001 = vmatprep.subr.mxu0 0.0
        %2002 = vmatpush1.msra.mxu0 0.0
        %2003 = vmatprep.subr.mxu0 0.0
        %2004 = vmatpush1.msra.mxu0 0.0
        %2005 = vmatprep.subr.mxu0 0.0
        %2006 = vmatpush1.msra.mxu0 0.0
        %2007 = vmatprep.subr.mxu0 0.0
        %2008 = vmatpush1.msra.mxu0 0.0
        %2009 = vmatprep.subr.mxu0 0.0
        %2010 = vmatpush1.msra.mxu0 0.0
        %2011 = vmatprep.subr.mxu0 0.0
        %2012 = vmatpush1.msra.mxu0 0.0
        %2013 = vmatprep.subr.mxu0 0.0
        %2014 = vmatpush1.msra.mxu0 0.0
        %2015 = vmatprep.subr.mxu0 0.0
        %2016 = vmatpush1.msra.mxu0 0.0
        %2017 = vmatprep.subr.mxu0 0.0
        %2018 = vmatpush1.msra.mxu0 0.0
        %2019 = vmatprep.subr.mxu0 0.0
        %2020 = vmatpush1.msra.mxu0 0.0
        %2021 = vmatprep.subr.mxu0 0.0
        %2022 = vmatpush1.msra.mxu0 0.0
        %2023 = vmatprep.subr.mxu0 0.0
        %2024 = vmatpush1.msra.mxu0 0.0
        %2025 = vmatprep.subr.mxu0 0.0
        %2026 = vmatpush1.msra.mxu0 0.0
        %2027 = vmatprep.subr.mxu0 0.0
        %2028 = vmatpush1.msra.mxu0 0.0
        %2029 = vmatprep.subr.mxu0 0.0
        %2030 = vmatpush1.msra.mxu0 0.0
        %2031 = vmatprep.subr.mxu0 0.0
        %2032 = vmatpush1.msra.mxu0 0.0
        %2033 = vmatprep.subr.mxu0 0.0
        %2034 = vmatpush1.msra.mxu0 0.0
        %2035 = vmatprep.subr.mxu0 0.0
        %2036 = vmatpush1.msra.mxu0 0.0
        %2037 = vmatprep.subr.mxu0 0.0
        %2038 = vmatpush1.msra.mxu0 0.0
        %2039 = vmatprep.subr.mxu0 0.0
        %2040 = vmatpush1.msra.mxu0 0.0
        %2041 = vmatprep.subr.mxu0 0.0
        %2042 = vmatpush1.msra.mxu0 0.0
        %2043 = vmatprep.subr.mxu0 0.0
        %2044 = vmatpush1.msra.mxu0 0.0
        %2045 = vmatprep.subr.mxu0 0.0
        %2046 = vmatpush1.msra.mxu0 0.0
        %2047 = vmatprep.subr.mxu0 0.0
        %2048 = vmatpush1.msra.mxu0 0.0
        %2049 = vmatprep.mubr.f32.mxu0 0.0
        %v2050 = vand.u32 %v1381, 4294901760
        %v2051 = vsub.f32 %v1381, %v2050
        %v2052 = vand.u32 %v2051, 4294901760
        %2053 = vmatmul.mubr.f32.gmra.mrb[0].mxu0 %v2052
        %v2054 = vpop.f32.mrb[0].mxu0
        %v2055 = vadd.f32 %v1890, %v2054
        %v2056 = vpop.f32.mrb[0].mxu0
        %2057 = vmatprep.mubr.f32.mxu0 0.0
        %v2058 = vand.u32 %v1384, 4294901760
        %v2059 = vsub.f32 %v1384, %v2058
        %v2060 = vand.u32 %v2059, 4294901760
        %2061 = vmatmul.mubr.f32.gmra.mrb[0].mxu0 %v2060
        %v2062 = vpop.f32.mrb[0].mxu0
        %v2063 = vadd.f32 %v1897, %v2062
        %v2064 = vpop.f32.mrb[0].mxu0
        %2065 = vmatprep.mubr.f32.mxu0 0.0
        %v2066 = vand.u32 %v1387, 4294901760
        %v2067 = vsub.f32 %v1387, %v2066
        %v2068 = vand.u32 %v2067, 4294901760
        %2069 = vmatmul.mubr.f32.gmra.mrb[0].mxu0 %v2068
        %v2070 = vpop.f32.mrb[0].mxu0
        %v2071 = vadd.f32 %v1904, %v2070
        %v2072 = vpop.f32.mrb[0].mxu0
        %2073 = vmatprep.mubr.f32.mxu0 0.0
        %v2074 = vand.u32 %v1390, 4294901760
        %v2075 = vsub.f32 %v1390, %v2074
        %v2076 = vand.u32 %v2075, 4294901760
        %2077 = vmatmul.mubr.f32.gmra.mrb[0].mxu0 %v2076
        %v2078 = vpop.f32.mrb[0].mxu0
        %v2079 = vadd.f32 %v1911, %v2078
        %v2080 = vpop.f32.mrb[0].mxu0
        %2081 = vmatprep.mubr.f32.mxu0 0.0
        %v2082 = vand.u32 %v1393, 4294901760
        %v2083 = vsub.f32 %v1393, %v2082
        %v2084 = vand.u32 %v2083, 4294901760
        %2085 = vmatmul.mubr.f32.gmra.mrb[0].mxu0 %v2084
        %v2086 = vpop.f32.mrb[0].mxu0
        %v2087 = vadd.f32 %v1918, %v2086
        %v2088 = vpop.f32.mrb[0].mxu0
        %2089 = vmatprep.mubr.f32.mxu0 0.0
        %v2090 = vand.u32 %v1396, 4294901760
        %v2091 = vsub.f32 %v1396, %v2090
        %v2092 = vand.u32 %v2091, 4294901760
        %2093 = vmatmul.mubr.f32.gmra.mrb[0].mxu0 %v2092
        %v2094 = vpop.f32.mrb[0].mxu0
        %v2095 = vadd.f32 %v1925, %v2094
        %v2096 = vpop.f32.mrb[0].mxu0
        %2097 = vmatprep.mubr.f32.mxu0 0.0
        %v2098 = vand.u32 %v1399, 4294901760
        %v2099 = vsub.f32 %v1399, %v2098
        %v2100 = vand.u32 %v2099, 4294901760
        %2101 = vmatmul.mubr.f32.gmra.mrb[0].mxu0 %v2100
        %v2102 = vpop.f32.mrb[0].mxu0
        %v2103 = vadd.f32 %v1932, %v2102
        %v2104 = vpop.f32.mrb[0].mxu0
        %2105 = vmatprep.mubr.f32.mxu0 0.0
        %v2106 = vand.u32 %v1402, 4294901760
        %v2107 = vsub.f32 %v1402, %v2106
        %v2108 = vand.u32 %v2107, 4294901760
        %2109 = vmatmul.mubr.f32.gmra.mrb[0].mxu0 %v2108
        %v2110 = vpop.f32.mrb[0].mxu0
        %v2111 = vadd.f32 %v1939, %v2110
        %v2112 = vpop.f32.mrb[0].mxu0
        %2113 = vmatprep.mubr.f32.mxu0 0.0
        %v2114 = vand.u32 %v1405, 4294901760
        %v2115 = vsub.f32 %v1405, %v2114
        %v2116 = vand.u32 %v2115, 4294901760
        %2117 = vmatmul.mubr.f32.gmra.mrb[0].mxu0 %v2116
        %v2118 = vpop.f32.mrb[0].mxu0
        %v2119 = vadd.f32 %v1946, %v2118
        %v2120 = vpop.f32.mrb[0].mxu0
        %2121 = vmatprep.mubr.f32.mxu0 0.0
        %v2122 = vand.u32 %v1408, 4294901760
        %v2123 = vsub.f32 %v1408, %v2122
        %v2124 = vand.u32 %v2123, 4294901760
        %2125 = vmatmul.mubr.f32.gmra.mrb[0].mxu0 %v2124
        %v2126 = vpop.f32.mrb[0].mxu0
        %v2127 = vadd.f32 %v1953, %v2126
        %v2128 = vpop.f32.mrb[0].mxu0
        %2129 = vmatprep.mubr.f32.mxu0 0.0
        %v2130 = vand.u32 %v1411, 4294901760
        %v2131 = vsub.f32 %v1411, %v2130
        %v2132 = vand.u32 %v2131, 4294901760
        %2133 = vmatmul.mubr.f32.gmra.mrb[0].mxu0 %v2132
        %v2134 = vpop.f32.mrb[0].mxu0
        %v2135 = vadd.f32 %v1960, %v2134
        %v2136 = vpop.f32.mrb[0].mxu0
        %2137 = vmatprep.mubr.f32.mxu0 0.0
        %v2138 = vand.u32 %v1414, 4294901760
        %v2139 = vsub.f32 %v1414, %v2138
        %v2140 = vand.u32 %v2139, 4294901760
        %2141 = vmatmul.mubr.f32.gmra.mrb[0].mxu0 %v2140
        %v2142 = vpop.f32.mrb[0].mxu0
        %v2143 = vadd.f32 %v1967, %v2142
        %v2144 = vpop.f32.mrb[0].mxu0
        %2145 = vmatprep.mubr.f32.mxu0 0.0
        %v2146 = vand.u32 %v1417, 4294901760
        %v2147 = vsub.f32 %v1417, %v2146
        %v2148 = vand.u32 %v2147, 4294901760
        %2149 = vmatmul.mubr.f32.gmra.mrb[0].mxu0 %v2148
        %v2150 = vpop.f32.mrb[0].mxu0
        %v2151 = vadd.f32 %v1974, %v2150
        %v2152 = vpop.f32.mrb[0].mxu0
        %2153 = vdwg.mxu0
        %2154 = vmatprep.subr.mxu0 0.0
        %v2155 = vand.u32 %v1364, 4294901760
        %v2156 = vsub.f32 %v1364, %v2155
        %v2157 = vand.u32 %v2156, 4294901760
        %2158 = vmatpush1.msra.mxu0 %v2157
        %2159 = vmatprep.subr.mxu0 0.0
        %v2160 = vand.u32 %v1365, 4294901760
        %v2161 = vsub.f32 %v1365, %v2160
        %v2162 = vand.u32 %v2161, 4294901760
        %2163 = vmatpush1.msra.mxu0 %v2162
        %2164 = vmatprep.subr.mxu0 0.0
        %v2165 = vand.u32 %v1366, 4294901760
        %v2166 = vsub.f32 %v1366, %v2165
        %v2167 = vand.u32 %v2166, 4294901760
        %2168 = vmatpush1.msra.mxu0 %v2167
        %2169 = vmatprep.subr.mxu0 0.0
        %v2170 = vand.u32 %v1367, 4294901760
        %v2171 = vsub.f32 %v1367, %v2170
        %v2172 = vand.u32 %v2171, 4294901760
        %2173 = vmatpush1.msra.mxu0 %v2172
        %2174 = vmatprep.subr.mxu0 0.0
        %v2175 = vand.u32 %v1368, 4294901760
        %v2176 = vsub.f32 %v1368, %v2175
        %v2177 = vand.u32 %v2176, 4294901760
        %2178 = vmatpush1.msra.mxu0 %v2177
        %2179 = vmatprep.subr.mxu0 0.0
        %v2180 = vand.u32 %v1369, 4294901760
        %v2181 = vsub.f32 %v1369, %v2180
        %v2182 = vand.u32 %v2181, 4294901760
        %2183 = vmatpush1.msra.mxu0 %v2182
        %2184 = vmatprep.subr.mxu0 0.0
        %v2185 = vand.u32 %v1370, 4294901760
        %v2186 = vsub.f32 %v1370, %v2185
        %v2187 = vand.u32 %v2186, 4294901760
        %2188 = vmatpush1.msra.mxu0 %v2187
        %2189 = vmatprep.subr.mxu0 0.0
        %v2190 = vand.u32 %v1371, 4294901760
        %v2191 = vsub.f32 %v1371, %v2190
        %v2192 = vand.u32 %v2191, 4294901760
        %2193 = vmatpush1.msra.mxu0 %v2192
        %2194 = vmatprep.subr.mxu0 0.0
        %2195 = vmatpush1.msra.mxu0 0.0
        %2196 = vmatprep.subr.mxu0 0.0
        %2197 = vmatpush1.msra.mxu0 0.0
        %2198 = vmatprep.subr.mxu0 0.0
        %2199 = vmatpush1.msra.mxu0 0.0
        %2200 = vmatprep.subr.mxu0 0.0
        %2201 = vmatpush1.msra.mxu0 0.0
        %2202 = vmatprep.subr.mxu0 0.0
        %2203 = vmatpush1.msra.mxu0 0.0
        %2204 = vmatprep.subr.mxu0 0.0
        %2205 = vmatpush1.msra.mxu0 0.0
        %2206 = vmatprep.subr.mxu0 0.0
        %2207 = vmatpush1.msra.mxu0 0.0
        %2208 = vmatprep.subr.mxu0 0.0
        %2209 = vmatpush1.msra.mxu0 0.0
        %2210 = vmatprep.subr.mxu0 0.0
        %2211 = vmatpush1.msra.mxu0 0.0
        %2212 = vmatprep.subr.mxu0 0.0
        %2213 = vmatpush1.msra.mxu0 0.0
        %2214 = vmatprep.subr.mxu0 0.0
        %2215 = vmatpush1.msra.mxu0 0.0
        %2216 = vmatprep.subr.mxu0 0.0
        %2217 = vmatpush1.msra.mxu0 0.0
        %2218 = vmatprep.subr.mxu0 0.0
        %2219 = vmatpush1.msra.mxu0 0.0
        %2220 = vmatprep.subr.mxu0 0.0
        %2221 = vmatpush1.msra.mxu0 0.0
        %2222 = vmatprep.subr.mxu0 0.0
        %2223 = vmatpush1.msra.mxu0 0.0
        %2224 = vmatprep.subr.mxu0 0.0
        %2225 = vmatpush1.msra.mxu0 0.0
        %2226 = vmatprep.subr.mxu0 0.0
        %2227 = vmatpush1.msra.mxu0 0.0
        %2228 = vmatprep.subr.mxu0 0.0
        %2229 = vmatpush1.msra.mxu0 0.0
        %2230 = vmatprep.subr.mxu0 0.0
        %2231 = vmatpush1.msra.mxu0 0.0
        %2232 = vmatprep.subr.mxu0 0.0
        %2233 = vmatpush1.msra.mxu0 0.0
        %2234 = vmatprep.subr.mxu0 0.0
        %2235 = vmatpush1.msra.mxu0 0.0
        %2236 = vmatprep.subr.mxu0 0.0
        %2237 = vmatpush1.msra.mxu0 0.0
        %2238 = vmatprep.subr.mxu0 0.0
        %2239 = vmatpush1.msra.mxu0 0.0
        %2240 = vmatprep.subr.mxu0 0.0
        %2241 = vmatpush1.msra.mxu0 0.0
        %2242 = vmatprep.mubr.f32.mxu0 0.0
        %v2243 = vand.u32 %v1381, 4294901760
        %2244 = vmatmul.mubr.f32.gmra.mrb[0].mxu0 %v2243
        %v2245 = vpop.f32.mrb[0].mxu0
        %v2246 = vadd.f32 %v2055, %v2245
        %v2247 = vpop.f32.mrb[0].mxu0
        %2248 = vmatprep.mubr.f32.mxu0 0.0
        %v2249 = vand.u32 %v1384, 4294901760
        %2250 = vmatmul.mubr.f32.gmra.mrb[0].mxu0 %v2249
        %v2251 = vpop.f32.mrb[0].mxu0
        %v2252 = vadd.f32 %v2063, %v2251
        %v2253 = vpop.f32.mrb[0].mxu0
        %2254 = vmatprep.mubr.f32.mxu0 0.0
        %v2255 = vand.u32 %v1387, 4294901760
        %2256 = vmatmul.mubr.f32.gmra.mrb[0].mxu0 %v2255
        %v2257 = vpop.f32.mrb[0].mxu0
        %v2258 = vadd.f32 %v2071, %v2257
        %v2259 = vpop.f32.mrb[0].mxu0
        %2260 = vmatprep.mubr.f32.mxu0 0.0
        %v2261 = vand.u32 %v1390, 4294901760
        %2262 = vmatmul.mubr.f32.gmra.mrb[0].mxu0 %v2261
        %v2263 = vpop.f32.mrb[0].mxu0
        %v2264 = vadd.f32 %v2079, %v2263
        %v2265 = vpop.f32.mrb[0].mxu0
        %2266 = vmatprep.mubr.f32.mxu0 0.0
        %v2267 = vand.u32 %v1393, 4294901760
        %2268 = vmatmul.mubr.f32.gmra.mrb[0].mxu0 %v2267
        %v2269 = vpop.f32.mrb[0].mxu0
        %v2270 = vadd.f32 %v2087, %v2269
        %v2271 = vpop.f32.mrb[0].mxu0
        %2272 = vmatprep.mubr.f32.mxu0 0.0
        %v2273 = vand.u32 %v1396, 4294901760
        %2274 = vmatmul.mubr.f32.gmra.mrb[0].mxu0 %v2273
        %v2275 = vpop.f32.mrb[0].mxu0
        %v2276 = vadd.f32 %v2095, %v2275
        %v2277 = vpop.f32.mrb[0].mxu0
        %2278 = vmatprep.mubr.f32.mxu0 0.0
        %v2279 = vand.u32 %v1399, 4294901760
        %2280 = vmatmul.mubr.f32.gmra.mrb[0].mxu0 %v2279
        %v2281 = vpop.f32.mrb[0].mxu0
        %v2282 = vadd.f32 %v2103, %v2281
        %v2283 = vpop.f32.mrb[0].mxu0
        %2284 = vmatprep.mubr.f32.mxu0 0.0
        %v2285 = vand.u32 %v1402, 4294901760
        %2286 = vmatmul.mubr.f32.gmra.mrb[0].mxu0 %v2285
        %v2287 = vpop.f32.mrb[0].mxu0
        %v2288 = vadd.f32 %v2111, %v2287
        %v2289 = vpop.f32.mrb[0].mxu0
        %2290 = vmatprep.mubr.f32.mxu0 0.0
        %v2291 = vand.u32 %v1405, 4294901760
        %2292 = vmatmul.mubr.f32.gmra.mrb[0].mxu0 %v2291
        %v2293 = vpop.f32.mrb[0].mxu0
        %v2294 = vadd.f32 %v2119, %v2293
        %v2295 = vpop.f32.mrb[0].mxu0
        %2296 = vmatprep.mubr.f32.mxu0 0.0
        %v2297 = vand.u32 %v1408, 4294901760
        %2298 = vmatmul.mubr.f32.gmra.mrb[0].mxu0 %v2297
        %v2299 = vpop.f32.mrb[0].mxu0
        %v2300 = vadd.f32 %v2127, %v2299
        %v2301 = vpop.f32.mrb[0].mxu0
        %2302 = vmatprep.mubr.f32.mxu0 0.0
        %v2303 = vand.u32 %v1411, 4294901760
        %2304 = vmatmul.mubr.f32.gmra.mrb[0].mxu0 %v2303
        %v2305 = vpop.f32.mrb[0].mxu0
        %v2306 = vadd.f32 %v2135, %v2305
        %v2307 = vpop.f32.mrb[0].mxu0
        %2308 = vmatprep.mubr.f32.mxu0 0.0
        %v2309 = vand.u32 %v1414, 4294901760
        %2310 = vmatmul.mubr.f32.gmra.mrb[0].mxu0 %v2309
        %v2311 = vpop.f32.mrb[0].mxu0
        %v2312 = vadd.f32 %v2143, %v2311
        %v2313 = vpop.f32.mrb[0].mxu0
        %2314 = vmatprep.mubr.f32.mxu0 0.0
        %v2315 = vand.u32 %v1417, 4294901760
        %2316 = vmatmul.mubr.f32.gmra.mrb[0].mxu0 %v2315
        %v2317 = vpop.f32.mrb[0].mxu0
        %v2318 = vadd.f32 %v2151, %v2317
        %v2319 = vpop.f32.mrb[0].mxu0
        %2320 = vdwg.mxu0
        %2321 = vmatprep.subr.mxu0 0.0
        %v2322 = vand.u32 %v1364, 4294901760
        %2323 = vmatpush1.msra.mxu0 %v2322
        %2324 = vmatprep.subr.mxu0 0.0
        %v2325 = vand.u32 %v1365, 4294901760
        %2326 = vmatpush1.msra.mxu0 %v2325
        %2327 = vmatprep.subr.mxu0 0.0
        %v2328 = vand.u32 %v1366, 4294901760
        %2329 = vmatpush1.msra.mxu0 %v2328
        %2330 = vmatprep.subr.mxu0 0.0
        %v2331 = vand.u32 %v1367, 4294901760
        %2332 = vmatpush1.msra.mxu0 %v2331
        %2333 = vmatprep.subr.mxu0 0.0
        %v2334 = vand.u32 %v1368, 4294901760
        %2335 = vmatpush1.msra.mxu0 %v2334
        %2336 = vmatprep.subr.mxu0 0.0
        %v2337 = vand.u32 %v1369, 4294901760
        %2338 = vmatpush1.msra.mxu0 %v2337
        %2339 = vmatprep.subr.mxu0 0.0
        %v2340 = vand.u32 %v1370, 4294901760
        %2341 = vmatpush1.msra.mxu0 %v2340
        %2342 = vmatprep.subr.mxu0 0.0
        %v2343 = vand.u32 %v1371, 4294901760
        %2344 = vmatpush1.msra.mxu0 %v2343
        %2345 = vmatprep.subr.mxu0 0.0
        %2346 = vmatpush1.msra.mxu0 0.0
        %2347 = vmatprep.subr.mxu0 0.0
        %2348 = vmatpush1.msra.mxu0 0.0
        %2349 = vmatprep.subr.mxu0 0.0
        %2350 = vmatpush1.msra.mxu0 0.0
        %2351 = vmatprep.subr.mxu0 0.0
        %2352 = vmatpush1.msra.mxu0 0.0
        %2353 = vmatprep.subr.mxu0 0.0
        %2354 = vmatpush1.msra.mxu0 0.0
        %2355 = vmatprep.subr.mxu0 0.0
        %2356 = vmatpush1.msra.mxu0 0.0
        %2357 = vmatprep.subr.mxu0 0.0
        %2358 = vmatpush1.msra.mxu0 0.0
        %2359 = vmatprep.subr.mxu0 0.0
        %2360 = vmatpush1.msra.mxu0 0.0
        %2361 = vmatprep.subr.mxu0 0.0
        %2362 = vmatpush1.msra.mxu0 0.0
        %2363 = vmatprep.subr.mxu0 0.0
        %2364 = vmatpush1.msra.mxu0 0.0
        %2365 = vmatprep.subr.mxu0 0.0
        %2366 = vmatpush1.msra.mxu0 0.0
        %2367 = vmatprep.subr.mxu0 0.0
        %2368 = vmatpush1.msra.mxu0 0.0
        %2369 = vmatprep.subr.mxu0 0.0
        %2370 = vmatpush1.msra.mxu0 0.0
        %2371 = vmatprep.subr.mxu0 0.0
        %2372 = vmatpush1.msra.mxu0 0.0
        %2373 = vmatprep.subr.mxu0 0.0
        %2374 = vmatpush1.msra.mxu0 0.0
        %2375 = vmatprep.subr.mxu0 0.0
        %2376 = vmatpush1.msra.mxu0 0.0
        %2377 = vmatprep.subr.mxu0 0.0
        %2378 = vmatpush1.msra.mxu0 0.0
        %2379 = vmatprep.subr.mxu0 0.0
        %2380 = vmatpush1.msra.mxu0 0.0
        %2381 = vmatprep.subr.mxu0 0.0
        %2382 = vmatpush1.msra.mxu0 0.0
        %2383 = vmatprep.subr.mxu0 0.0
        %2384 = vmatpush1.msra.mxu0 0.0
        %2385 = vmatprep.subr.mxu0 0.0
        %2386 = vmatpush1.msra.mxu0 0.0
        %2387 = vmatprep.subr.mxu0 0.0
        %2388 = vmatpush1.msra.mxu0 0.0
        %2389 = vmatprep.subr.mxu0 0.0
        %2390 = vmatpush1.msra.mxu0 0.0
        %2391 = vmatprep.subr.mxu0 0.0
        %2392 = vmatpush1.msra.mxu0 0.0
        %2393 = vmatprep.mubr.f32.mxu0 0.0
        %v2394 = vand.u32 %v1381, 4294901760
        %2395 = vmatmul.mubr.f32.gmra.mrb[0].mxu0 %v2394
        %v2396 = vpop.f32.mrb[0].mxu0
        %v2397 = vadd.f32 %v2246, %v2396
        %v2398 = vpop.f32.mrb[0].mxu0
        %2399 = vmatprep.mubr.f32.mxu0 0.0
        %v2400 = vand.u32 %v1384, 4294901760
        %2401 = vmatmul.mubr.f32.gmra.mrb[0].mxu0 %v2400
        %v2402 = vpop.f32.mrb[0].mxu0
        %v2403 = vadd.f32 %v2252, %v2402
        %v2404 = vpop.f32.mrb[0].mxu0
        %2405 = vmatprep.mubr.f32.mxu0 0.0
        %v2406 = vand.u32 %v1387, 4294901760
        %2407 = vmatmul.mubr.f32.gmra.mrb[0].mxu0 %v2406
        %v2408 = vpop.f32.mrb[0].mxu0
        %v2409 = vadd.f32 %v2258, %v2408
        %v2410 = vpop.f32.mrb[0].mxu0
        %2411 = vmatprep.mubr.f32.mxu0 0.0
        %v2412 = vand.u32 %v1390, 4294901760
        %2413 = vmatmul.mubr.f32.gmra.mrb[0].mxu0 %v2412
        %v2414 = vpop.f32.mrb[0].mxu0
        %v2415 = vadd.f32 %v2264, %v2414
        %v2416 = vpop.f32.mrb[0].mxu0
        %2417 = vmatprep.mubr.f32.mxu0 0.0
        %v2418 = vand.u32 %v1393, 4294901760
        %2419 = vmatmul.mubr.f32.gmra.mrb[0].mxu0 %v2418
        %v2420 = vpop.f32.mrb[0].mxu0
        %v2421 = vadd.f32 %v2270, %v2420
        %v2422 = vpop.f32.mrb[0].mxu0
        %2423 = vmatprep.mubr.f32.mxu0 0.0
        %v2424 = vand.u32 %v1396, 4294901760
        %2425 = vmatmul.mubr.f32.gmra.mrb[0].mxu0 %v2424
        %v2426 = vpop.f32.mrb[0].mxu0
        %v2427 = vadd.f32 %v2276, %v2426
        %v2428 = vpop.f32.mrb[0].mxu0
        %2429 = vmatprep.mubr.f32.mxu0 0.0
        %v2430 = vand.u32 %v1399, 4294901760
        %2431 = vmatmul.mubr.f32.gmra.mrb[0].mxu0 %v2430
        %v2432 = vpop.f32.mrb[0].mxu0
        %v2433 = vadd.f32 %v2282, %v2432
        %v2434 = vpop.f32.mrb[0].mxu0
        %2435 = vmatprep.mubr.f32.mxu0 0.0
        %v2436 = vand.u32 %v1402, 4294901760
        %2437 = vmatmul.mubr.f32.gmra.mrb[0].mxu0 %v2436
        %v2438 = vpop.f32.mrb[0].mxu0
        %v2439 = vadd.f32 %v2288, %v2438
        %v2440 = vpop.f32.mrb[0].mxu0
        %2441 = vmatprep.mubr.f32.mxu0 0.0
        %v2442 = vand.u32 %v1405, 4294901760
        %2443 = vmatmul.mubr.f32.gmra.mrb[0].mxu0 %v2442
        %v2444 = vpop.f32.mrb[0].mxu0
        %v2445 = vadd.f32 %v2294, %v2444
        %v2446 = vpop.f32.mrb[0].mxu0
        %2447 = vmatprep.mubr.f32.mxu0 0.0
        %v2448 = vand.u32 %v1408, 4294901760
        %2449 = vmatmul.mubr.f32.gmra.mrb[0].mxu0 %v2448
        %v2450 = vpop.f32.mrb[0].mxu0
        %v2451 = vadd.f32 %v2300, %v2450
        %v2452 = vpop.f32.mrb[0].mxu0
        %2453 = vmatprep.mubr.f32.mxu0 0.0
        %v2454 = vand.u32 %v1411, 4294901760
        %2455 = vmatmul.mubr.f32.gmra.mrb[0].mxu0 %v2454
        %v2456 = vpop.f32.mrb[0].mxu0
        %v2457 = vadd.f32 %v2306, %v2456
        %v2458 = vpop.f32.mrb[0].mxu0
        %2459 = vmatprep.mubr.f32.mxu0 0.0
        %v2460 = vand.u32 %v1414, 4294901760
        %2461 = vmatmul.mubr.f32.gmra.mrb[0].mxu0 %v2460
        %v2462 = vpop.f32.mrb[0].mxu0
        %v2463 = vadd.f32 %v2312, %v2462
        %v2464 = vpop.f32.mrb[0].mxu0
        %2465 = vmatprep.mubr.f32.mxu0 0.0
        %v2466 = vand.u32 %v1417, 4294901760
        %2467 = vmatmul.mubr.f32.gmra.mrb[0].mxu0 %v2466
        %v2468 = vpop.f32.mrb[0].mxu0
        %v2469 = vadd.f32 %v2318, %v2468
        %v2470 = vpop.f32.mrb[0].mxu0
        %2471 = vdwg.mxu0
        %v2472 = vmax.f32 %v2397, 0.0
        %v2473 = vmax.f32 %v2403, 0.0
        %v2474 = vmax.f32 %v2409, 0.0
        %v2475 = vmax.f32 %v2415, 0.0
        %v2476 = vmax.f32 %v2421, 0.0
        %v2477 = vmax.f32 %v2427, 0.0
        %v2478 = vmax.f32 %v2433, 0.0
        %v2479 = vmax.f32 %v2439, 0.0
        %v2480 = vmax.f32 %v2445, 0.0
        %v2481 = vmax.f32 %v2451, 0.0
        %v2482 = vmax.f32 %v2457, 0.0
        %v2483 = vmax.f32 %v2463, 0.0
        %v2484 = vmax.f32 %v2469, 0.0
        %v2485 = vld [vmem:[%s5] sm:$0xff]
        %v2486 = vld [vmem:[%s5 + $0x8] sm:$0xff]
        %v2487 = vld [vmem:[%s5 + $0x10] sm:$0xff]
        %v2488 = vld [vmem:[%s5 + $0x18] sm:$0xff]
        %v2489 = vld [vmem:[%s5 + $0x20] sm:$0xff]
        %v2490 = vld [vmem:[%s5 + $0x28] sm:$0xff]
        %v2491 = vld [vmem:[%s5 + $0x30] sm:$0xff]
        %v2492 = vld [vmem:[%s5 + $0x38] sm:$0xff]
        %v2493 = vld [vmem:[%s6] sm:$0x1]
        %v2495 = vlaneseq
        %v2496 = vshrl.u32 %v2495, 7
        %v2497 = vsub.s32 0, %v2496
        %v2498 = vrot.slane %v2493, %v2497
        %v2501 = vsel %vm1379, %v2472, 0
        %v2504 = vsel %vm1379, %v2473, 0
        %v2507 = vsel %vm1379, %v2474, 0
        %v2510 = vsel %vm1379, %v2475, 0
        %v2513 = vsel %vm1379, %v2476, 0
        %v2516 = vsel %vm1379, %v2477, 0
        %v2519 = vsel %vm1379, %v2478, 0
        %v2522 = vsel %vm1379, %v2479, 0
        %v2525 = vsel %vm1379, %v2480, 0
        %v2528 = vsel %vm1379, %v2481, 0
        %v2531 = vsel %vm1379, %v2482, 0
        %v2534 = vsel %vm1379, %v2483, 0
        %v2537 = vsel %vm1379, %v2484, 0
        %2539 = vmatprep.subr.mxu0 0.0
        %v2540 = vand.u32 %v2485, 4294901760
        %2541 = vmatpush1.msra.mxu0 %v2540
        %2542 = vmatprep.subr.mxu0 0.0
        %v2543 = vand.u32 %v2486, 4294901760
        %2544 = vmatpush1.msra.mxu0 %v2543
        %2545 = vmatprep.subr.mxu0 0.0
        %v2546 = vand.u32 %v2487, 4294901760
        %2547 = vmatpush1.msra.mxu0 %v2546
        %2548 = vmatprep.subr.mxu0 0.0
        %v2549 = vand.u32 %v2488, 4294901760
        %2550 = vmatpush1.msra.mxu0 %v2549
        %2551 = vmatprep.subr.mxu0 0.0
        %v2552 = vand.u32 %v2489, 4294901760
        %2553 = vmatpush1.msra.mxu0 %v2552
        %2554 = vmatprep.subr.mxu0 0.0
        %v2555 = vand.u32 %v2490, 4294901760
        %2556 = vmatpush1.msra.mxu0 %v2555
        %2557 = vmatprep.subr.mxu0 0.0
        %v2558 = vand.u32 %v2491, 4294901760
        %2559 = vmatpush1.msra.mxu0 %v2558
        %2560 = vmatprep.subr.mxu0 0.0
        %v2561 = vand.u32 %v2492, 4294901760
        %2562 = vmatpush1.msra.mxu0 %v2561
        %2563 = vmatprep.subr.mxu0 0.0
        %2564 = vmatpush1.msra.mxu0 0.0
        %2565 = vmatprep.subr.mxu0 0.0
        %2566 = vmatpush1.msra.mxu0 0.0
        %2567 = vmatprep.subr.mxu0 0.0
        %2568 = vmatpush1.msra.mxu0 0.0
        %2569 = vmatprep.subr.mxu0 0.0
        %2570 = vmatpush1.msra.mxu0 0.0
        %2571 = vmatprep.subr.mxu0 0.0
        %2572 = vmatpush1.msra.mxu0 0.0
        %2573 = vmatprep.subr.mxu0 0.0
        %2574 = vmatpush1.msra.mxu0 0.0
        %2575 = vmatprep.subr.mxu0 0.0
        %2576 = vmatpush1.msra.mxu0 0.0
        %2577 = vmatprep.subr.mxu0 0.0
        %2578 = vmatpush1.msra.mxu0 0.0
        %2579 = vmatprep.subr.mxu0 0.0
        %2580 = vmatpush1.msra.mxu0 0.0
        %2581 = vmatprep.subr.mxu0 0.0
        %2582 = vmatpush1.msra.mxu0 0.0
        %2583 = vmatprep.subr.mxu0 0.0
        %2584 = vmatpush1.msra.mxu0 0.0
        %2585 = vmatprep.subr.mxu0 0.0
        %2586 = vmatpush1.msra.mxu0 0.0
        %2587 = vmatprep.subr.mxu0 0.0
        %2588 = vmatpush1.msra.mxu0 0.0
        %2589 = vmatprep.subr.mxu0 0.0
        %2590 = vmatpush1.msra.mxu0 0.0
        %2591 = vmatprep.subr.mxu0 0.0
        %2592 = vmatpush1.msra.mxu0 0.0
        %2593 = vmatprep.subr.mxu0 0.0
        %2594 = vmatpush1.msra.mxu0 0.0
        %2595 = vmatprep.subr.mxu0 0.0
        %2596 = vmatpush1.msra.mxu0 0.0
        %2597 = vmatprep.subr.mxu0 0.0
        %2598 = vmatpush1.msra.mxu0 0.0
        %2599 = vmatprep.subr.mxu0 0.0
        %2600 = vmatpush1.msra.mxu0 0.0
        %2601 = vmatprep.subr.mxu0 0.0
        %2602 = vmatpush1.msra.mxu0 0.0
        %2603 = vmatprep.subr.mxu0 0.0
        %2604 = vmatpush1.msra.mxu0 0.0
        %2605 = vmatprep.subr.mxu0 0.0
        %2606 = vmatpush1.msra.mxu0 0.0
        %2607 = vmatprep.subr.mxu0 0.0
        %2608 = vmatpush1.msra.mxu0 0.0
        %2609 = vmatprep.subr.mxu0 0.0
        %2610 = vmatpush1.msra.mxu0 0.0
        %2611 = vmatprep.mubr.f32.mxu0 0.0
        %v2612 = vand.u32 %v2501, 4294901760
        %v2613 = vsub.f32 %v2501, %v2612
        %v2614 = vand.u32 %v2613, 4294901760
        %v2615 = vsub.f32 %v2613, %v2614
        %v2616 = vand.u32 %v2615, 4294901760
        %2617 = vmatmul.mubr.f32.gmra.mrb[0].mxu0 %v2616
        %v2618 = vpop.f32.mrb[0].mxu0
        %v2619 = vadd.f32 %v2498, %v2618
        %v2620 = vpop.f32.mrb[0].mxu0
        %2621 = vmatprep.mubr.f32.mxu0 0.0
        %v2622 = vand.u32 %v2504, 4294901760
        %v2623 = vsub.f32 %v2504, %v2622
        %v2624 = vand.u32 %v2623, 4294901760
        %v2625 = vsub.f32 %v2623, %v2624
        %v2626 = vand.u32 %v2625, 4294901760
        %2627 = vmatmul.mubr.f32.gmra.mrb[0].mxu0 %v2626
        %v2628 = vpop.f32.mrb[0].mxu0
        %v2629 = vadd.f32 %v2498, %v2628
        %v2630 = vpop.f32.mrb[0].mxu0
        %2631 = vmatprep.mubr.f32.mxu0 0.0
        %v2632 = vand.u32 %v2507, 4294901760
        %v2633 = vsub.f32 %v2507, %v2632
        %v2634 = vand.u32 %v2633, 4294901760
        %v2635 = vsub.f32 %v2633, %v2634
        %v2636 = vand.u32 %v2635, 4294901760
        %2637 = vmatmul.mubr.f32.gmra.mrb[0].mxu0 %v2636
        %v2638 = vpop.f32.mrb[0].mxu0
        %v2639 = vadd.f32 %v2498, %v2638
        %v2640 = vpop.f32.mrb[0].mxu0
        %2641 = vmatprep.mubr.f32.mxu0 0.0
        %v2642 = vand.u32 %v2510, 4294901760
        %v2643 = vsub.f32 %v2510, %v2642
        %v2644 = vand.u32 %v2643, 4294901760
        %v2645 = vsub.f32 %v2643, %v2644
        %v2646 = vand.u32 %v2645, 4294901760
        %2647 = vmatmul.mubr.f32.gmra.mrb[0].mxu0 %v2646
        %v2648 = vpop.f32.mrb[0].mxu0
        %v2649 = vadd.f32 %v2498, %v2648
        %v2650 = vpop.f32.mrb[0].mxu0
        %2651 = vmatprep.mubr.f32.mxu0 0.0
        %v2652 = vand.u32 %v2513, 4294901760
        %v2653 = vsub.f32 %v2513, %v2652
        %v2654 = vand.u32 %v2653, 4294901760
        %v2655 = vsub.f32 %v2653, %v2654
        %v2656 = vand.u32 %v2655, 4294901760
        %2657 = vmatmul.mubr.f32.gmra.mrb[0].mxu0 %v2656
        %v2658 = vpop.f32.mrb[0].mxu0
        %v2659 = vadd.f32 %v2498, %v2658
        %v2660 = vpop.f32.mrb[0].mxu0
        %2661 = vmatprep.mubr.f32.mxu0 0.0
        %v2662 = vand.u32 %v2516, 4294901760
        %v2663 = vsub.f32 %v2516, %v2662
        %v2664 = vand.u32 %v2663, 4294901760
        %v2665 = vsub.f32 %v2663, %v2664
        %v2666 = vand.u32 %v2665, 4294901760
        %2667 = vmatmul.mubr.f32.gmra.mrb[0].mxu0 %v2666
        %v2668 = vpop.f32.mrb[0].mxu0
        %v2669 = vadd.f32 %v2498, %v2668
        %v2670 = vpop.f32.mrb[0].mxu0
        %2671 = vmatprep.mubr.f32.mxu0 0.0
        %v2672 = vand.u32 %v2519, 4294901760
        %v2673 = vsub.f32 %v2519, %v2672
        %v2674 = vand.u32 %v2673, 4294901760
        %v2675 = vsub.f32 %v2673, %v2674
        %v2676 = vand.u32 %v2675, 4294901760
        %2677 = vmatmul.mubr.f32.gmra.mrb[0].mxu0 %v2676
        %v2678 = vpop.f32.mrb[0].mxu0
        %v2679 = vadd.f32 %v2498, %v2678
        %v2680 = vpop.f32.mrb[0].mxu0
        %2681 = vmatprep.mubr.f32.mxu0 0.0
        %v2682 = vand.u32 %v2522, 4294901760
        %v2683 = vsub.f32 %v2522, %v2682
        %v2684 = vand.u32 %v2683, 4294901760
        %v2685 = vsub.f32 %v2683, %v2684
        %v2686 = vand.u32 %v2685, 4294901760
        %2687 = vmatmul.mubr.f32.gmra.mrb[0].mxu0 %v2686
        %v2688 = vpop.f32.mrb[0].mxu0
        %v2689 = vadd.f32 %v2498, %v2688
        %v2690 = vpop.f32.mrb[0].mxu0
        %2691 = vmatprep.mubr.f32.mxu0 0.0
        %v2692 = vand.u32 %v2525, 4294901760
        %v2693 = vsub.f32 %v2525, %v2692
        %v2694 = vand.u32 %v2693, 4294901760
        %v2695 = vsub.f32 %v2693, %v2694
        %v2696 = vand.u32 %v2695, 4294901760
        %2697 = vmatmul.mubr.f32.gmra.mrb[0].mxu0 %v2696
        %v2698 = vpop.f32.mrb[0].mxu0
        %v2699 = vadd.f32 %v2498, %v2698
        %v2700 = vpop.f32.mrb[0].mxu0
        %2701 = vmatprep.mubr.f32.mxu0 0.0
        %v2702 = vand.u32 %v2528, 4294901760
        %v2703 = vsub.f32 %v2528, %v2702
        %v2704 = vand.u32 %v2703, 4294901760
        %v2705 = vsub.f32 %v2703, %v2704
        %v2706 = vand.u32 %v2705, 4294901760
        %2707 = vmatmul.mubr.f32.gmra.mrb[0].mxu0 %v2706
        %v2708 = vpop.f32.mrb[0].mxu0
        %v2709 = vadd.f32 %v2498, %v2708
        %v2710 = vpop.f32.mrb[0].mxu0
        %2711 = vmatprep.mubr.f32.mxu0 0.0
        %v2712 = vand.u32 %v2531, 4294901760
        %v2713 = vsub.f32 %v2531, %v2712
        %v2714 = vand.u32 %v2713, 4294901760
        %v2715 = vsub.f32 %v2713, %v2714
        %v2716 = vand.u32 %v2715, 4294901760
        %2717 = vmatmul.mubr.f32.gmra.mrb[0].mxu0 %v2716
        %v2718 = vpop.f32.mrb[0].mxu0
        %v2719 = vadd.f32 %v2498, %v2718
        %v2720 = vpop.f32.mrb[0].mxu0
        %2721 = vmatprep.mubr.f32.mxu0 0.0
        %v2722 = vand.u32 %v2534, 4294901760
        %v2723 = vsub.f32 %v2534, %v2722
        %v2724 = vand.u32 %v2723, 4294901760
        %v2725 = vsub.f32 %v2723, %v2724
        %v2726 = vand.u32 %v2725, 4294901760
        %2727 = vmatmul.mubr.f32.gmra.mrb[0].mxu0 %v2726
        %v2728 = vpop.f32.mrb[0].mxu0
        %v2729 = vadd.f32 %v2498, %v2728
        %v2730 = vpop.f32.mrb[0].mxu0
        %2731 = vmatprep.mubr.f32.mxu0 0.0
        %v2732 = vand.u32 %v2537, 4294901760
        %v2733 = vsub.f32 %v2537, %v2732
        %v2734 = vand.u32 %v2733, 4294901760
        %v2735 = vsub.f32 %v2733, %v2734
        %v2736 = vand.u32 %v2735, 4294901760
        %2737 = vmatmul.mubr.f32.gmra.mrb[0].mxu0 %v2736
        %v2738 = vpop.f32.mrb[0].mxu0
        %v2739 = vadd.f32 %v2498, %v2738
        %v2740 = vpop.f32.mrb[0].mxu0
        %2741 = vdwg.mxu0
        %2742 = vmatprep.subr.mxu0 0.0
        %v2743 = vand.u32 %v2485, 4294901760
        %v2744 = vsub.f32 %v2485, %v2743
        %v2745 = vand.u32 %v2744, 4294901760
        %v2746 = vsub.f32 %v2744, %v2745
        %v2747 = vand.u32 %v2746, 4294901760
        %2748 = vmatpush1.msra.mxu0 %v2747
        %2749 = vmatprep.subr.mxu0 0.0
        %v2750 = vand.u32 %v2486, 4294901760
        %v2751 = vsub.f32 %v2486, %v2750
        %v2752 = vand.u32 %v2751, 4294901760
        %v2753 = vsub.f32 %v2751, %v2752
        %v2754 = vand.u32 %v2753, 4294901760
        %2755 = vmatpush1.msra.mxu0 %v2754
        %2756 = vmatprep.subr.mxu0 0.0
        %v2757 = vand.u32 %v2487, 4294901760
        %v2758 = vsub.f32 %v2487, %v2757
        %v2759 = vand.u32 %v2758, 4294901760
        %v2760 = vsub.f32 %v2758, %v2759
        %v2761 = vand.u32 %v2760, 4294901760
        %2762 = vmatpush1.msra.mxu0 %v2761
        %2763 = vmatprep.subr.mxu0 0.0
        %v2764 = vand.u32 %v2488, 4294901760
        %v2765 = vsub.f32 %v2488, %v2764
        %v2766 = vand.u32 %v2765, 4294901760
        %v2767 = vsub.f32 %v2765, %v2766
        %v2768 = vand.u32 %v2767, 4294901760
        %2769 = vmatpush1.msra.mxu0 %v2768
        %2770 = vmatprep.subr.mxu0 0.0
        %v2771 = vand.u32 %v2489, 4294901760
        %v2772 = vsub.f32 %v2489, %v2771
        %v2773 = vand.u32 %v2772, 4294901760
        %v2774 = vsub.f32 %v2772, %v2773
        %v2775 = vand.u32 %v2774, 4294901760
        %2776 = vmatpush1.msra.mxu0 %v2775
        %2777 = vmatprep.subr.mxu0 0.0
        %v2778 = vand.u32 %v2490, 4294901760
        %v2779 = vsub.f32 %v2490, %v2778
        %v2780 = vand.u32 %v2779, 4294901760
        %v2781 = vsub.f32 %v2779, %v2780
        %v2782 = vand.u32 %v2781, 4294901760
        %2783 = vmatpush1.msra.mxu0 %v2782
        %2784 = vmatprep.subr.mxu0 0.0
        %v2785 = vand.u32 %v2491, 4294901760
        %v2786 = vsub.f32 %v2491, %v2785
        %v2787 = vand.u32 %v2786, 4294901760
        %v2788 = vsub.f32 %v2786, %v2787
        %v2789 = vand.u32 %v2788, 4294901760
        %2790 = vmatpush1.msra.mxu0 %v2789
        %2791 = vmatprep.subr.mxu0 0.0
        %v2792 = vand.u32 %v2492, 4294901760
        %v2793 = vsub.f32 %v2492, %v2792
        %v2794 = vand.u32 %v2793, 4294901760
        %v2795 = vsub.f32 %v2793, %v2794
        %v2796 = vand.u32 %v2795, 4294901760
        %2797 = vmatpush1.msra.mxu0 %v2796
        %2798 = vmatprep.subr.mxu0 0.0
        %2799 = vmatpush1.msra.mxu0 0.0
        %2800 = vmatprep.subr.mxu0 0.0
        %2801 = vmatpush1.msra.mxu0 0.0
        %2802 = vmatprep.subr.mxu0 0.0
        %2803 = vmatpush1.msra.mxu0 0.0
        %2804 = vmatprep.subr.mxu0 0.0
        %2805 = vmatpush1.msra.mxu0 0.0
        %2806 = vmatprep.subr.mxu0 0.0
        %2807 = vmatpush1.msra.mxu0 0.0
        %2808 = vmatprep.subr.mxu0 0.0
        %2809 = vmatpush1.msra.mxu0 0.0
        %2810 = vmatprep.subr.mxu0 0.0
        %2811 = vmatpush1.msra.mxu0 0.0
        %2812 = vmatprep.subr.mxu0 0.0
        %2813 = vmatpush1.msra.mxu0 0.0
        %2814 = vmatprep.subr.mxu0 0.0
        %2815 = vmatpush1.msra.mxu0 0.0
        %2816 = vmatprep.subr.mxu0 0.0
        %2817 = vmatpush1.msra.mxu0 0.0
        %2818 = vmatprep.subr.mxu0 0.0
        %2819 = vmatpush1.msra.mxu0 0.0
        %2820 = vmatprep.subr.mxu0 0.0
        %2821 = vmatpush1.msra.mxu0 0.0
        %2822 = vmatprep.subr.mxu0 0.0
        %2823 = vmatpush1.msra.mxu0 0.0
        %2824 = vmatprep.subr.mxu0 0.0
        %2825 = vmatpush1.msra.mxu0 0.0
        %2826 = vmatprep.subr.mxu0 0.0
        %2827 = vmatpush1.msra.mxu0 0.0
        %2828 = vmatprep.subr.mxu0 0.0
        %2829 = vmatpush1.msra.mxu0 0.0
        %2830 = vmatprep.subr.mxu0 0.0
        %2831 = vmatpush1.msra.mxu0 0.0
        %2832 = vmatprep.subr.mxu0 0.0
        %2833 = vmatpush1.msra.mxu0 0.0
        %2834 = vmatprep.subr.mxu0 0.0
        %2835 = vmatpush1.msra.mxu0 0.0
        %2836 = vmatprep.subr.mxu0 0.0
        %2837 = vmatpush1.msra.mxu0 0.0
        %2838 = vmatprep.subr.mxu0 0.0
        %2839 = vmatpush1.msra.mxu0 0.0
        %2840 = vmatprep.subr.mxu0 0.0
        %2841 = vmatpush1.msra.mxu0 0.0
        %2842 = vmatprep.subr.mxu0 0.0
        %2843 = vmatpush1.msra.mxu0 0.0
        %2844 = vmatprep.subr.mxu0 0.0
        %2845 = vmatpush1.msra.mxu0 0.0
        %2846 = vmatprep.mubr.f32.mxu0 0.0
        %v2847 = vand.u32 %v2501, 4294901760
        %2848 = vmatmul.mubr.f32.gmra.mrb[0].mxu0 %v2847
        %v2849 = vpop.f32.mrb[0].mxu0
        %v2850 = vadd.f32 %v2619, %v2849
        %v2851 = vpop.f32.mrb[0].mxu0
        %2852 = vmatprep.mubr.f32.mxu0 0.0
        %v2853 = vand.u32 %v2504, 4294901760
        %2854 = vmatmul.mubr.f32.gmra.mrb[0].mxu0 %v2853
        %v2855 = vpop.f32.mrb[0].mxu0
        %v2856 = vadd.f32 %v2629, %v2855
        %v2857 = vpop.f32.mrb[0].mxu0
        %2858 = vmatprep.mubr.f32.mxu0 0.0
        %v2859 = vand.u32 %v2507, 4294901760
        %2860 = vmatmul.mubr.f32.gmra.mrb[0].mxu0 %v2859
        %v2861 = vpop.f32.mrb[0].mxu0
        %v2862 = vadd.f32 %v2639, %v2861
        %v2863 = vpop.f32.mrb[0].mxu0
        %2864 = vmatprep.mubr.f32.mxu0 0.0
        %v2865 = vand.u32 %v2510, 4294901760
        %2866 = vmatmul.mubr.f32.gmra.mrb[0].mxu0 %v2865
        %v2867 = vpop.f32.mrb[0].mxu0
        %v2868 = vadd.f32 %v2649, %v2867
        %v2869 = vpop.f32.mrb[0].mxu0
        %2870 = vmatprep.mubr.f32.mxu0 0.0
        %v2871 = vand.u32 %v2513, 4294901760
        %2872 = vmatmul.mubr.f32.gmra.mrb[0].mxu0 %v2871
        %v2873 = vpop.f32.mrb[0].mxu0
        %v2874 = vadd.f32 %v2659, %v2873
        %v2875 = vpop.f32.mrb[0].mxu0
        %2876 = vmatprep.mubr.f32.mxu0 0.0
        %v2877 = vand.u32 %v2516, 4294901760
        %2878 = vmatmul.mubr.f32.gmra.mrb[0].mxu0 %v2877
        %v2879 = vpop.f32.mrb[0].mxu0
        %v2880 = vadd.f32 %v2669, %v2879
        %v2881 = vpop.f32.mrb[0].mxu0
        %2882 = vmatprep.mubr.f32.mxu0 0.0
        %v2883 = vand.u32 %v2519, 4294901760
        %2884 = vmatmul.mubr.f32.gmra.mrb[0].mxu0 %v2883
        %v2885 = vpop.f32.mrb[0].mxu0
        %v2886 = vadd.f32 %v2679, %v2885
        %v2887 = vpop.f32.mrb[0].mxu0
        %2888 = vmatprep.mubr.f32.mxu0 0.0
        %v2889 = vand.u32 %v2522, 4294901760
        %2890 = vmatmul.mubr.f32.gmra.mrb[0].mxu0 %v2889
        %v2891 = vpop.f32.mrb[0].mxu0
        %v2892 = vadd.f32 %v2689, %v2891
        %v2893 = vpop.f32.mrb[0].mxu0
        %2894 = vmatprep.mubr.f32.mxu0 0.0
        %v2895 = vand.u32 %v2525, 4294901760
        %2896 = vmatmul.mubr.f32.gmra.mrb[0].mxu0 %v2895
        %v2897 = vpop.f32.mrb[0].mxu0
        %v2898 = vadd.f32 %v2699, %v2897
        %v2899 = vpop.f32.mrb[0].mxu0
        %2900 = vmatprep.mubr.f32.mxu0 0.0
        %v2901 = vand.u32 %v2528, 4294901760
        %2902 = vmatmul.mubr.f32.gmra.mrb[0].mxu0 %v2901
        %v2903 = vpop.f32.mrb[0].mxu0
        %v2904 = vadd.f32 %v2709, %v2903
        %v2905 = vpop.f32.mrb[0].mxu0
        %2906 = vmatprep.mubr.f32.mxu0 0.0
        %v2907 = vand.u32 %v2531, 4294901760
        %2908 = vmatmul.mubr.f32.gmra.mrb[0].mxu0 %v2907
        %v2909 = vpop.f32.mrb[0].mxu0
        %v2910 = vadd.f32 %v2719, %v2909
        %v2911 = vpop.f32.mrb[0].mxu0
        %2912 = vmatprep.mubr.f32.mxu0 0.0
        %v2913 = vand.u32 %v2534, 4294901760
        %2914 = vmatmul.mubr.f32.gmra.mrb[0].mxu0 %v2913
        %v2915 = vpop.f32.mrb[0].mxu0
        %v2916 = vadd.f32 %v2729, %v2915
        %v2917 = vpop.f32.mrb[0].mxu0
        %2918 = vmatprep.mubr.f32.mxu0 0.0
        %v2919 = vand.u32 %v2537, 4294901760
        %2920 = vmatmul.mubr.f32.gmra.mrb[0].mxu0 %v2919
        %v2921 = vpop.f32.mrb[0].mxu0
        %v2922 = vadd.f32 %v2739, %v2921
        %v2923 = vpop.f32.mrb[0].mxu0
        %2924 = vdwg.mxu0
        %2925 = vmatprep.subr.mxu0 0.0
        %v2926 = vand.u32 %v2485, 4294901760
        %v2927 = vsub.f32 %v2485, %v2926
        %2928 = vmatpush1.msra.mxu0 %v2927
        %2929 = vmatprep.subr.mxu0 0.0
        %v2930 = vand.u32 %v2486, 4294901760
        %v2931 = vsub.f32 %v2486, %v2930
        %2932 = vmatpush1.msra.mxu0 %v2931
        %2933 = vmatprep.subr.mxu0 0.0
        %v2934 = vand.u32 %v2487, 4294901760
        %v2935 = vsub.f32 %v2487, %v2934
        %2936 = vmatpush1.msra.mxu0 %v2935
        %2937 = vmatprep.subr.mxu0 0.0
        %v2938 = vand.u32 %v2488, 4294901760
        %v2939 = vsub.f32 %v2488, %v2938
        %2940 = vmatpush1.msra.mxu0 %v2939
        %2941 = vmatprep.subr.mxu0 0.0
        %v2942 = vand.u32 %v2489, 4294901760
        %v2943 = vsub.f32 %v2489, %v2942
        %2944 = vmatpush1.msra.mxu0 %v2943
        %2945 = vmatprep.subr.mxu0 0.0
        %v2946 = vand.u32 %v2490, 4294901760
        %v2947 = vsub.f32 %v2490, %v2946
        %2948 = vmatpush1.msra.mxu0 %v2947
        %2949 = vmatprep.subr.mxu0 0.0
        %v2950 = vand.u32 %v2491, 4294901760
        %v2951 = vsub.f32 %v2491, %v2950
        %2952 = vmatpush1.msra.mxu0 %v2951
        %2953 = vmatprep.subr.mxu0 0.0
        %v2954 = vand.u32 %v2492, 4294901760
        %v2955 = vsub.f32 %v2492, %v2954
        %2956 = vmatpush1.msra.mxu0 %v2955
        %2957 = vmatprep.subr.mxu0 0.0
        %2958 = vmatpush1.msra.mxu0 0.0
        %2959 = vmatprep.subr.mxu0 0.0
        %2960 = vmatpush1.msra.mxu0 0.0
        %2961 = vmatprep.subr.mxu0 0.0
        %2962 = vmatpush1.msra.mxu0 0.0
        %2963 = vmatprep.subr.mxu0 0.0
        %2964 = vmatpush1.msra.mxu0 0.0
        %2965 = vmatprep.subr.mxu0 0.0
        %2966 = vmatpush1.msra.mxu0 0.0
        %2967 = vmatprep.subr.mxu0 0.0
        %2968 = vmatpush1.msra.mxu0 0.0
        %2969 = vmatprep.subr.mxu0 0.0
        %2970 = vmatpush1.msra.mxu0 0.0
        %2971 = vmatprep.subr.mxu0 0.0
        %2972 = vmatpush1.msra.mxu0 0.0
        %2973 = vmatprep.subr.mxu0 0.0
        %2974 = vmatpush1.msra.mxu0 0.0
        %2975 = vmatprep.subr.mxu0 0.0
        %2976 = vmatpush1.msra.mxu0 0.0
        %2977 = vmatprep.subr.mxu0 0.0
        %2978 = vmatpush1.msra.mxu0 0.0
        %2979 = vmatprep.subr.mxu0 0.0
        %2980 = vmatpush1.msra.mxu0 0.0
        %2981 = vmatprep.subr.mxu0 0.0
        %2982 = vmatpush1.msra.mxu0 0.0
        %2983 = vmatprep.subr.mxu0 0.0
        %2984 = vmatpush1.msra.mxu0 0.0
        %2985 = vmatprep.subr.mxu0 0.0
        %2986 = vmatpush1.msra.mxu0 0.0
        %2987 = vmatprep.subr.mxu0 0.0
        %2988 = vmatpush1.msra.mxu0 0.0
        %2989 = vmatprep.subr.mxu0 0.0
        %2990 = vmatpush1.msra.mxu0 0.0
        %2991 = vmatprep.subr.mxu0 0.0
        %2992 = vmatpush1.msra.mxu0 0.0
        %2993 = vmatprep.subr.mxu0 0.0
        %2994 = vmatpush1.msra.mxu0 0.0
        %2995 = vmatprep.subr.mxu0 0.0
        %2996 = vmatpush1.msra.mxu0 0.0
        %2997 = vmatprep.subr.mxu0 0.0
        %2998 = vmatpush1.msra.mxu0 0.0
        %2999 = vmatprep.subr.mxu0 0.0
        %3000 = vmatpush1.msra.mxu0 0.0
        %3001 = vmatprep.subr.mxu0 0.0
        %3002 = vmatpush1.msra.mxu0 0.0
        %3003 = vmatprep.subr.mxu0 0.0
        %3004 = vmatpush1.msra.mxu0 0.0
        %3005 = vmatprep.mubr.f32.mxu0 0.0
        %v3006 = vand.u32 %v2501, 4294901760
        %v3007 = vsub.f32 %v2501, %v3006
        %3008 = vmatmul.mubr.f32.gmra.mrb[0].mxu0 %v3007
        %v3009 = vpop.f32.mrb[0].mxu0
        %v3010 = vadd.f32 %v2850, %v3009
        %v3011 = vpop.f32.mrb[0].mxu0
        %3012 = vmatprep.mubr.f32.mxu0 0.0
        %v3013 = vand.u32 %v2504, 4294901760
        %v3014 = vsub.f32 %v2504, %v3013
        %3015 = vmatmul.mubr.f32.gmra.mrb[0].mxu0 %v3014
        %v3016 = vpop.f32.mrb[0].mxu0
        %v3017 = vadd.f32 %v2856, %v3016
        %v3018 = vpop.f32.mrb[0].mxu0
        %3019 = vmatprep.mubr.f32.mxu0 0.0
        %v3020 = vand.u32 %v2507, 4294901760
        %v3021 = vsub.f32 %v2507, %v3020
        %3022 = vmatmul.mubr.f32.gmra.mrb[0].mxu0 %v3021
        %v3023 = vpop.f32.mrb[0].mxu0
        %v3024 = vadd.f32 %v2862, %v3023
        %v3025 = vpop.f32.mrb[0].mxu0
        %3026 = vmatprep.mubr.f32.mxu0 0.0
        %v3027 = vand.u32 %v2510, 4294901760
        %v3028 = vsub.f32 %v2510, %v3027
        %3029 = vmatmul.mubr.f32.gmra.mrb[0].mxu0 %v3028
        %v3030 = vpop.f32.mrb[0].mxu0
        %v3031 = vadd.f32 %v2868, %v3030
        %v3032 = vpop.f32.mrb[0].mxu0
        %3033 = vmatprep.mubr.f32.mxu0 0.0
        %v3034 = vand.u32 %v2513, 4294901760
        %v3035 = vsub.f32 %v2513, %v3034
        %3036 = vmatmul.mubr.f32.gmra.mrb[0].mxu0 %v3035
        %v3037 = vpop.f32.mrb[0].mxu0
        %v3038 = vadd.f32 %v2874, %v3037
        %v3039 = vpop.f32.mrb[0].mxu0
        %3040 = vmatprep.mubr.f32.mxu0 0.0
        %v3041 = vand.u32 %v2516, 4294901760
        %v3042 = vsub.f32 %v2516, %v3041
        %3043 = vmatmul.mubr.f32.gmra.mrb[0].mxu0 %v3042
        %v3044 = vpop.f32.mrb[0].mxu0
        %v3045 = vadd.f32 %v2880, %v3044
        %v3046 = vpop.f32.mrb[0].mxu0
        %3047 = vmatprep.mubr.f32.mxu0 0.0
        %v3048 = vand.u32 %v2519, 4294901760
        %v3049 = vsub.f32 %v2519, %v3048
        %3050 = vmatmul.mubr.f32.gmra.mrb[0].mxu0 %v3049
        %v3051 = vpop.f32.mrb[0].mxu0
        %v3052 = vadd.f32 %v2886, %v3051
        %v3053 = vpop.f32.mrb[0].mxu0
        %3054 = vmatprep.mubr.f32.mxu0 0.0
        %v3055 = vand.u32 %v2522, 4294901760
        %v3056 = vsub.f32 %v2522, %v3055
        %3057 = vmatmul.mubr.f32.gmra.mrb[0].mxu0 %v3056
        %v3058 = vpop.f32.mrb[0].mxu0
        %v3059 = vadd.f32 %v2892, %v3058
        %v3060 = vpop.f32.mrb[0].mxu0
        %3061 = vmatprep.mubr.f32.mxu0 0.0
        %v3062 = vand.u32 %v2525, 4294901760
        %v3063 = vsub.f32 %v2525, %v3062
        %3064 = vmatmul.mubr.f32.gmra.mrb[0].mxu0 %v3063
        %v3065 = vpop.f32.mrb[0].mxu0
        %v3066 = vadd.f32 %v2898, %v3065
        %v3067 = vpop.f32.mrb[0].mxu0
        %3068 = vmatprep.mubr.f32.mxu0 0.0
        %v3069 = vand.u32 %v2528, 4294901760
        %v3070 = vsub.f32 %v2528, %v3069
        %3071 = vmatmul.mubr.f32.gmra.mrb[0].mxu0 %v3070
        %v3072 = vpop.f32.mrb[0].mxu0
        %v3073 = vadd.f32 %v2904, %v3072
        %v3074 = vpop.f32.mrb[0].mxu0
        %3075 = vmatprep.mubr.f32.mxu0 0.0
        %v3076 = vand.u32 %v2531, 4294901760
        %v3077 = vsub.f32 %v2531, %v3076
        %3078 = vmatmul.mubr.f32.gmra.mrb[0].mxu0 %v3077
        %v3079 = vpop.f32.mrb[0].mxu0
        %v3080 = vadd.f32 %v2910, %v3079
        %v3081 = vpop.f32.mrb[0].mxu0
        %3082 = vmatprep.mubr.f32.mxu0 0.0
        %v3083 = vand.u32 %v2534, 4294901760
        %v3084 = vsub.f32 %v2534, %v3083
        %3085 = vmatmul.mubr.f32.gmra.mrb[0].mxu0 %v3084
        %v3086 = vpop.f32.mrb[0].mxu0
        %v3087 = vadd.f32 %v2916, %v3086
        %v3088 = vpop.f32.mrb[0].mxu0
        %3089 = vmatprep.mubr.f32.mxu0 0.0
        %v3090 = vand.u32 %v2537, 4294901760
        %v3091 = vsub.f32 %v2537, %v3090
        %3092 = vmatmul.mubr.f32.gmra.mrb[0].mxu0 %v3091
        %v3093 = vpop.f32.mrb[0].mxu0
        %v3094 = vadd.f32 %v2922, %v3093
        %v3095 = vpop.f32.mrb[0].mxu0
        %3096 = vdwg.mxu0
        %3097 = vmatprep.subr.mxu0 0.0
        %v3098 = vand.u32 %v2485, 4294901760
        %3099 = vmatpush1.msra.mxu0 %v3098
        %3100 = vmatprep.subr.mxu0 0.0
        %v3101 = vand.u32 %v2486, 4294901760
        %3102 = vmatpush1.msra.mxu0 %v3101
        %3103 = vmatprep.subr.mxu0 0.0
        %v3104 = vand.u32 %v2487, 4294901760
        %3105 = vmatpush1.msra.mxu0 %v3104
        %3106 = vmatprep.subr.mxu0 0.0
        %v3107 = vand.u32 %v2488, 4294901760
        %3108 = vmatpush1.msra.mxu0 %v3107
        %3109 = vmatprep.subr.mxu0 0.0
        %v3110 = vand.u32 %v2489, 4294901760
        %3111 = vmatpush1.msra.mxu0 %v3110
        %3112 = vmatprep.subr.mxu0 0.0
        %v3113 = vand.u32 %v2490, 4294901760
        %3114 = vmatpush1.msra.mxu0 %v3113
        %3115 = vmatprep.subr.mxu0 0.0
        %v3116 = vand.u32 %v2491, 4294901760
        %3117 = vmatpush1.msra.mxu0 %v3116
        %3118 = vmatprep.subr.mxu0 0.0
        %v3119 = vand.u32 %v2492, 4294901760
        %3120 = vmatpush1.msra.mxu0 %v3119
        %3121 = vmatprep.subr.mxu0 0.0
        %3122 = vmatpush1.msra.mxu0 0.0
        %3123 = vmatprep.subr.mxu0 0.0
        %3124 = vmatpush1.msra.mxu0 0.0
        %3125 = vmatprep.subr.mxu0 0.0
        %3126 = vmatpush1.msra.mxu0 0.0
        %3127 = vmatprep.subr.mxu0 0.0
        %3128 = vmatpush1.msra.mxu0 0.0
        %3129 = vmatprep.subr.mxu0 0.0
        %3130 = vmatpush1.msra.mxu0 0.0
        %3131 = vmatprep.subr.mxu0 0.0
        %3132 = vmatpush1.msra.mxu0 0.0
        %3133 = vmatprep.subr.mxu0 0.0
        %3134 = vmatpush1.msra.mxu0 0.0
        %3135 = vmatprep.subr.mxu0 0.0
        %3136 = vmatpush1.msra.mxu0 0.0
        %3137 = vmatprep.subr.mxu0 0.0
        %3138 = vmatpush1.msra.mxu0 0.0
        %3139 = vmatprep.subr.mxu0 0.0
        %3140 = vmatpush1.msra.mxu0 0.0
        %3141 = vmatprep.subr.mxu0 0.0
        %3142 = vmatpush1.msra.mxu0 0.0
        %3143 = vmatprep.subr.mxu0 0.0
        %3144 = vmatpush1.msra.mxu0 0.0
        %3145 = vmatprep.subr.mxu0 0.0
        %3146 = vmatpush1.msra.mxu0 0.0
        %3147 = vmatprep.subr.mxu0 0.0
        %3148 = vmatpush1.msra.mxu0 0.0
        %3149 = vmatprep.subr.mxu0 0.0
        %3150 = vmatpush1.msra.mxu0 0.0
        %3151 = vmatprep.subr.mxu0 0.0
        %3152 = vmatpush1.msra.mxu0 0.0
        %3153 = vmatprep.subr.mxu0 0.0
        %3154 = vmatpush1.msra.mxu0 0.0
        %3155 = vmatprep.subr.mxu0 0.0
        %3156 = vmatpush1.msra.mxu0 0.0
        %3157 = vmatprep.subr.mxu0 0.0
        %3158 = vmatpush1.msra.mxu0 0.0
        %3159 = vmatprep.subr.mxu0 0.0
        %3160 = vmatpush1.msra.mxu0 0.0
        %3161 = vmatprep.subr.mxu0 0.0
        %3162 = vmatpush1.msra.mxu0 0.0
        %3163 = vmatprep.subr.mxu0 0.0
        %3164 = vmatpush1.msra.mxu0 0.0
        %3165 = vmatprep.subr.mxu0 0.0
        %3166 = vmatpush1.msra.mxu0 0.0
        %3167 = vmatprep.subr.mxu0 0.0
        %3168 = vmatpush1.msra.mxu0 0.0
        %3169 = vmatprep.mubr.f32.mxu0 0.0
        %v3170 = vand.u32 %v2501, 4294901760
        %v3171 = vsub.f32 %v2501, %v3170
        %v3172 = vand.u32 %v3171, 4294901760
        %3173 = vmatmul.mubr.f32.gmra.mrb[0].mxu0 %v3172
        %v3174 = vpop.f32.mrb[0].mxu0
        %v3175 = vadd.f32 %v3010, %v3174
        %v3176 = vpop.f32.mrb[0].mxu0
        %3177 = vmatprep.mubr.f32.mxu0 0.0
        %v3178 = vand.u32 %v2504, 4294901760
        %v3179 = vsub.f32 %v2504, %v3178
        %v3180 = vand.u32 %v3179, 4294901760
        %3181 = vmatmul.mubr.f32.gmra.mrb[0].mxu0 %v3180
        %v3182 = vpop.f32.mrb[0].mxu0
        %v3183 = vadd.f32 %v3017, %v3182
        %v3184 = vpop.f32.mrb[0].mxu0
        %3185 = vmatprep.mubr.f32.mxu0 0.0
        %v3186 = vand.u32 %v2507, 4294901760
        %v3187 = vsub.f32 %v2507, %v3186
        %v3188 = vand.u32 %v3187, 4294901760
        %3189 = vmatmul.mubr.f32.gmra.mrb[0].mxu0 %v3188
        %v3190 = vpop.f32.mrb[0].mxu0
        %v3191 = vadd.f32 %v3024, %v3190
        %v3192 = vpop.f32.mrb[0].mxu0
        %3193 = vmatprep.mubr.f32.mxu0 0.0
        %v3194 = vand.u32 %v2510, 4294901760
        %v3195 = vsub.f32 %v2510, %v3194
        %v3196 = vand.u32 %v3195, 4294901760
        %3197 = vmatmul.mubr.f32.gmra.mrb[0].mxu0 %v3196
        %v3198 = vpop.f32.mrb[0].mxu0
        %v3199 = vadd.f32 %v3031, %v3198
        %v3200 = vpop.f32.mrb[0].mxu0
        %3201 = vmatprep.mubr.f32.mxu0 0.0
        %v3202 = vand.u32 %v2513, 4294901760
        %v3203 = vsub.f32 %v2513, %v3202
        %v3204 = vand.u32 %v3203, 4294901760
        %3205 = vmatmul.mubr.f32.gmra.mrb[0].mxu0 %v3204
        %v3206 = vpop.f32.mrb[0].mxu0
        %v3207 = vadd.f32 %v3038, %v3206
        %v3208 = vpop.f32.mrb[0].mxu0
        %3209 = vmatprep.mubr.f32.mxu0 0.0
        %v3210 = vand.u32 %v2516, 4294901760
        %v3211 = vsub.f32 %v2516, %v3210
        %v3212 = vand.u32 %v3211, 4294901760
        %3213 = vmatmul.mubr.f32.gmra.mrb[0].mxu0 %v3212
        %v3214 = vpop.f32.mrb[0].mxu0
        %v3215 = vadd.f32 %v3045, %v3214
        %v3216 = vpop.f32.mrb[0].mxu0
        %3217 = vmatprep.mubr.f32.mxu0 0.0
        %v3218 = vand.u32 %v2519, 4294901760
        %v3219 = vsub.f32 %v2519, %v3218
        %v3220 = vand.u32 %v3219, 4294901760
        %3221 = vmatmul.mubr.f32.gmra.mrb[0].mxu0 %v3220
        %v3222 = vpop.f32.mrb[0].mxu0
        %v3223 = vadd.f32 %v3052, %v3222
        %v3224 = vpop.f32.mrb[0].mxu0
        %3225 = vmatprep.mubr.f32.mxu0 0.0
        %v3226 = vand.u32 %v2522, 4294901760
        %v3227 = vsub.f32 %v2522, %v3226
        %v3228 = vand.u32 %v3227, 4294901760
        %3229 = vmatmul.mubr.f32.gmra.mrb[0].mxu0 %v3228
        %v3230 = vpop.f32.mrb[0].mxu0
        %v3231 = vadd.f32 %v3059, %v3230
        %v3232 = vpop.f32.mrb[0].mxu0
        %3233 = vmatprep.mubr.f32.mxu0 0.0
        %v3234 = vand.u32 %v2525, 4294901760
        %v3235 = vsub.f32 %v2525, %v3234
        %v3236 = vand.u32 %v3235, 4294901760
        %3237 = vmatmul.mubr.f32.gmra.mrb[0].mxu0 %v3236
        %v3238 = vpop.f32.mrb[0].mxu0
        %v3239 = vadd.f32 %v3066, %v3238
        %v3240 = vpop.f32.mrb[0].mxu0
        %3241 = vmatprep.mubr.f32.mxu0 0.0
        %v3242 = vand.u32 %v2528, 4294901760
        %v3243 = vsub.f32 %v2528, %v3242
        %v3244 = vand.u32 %v3243, 4294901760
        %3245 = vmatmul.mubr.f32.gmra.mrb[0].mxu0 %v3244
        %v3246 = vpop.f32.mrb[0].mxu0
        %v3247 = vadd.f32 %v3073, %v3246
        %v3248 = vpop.f32.mrb[0].mxu0
        %3249 = vmatprep.mubr.f32.mxu0 0.0
        %v3250 = vand.u32 %v2531, 4294901760
        %v3251 = vsub.f32 %v2531, %v3250
        %v3252 = vand.u32 %v3251, 4294901760
        %3253 = vmatmul.mubr.f32.gmra.mrb[0].mxu0 %v3252
        %v3254 = vpop.f32.mrb[0].mxu0
        %v3255 = vadd.f32 %v3080, %v3254
        %v3256 = vpop.f32.mrb[0].mxu0
        %3257 = vmatprep.mubr.f32.mxu0 0.0
        %v3258 = vand.u32 %v2534, 4294901760
        %v3259 = vsub.f32 %v2534, %v3258
        %v3260 = vand.u32 %v3259, 4294901760
        %3261 = vmatmul.mubr.f32.gmra.mrb[0].mxu0 %v3260
        %v3262 = vpop.f32.mrb[0].mxu0
        %v3263 = vadd.f32 %v3087, %v3262
        %v3264 = vpop.f32.mrb[0].mxu0
        %3265 = vmatprep.mubr.f32.mxu0 0.0
        %v3266 = vand.u32 %v2537, 4294901760
        %v3267 = vsub.f32 %v2537, %v3266
        %v3268 = vand.u32 %v3267, 4294901760
        %3269 = vmatmul.mubr.f32.gmra.mrb[0].mxu0 %v3268
        %v3270 = vpop.f32.mrb[0].mxu0
        %v3271 = vadd.f32 %v3094, %v3270
        %v3272 = vpop.f32.mrb[0].mxu0
        %3273 = vdwg.mxu0
        %3274 = vmatprep.subr.mxu0 0.0
        %v3275 = vand.u32 %v2485, 4294901760
        %v3276 = vsub.f32 %v2485, %v3275
        %v3277 = vand.u32 %v3276, 4294901760
        %3278 = vmatpush1.msra.mxu0 %v3277
        %3279 = vmatprep.subr.mxu0 0.0
        %v3280 = vand.u32 %v2486, 4294901760
        %v3281 = vsub.f32 %v2486, %v3280
        %v3282 = vand.u32 %v3281, 4294901760
        %3283 = vmatpush1.msra.mxu0 %v3282
        %3284 = vmatprep.subr.mxu0 0.0
        %v3285 = vand.u32 %v2487, 4294901760
        %v3286 = vsub.f32 %v2487, %v3285
        %v3287 = vand.u32 %v3286, 4294901760
        %3288 = vmatpush1.msra.mxu0 %v3287
        %3289 = vmatprep.subr.mxu0 0.0
        %v3290 = vand.u32 %v2488, 4294901760
        %v3291 = vsub.f32 %v2488, %v3290
        %v3292 = vand.u32 %v3291, 4294901760
        %3293 = vmatpush1.msra.mxu0 %v3292
        %3294 = vmatprep.subr.mxu0 0.0
        %v3295 = vand.u32 %v2489, 4294901760
        %v3296 = vsub.f32 %v2489, %v3295
        %v3297 = vand.u32 %v3296, 4294901760
        %3298 = vmatpush1.msra.mxu0 %v3297
        %3299 = vmatprep.subr.mxu0 0.0
        %v3300 = vand.u32 %v2490, 4294901760
        %v3301 = vsub.f32 %v2490, %v3300
        %v3302 = vand.u32 %v3301, 4294901760
        %3303 = vmatpush1.msra.mxu0 %v3302
        %3304 = vmatprep.subr.mxu0 0.0
        %v3305 = vand.u32 %v2491, 4294901760
        %v3306 = vsub.f32 %v2491, %v3305
        %v3307 = vand.u32 %v3306, 4294901760
        %3308 = vmatpush1.msra.mxu0 %v3307
        %3309 = vmatprep.subr.mxu0 0.0
        %v3310 = vand.u32 %v2492, 4294901760
        %v3311 = vsub.f32 %v2492, %v3310
        %v3312 = vand.u32 %v3311, 4294901760
        %3313 = vmatpush1.msra.mxu0 %v3312
        %3314 = vmatprep.subr.mxu0 0.0
        %3315 = vmatpush1.msra.mxu0 0.0
        %3316 = vmatprep.subr.mxu0 0.0
        %3317 = vmatpush1.msra.mxu0 0.0
        %3318 = vmatprep.subr.mxu0 0.0
        %3319 = vmatpush1.msra.mxu0 0.0
        %3320 = vmatprep.subr.mxu0 0.0
        %3321 = vmatpush1.msra.mxu0 0.0
        %3322 = vmatprep.subr.mxu0 0.0
        %3323 = vmatpush1.msra.mxu0 0.0
        %3324 = vmatprep.subr.mxu0 0.0
        %3325 = vmatpush1.msra.mxu0 0.0
        %3326 = vmatprep.subr.mxu0 0.0
        %3327 = vmatpush1.msra.mxu0 0.0
        %3328 = vmatprep.subr.mxu0 0.0
        %3329 = vmatpush1.msra.mxu0 0.0
        %3330 = vmatprep.subr.mxu0 0.0
        %3331 = vmatpush1.msra.mxu0 0.0
        %3332 = vmatprep.subr.mxu0 0.0
        %3333 = vmatpush1.msra.mxu0 0.0
        %3334 = vmatprep.subr.mxu0 0.0
        %3335 = vmatpush1.msra.mxu0 0.0
        %3336 = vmatprep.subr.mxu0 0.0
        %3337 = vmatpush1.msra.mxu0 0.0
        %3338 = vmatprep.subr.mxu0 0.0
        %3339 = vmatpush1.msra.mxu0 0.0
        %3340 = vmatprep.subr.mxu0 0.0
        %3341 = vmatpush1.msra.mxu0 0.0
        %3342 = vmatprep.subr.mxu0 0.0
        %3343 = vmatpush1.msra.mxu0 0.0
        %3344 = vmatprep.subr.mxu0 0.0
        %3345 = vmatpush1.msra.mxu0 0.0
        %3346 = vmatprep.subr.mxu0 0.0
        %3347 = vmatpush1.msra.mxu0 0.0
        %3348 = vmatprep.subr.mxu0 0.0
        %3349 = vmatpush1.msra.mxu0 0.0
        %3350 = vmatprep.subr.mxu0 0.0
        %3351 = vmatpush1.msra.mxu0 0.0
        %3352 = vmatprep.subr.mxu0 0.0
        %3353 = vmatpush1.msra.mxu0 0.0
        %3354 = vmatprep.subr.mxu0 0.0
        %3355 = vmatpush1.msra.mxu0 0.0
        %3356 = vmatprep.subr.mxu0 0.0
        %3357 = vmatpush1.msra.mxu0 0.0
        %3358 = vmatprep.subr.mxu0 0.0
        %3359 = vmatpush1.msra.mxu0 0.0
        %3360 = vmatprep.subr.mxu0 0.0
        %3361 = vmatpush1.msra.mxu0 0.0
        %3362 = vmatprep.mubr.f32.mxu0 0.0
        %v3363 = vand.u32 %v2501, 4294901760
        %3364 = vmatmul.mubr.f32.gmra.mrb[0].mxu0 %v3363
        %v3365 = vpop.f32.mrb[0].mxu0
        %v3366 = vadd.f32 %v3175, %v3365
        %v3367 = vpop.f32.mrb[0].mxu0
        %3368 = vmatprep.mubr.f32.mxu0 0.0
        %v3369 = vand.u32 %v2504, 4294901760
        %3370 = vmatmul.mubr.f32.gmra.mrb[0].mxu0 %v3369
        %v3371 = vpop.f32.mrb[0].mxu0
        %v3372 = vadd.f32 %v3183, %v3371
        %v3373 = vpop.f32.mrb[0].mxu0
        %3374 = vmatprep.mubr.f32.mxu0 0.0
        %v3375 = vand.u32 %v2507, 4294901760
        %3376 = vmatmul.mubr.f32.gmra.mrb[0].mxu0 %v3375
        %v3377 = vpop.f32.mrb[0].mxu0
        %v3378 = vadd.f32 %v3191, %v3377
        %v3379 = vpop.f32.mrb[0].mxu0
        %3380 = vmatprep.mubr.f32.mxu0 0.0
        %v3381 = vand.u32 %v2510, 4294901760
        %3382 = vmatmul.mubr.f32.gmra.mrb[0].mxu0 %v3381
        %v3383 = vpop.f32.mrb[0].mxu0
        %v3384 = vadd.f32 %v3199, %v3383
        %v3385 = vpop.f32.mrb[0].mxu0
        %3386 = vmatprep.mubr.f32.mxu0 0.0
        %v3387 = vand.u32 %v2513, 4294901760
        %3388 = vmatmul.mubr.f32.gmra.mrb[0].mxu0 %v3387
        %v3389 = vpop.f32.mrb[0].mxu0
        %v3390 = vadd.f32 %v3207, %v3389
        %v3391 = vpop.f32.mrb[0].mxu0
        %3392 = vmatprep.mubr.f32.mxu0 0.0
        %v3393 = vand.u32 %v2516, 4294901760
        %3394 = vmatmul.mubr.f32.gmra.mrb[0].mxu0 %v3393
        %v3395 = vpop.f32.mrb[0].mxu0
        %v3396 = vadd.f32 %v3215, %v3395
        %v3397 = vpop.f32.mrb[0].mxu0
        %3398 = vmatprep.mubr.f32.mxu0 0.0
        %v3399 = vand.u32 %v2519, 4294901760
        %3400 = vmatmul.mubr.f32.gmra.mrb[0].mxu0 %v3399
        %v3401 = vpop.f32.mrb[0].mxu0
        %v3402 = vadd.f32 %v3223, %v3401
        %v3403 = vpop.f32.mrb[0].mxu0
        %3404 = vmatprep.mubr.f32.mxu0 0.0
        %v3405 = vand.u32 %v2522, 4294901760
        %3406 = vmatmul.mubr.f32.gmra.mrb[0].mxu0 %v3405
        %v3407 = vpop.f32.mrb[0].mxu0
        %v3408 = vadd.f32 %v3231, %v3407
        %v3409 = vpop.f32.mrb[0].mxu0
        %3410 = vmatprep.mubr.f32.mxu0 0.0
        %v3411 = vand.u32 %v2525, 4294901760
        %3412 = vmatmul.mubr.f32.gmra.mrb[0].mxu0 %v3411
        %v3413 = vpop.f32.mrb[0].mxu0
        %v3414 = vadd.f32 %v3239, %v3413
        %v3415 = vpop.f32.mrb[0].mxu0
        %3416 = vmatprep.mubr.f32.mxu0 0.0
        %v3417 = vand.u32 %v2528, 4294901760
        %3418 = vmatmul.mubr.f32.gmra.mrb[0].mxu0 %v3417
        %v3419 = vpop.f32.mrb[0].mxu0
        %v3420 = vadd.f32 %v3247, %v3419
        %v3421 = vpop.f32.mrb[0].mxu0
        %3422 = vmatprep.mubr.f32.mxu0 0.0
        %v3423 = vand.u32 %v2531, 4294901760
        %3424 = vmatmul.mubr.f32.gmra.mrb[0].mxu0 %v3423
        %v3425 = vpop.f32.mrb[0].mxu0
        %v3426 = vadd.f32 %v3255, %v3425
        %v3427 = vpop.f32.mrb[0].mxu0
        %3428 = vmatprep.mubr.f32.mxu0 0.0
        %v3429 = vand.u32 %v2534, 4294901760
        %3430 = vmatmul.mubr.f32.gmra.mrb[0].mxu0 %v3429
        %v3431 = vpop.f32.mrb[0].mxu0
        %v3432 = vadd.f32 %v3263, %v3431
        %v3433 = vpop.f32.mrb[0].mxu0
        %3434 = vmatprep.mubr.f32.mxu0 0.0
        %v3435 = vand.u32 %v2537, 4294901760
        %3436 = vmatmul.mubr.f32.gmra.mrb[0].mxu0 %v3435
        %v3437 = vpop.f32.mrb[0].mxu0
        %v3438 = vadd.f32 %v3271, %v3437
        %v3439 = vpop.f32.mrb[0].mxu0
        %3440 = vdwg.mxu0
        %3441 = vmatprep.subr.mxu0 0.0
        %v3442 = vand.u32 %v2485, 4294901760
        %3443 = vmatpush1.msra.mxu0 %v3442
        %3444 = vmatprep.subr.mxu0 0.0
        %v3445 = vand.u32 %v2486, 4294901760
        %3446 = vmatpush1.msra.mxu0 %v3445
        %3447 = vmatprep.subr.mxu0 0.0
        %v3448 = vand.u32 %v2487, 4294901760
        %3449 = vmatpush1.msra.mxu0 %v3448
        %3450 = vmatprep.subr.mxu0 0.0
        %v3451 = vand.u32 %v2488, 4294901760
        %3452 = vmatpush1.msra.mxu0 %v3451
        %3453 = vmatprep.subr.mxu0 0.0
        %v3454 = vand.u32 %v2489, 4294901760
        %3455 = vmatpush1.msra.mxu0 %v3454
        %3456 = vmatprep.subr.mxu0 0.0
        %v3457 = vand.u32 %v2490, 4294901760
        %3458 = vmatpush1.msra.mxu0 %v3457
        %3459 = vmatprep.subr.mxu0 0.0
        %v3460 = vand.u32 %v2491, 4294901760
        %3461 = vmatpush1.msra.mxu0 %v3460
        %3462 = vmatprep.subr.mxu0 0.0
        %v3463 = vand.u32 %v2492, 4294901760
        %3464 = vmatpush1.msra.mxu0 %v3463
        %3465 = vmatprep.subr.mxu0 0.0
        %3466 = vmatpush1.msra.mxu0 0.0
        %3467 = vmatprep.subr.mxu0 0.0
        %3468 = vmatpush1.msra.mxu0 0.0
        %3469 = vmatprep.subr.mxu0 0.0
        %3470 = vmatpush1.msra.mxu0 0.0
        %3471 = vmatprep.subr.mxu0 0.0
        %3472 = vmatpush1.msra.mxu0 0.0
        %3473 = vmatprep.subr.mxu0 0.0
        %3474 = vmatpush1.msra.mxu0 0.0
        %3475 = vmatprep.subr.mxu0 0.0
        %3476 = vmatpush1.msra.mxu0 0.0
        %3477 = vmatprep.subr.mxu0 0.0
        %3478 = vmatpush1.msra.mxu0 0.0
        %3479 = vmatprep.subr.mxu0 0.0
        %3480 = vmatpush1.msra.mxu0 0.0
        %3481 = vmatprep.subr.mxu0 0.0
        %3482 = vmatpush1.msra.mxu0 0.0
        %3483 = vmatprep.subr.mxu0 0.0
        %3484 = vmatpush1.msra.mxu0 0.0
        %3485 = vmatprep.subr.mxu0 0.0
        %3486 = vmatpush1.msra.mxu0 0.0
        %3487 = vmatprep.subr.mxu0 0.0
        %3488 = vmatpush1.msra.mxu0 0.0
        %3489 = vmatprep.subr.mxu0 0.0
        %3490 = vmatpush1.msra.mxu0 0.0
        %3491 = vmatprep.subr.mxu0 0.0
        %3492 = vmatpush1.msra.mxu0 0.0
        %3493 = vmatprep.subr.mxu0 0.0
        %3494 = vmatpush1.msra.mxu0 0.0
        %3495 = vmatprep.subr.mxu0 0.0
        %3496 = vmatpush1.msra.mxu0 0.0
        %3497 = vmatprep.subr.mxu0 0.0
        %3498 = vmatpush1.msra.mxu0 0.0
        %3499 = vmatprep.subr.mxu0 0.0
        %3500 = vmatpush1.msra.mxu0 0.0
        %3501 = vmatprep.subr.mxu0 0.0
        %3502 = vmatpush1.msra.mxu0 0.0
        %3503 = vmatprep.subr.mxu0 0.0
        %3504 = vmatpush1.msra.mxu0 0.0
        %3505 = vmatprep.subr.mxu0 0.0
        %3506 = vmatpush1.msra.mxu0 0.0
        %3507 = vmatprep.subr.mxu0 0.0
        %3508 = vmatpush1.msra.mxu0 0.0
        %3509 = vmatprep.subr.mxu0 0.0
        %3510 = vmatpush1.msra.mxu0 0.0
        %3511 = vmatprep.subr.mxu0 0.0
        %3512 = vmatpush1.msra.mxu0 0.0
        %3513 = vmatprep.mubr.f32.mxu0 0.0
        %v3514 = vand.u32 %v2501, 4294901760
        %3515 = vmatmul.mubr.f32.gmra.mrb[0].mxu0 %v3514
        %v3516 = vpop.f32.mrb[0].mxu0
        %v3517 = vadd.f32 %v3366, %v3516
        %v3518 = vpop.f32.mrb[0].mxu0
        %3519 = vmatprep.mubr.f32.mxu0 0.0
        %v3520 = vand.u32 %v2504, 4294901760
        %3521 = vmatmul.mubr.f32.gmra.mrb[0].mxu0 %v3520
        %v3522 = vpop.f32.mrb[0].mxu0
        %v3523 = vadd.f32 %v3372, %v3522
        %v3524 = vpop.f32.mrb[0].mxu0
        %3525 = vmatprep.mubr.f32.mxu0 0.0
        %v3526 = vand.u32 %v2507, 4294901760
        %3527 = vmatmul.mubr.f32.gmra.mrb[0].mxu0 %v3526
        %v3528 = vpop.f32.mrb[0].mxu0
        %v3529 = vadd.f32 %v3378, %v3528
        %v3530 = vpop.f32.mrb[0].mxu0
        %3531 = vmatprep.mubr.f32.mxu0 0.0
        %v3532 = vand.u32 %v2510, 4294901760
        %3533 = vmatmul.mubr.f32.gmra.mrb[0].mxu0 %v3532
        %v3534 = vpop.f32.mrb[0].mxu0
        %v3535 = vadd.f32 %v3384, %v3534
        %v3536 = vpop.f32.mrb[0].mxu0
        %3537 = vmatprep.mubr.f32.mxu0 0.0
        %v3538 = vand.u32 %v2513, 4294901760
        %3539 = vmatmul.mubr.f32.gmra.mrb[0].mxu0 %v3538
        %v3540 = vpop.f32.mrb[0].mxu0
        %v3541 = vadd.f32 %v3390, %v3540
        %v3542 = vpop.f32.mrb[0].mxu0
        %3543 = vmatprep.mubr.f32.mxu0 0.0
        %v3544 = vand.u32 %v2516, 4294901760
        %3545 = vmatmul.mubr.f32.gmra.mrb[0].mxu0 %v3544
        %v3546 = vpop.f32.mrb[0].mxu0
        %v3547 = vadd.f32 %v3396, %v3546
        %v3548 = vpop.f32.mrb[0].mxu0
        %3549 = vmatprep.mubr.f32.mxu0 0.0
        %v3550 = vand.u32 %v2519, 4294901760
        %3551 = vmatmul.mubr.f32.gmra.mrb[0].mxu0 %v3550
        %v3552 = vpop.f32.mrb[0].mxu0
        %v3553 = vadd.f32 %v3402, %v3552
        %v3554 = vpop.f32.mrb[0].mxu0
        %3555 = vmatprep.mubr.f32.mxu0 0.0
        %v3556 = vand.u32 %v2522, 4294901760
        %3557 = vmatmul.mubr.f32.gmra.mrb[0].mxu0 %v3556
        %v3558 = vpop.f32.mrb[0].mxu0
        %v3559 = vadd.f32 %v3408, %v3558
        %v3560 = vpop.f32.mrb[0].mxu0
        %3561 = vmatprep.mubr.f32.mxu0 0.0
        %v3562 = vand.u32 %v2525, 4294901760
        %3563 = vmatmul.mubr.f32.gmra.mrb[0].mxu0 %v3562
        %v3564 = vpop.f32.mrb[0].mxu0
        %v3565 = vadd.f32 %v3414, %v3564
        %v3566 = vpop.f32.mrb[0].mxu0
        %3567 = vmatprep.mubr.f32.mxu0 0.0
        %v3568 = vand.u32 %v2528, 4294901760
        %3569 = vmatmul.mubr.f32.gmra.mrb[0].mxu0 %v3568
        %v3570 = vpop.f32.mrb[0].mxu0
        %v3571 = vadd.f32 %v3420, %v3570
        %v3572 = vpop.f32.mrb[0].mxu0
        %3573 = vmatprep.mubr.f32.mxu0 0.0
        %v3574 = vand.u32 %v2531, 4294901760
        %3575 = vmatmul.mubr.f32.gmra.mrb[0].mxu0 %v3574
        %v3576 = vpop.f32.mrb[0].mxu0
        %v3577 = vadd.f32 %v3426, %v3576
        %v3578 = vpop.f32.mrb[0].mxu0
        %3579 = vmatprep.mubr.f32.mxu0 0.0
        %v3580 = vand.u32 %v2534, 4294901760
        %3581 = vmatmul.mubr.f32.gmra.mrb[0].mxu0 %v3580
        %v3582 = vpop.f32.mrb[0].mxu0
        %v3583 = vadd.f32 %v3432, %v3582
        %v3584 = vpop.f32.mrb[0].mxu0
        %3585 = vmatprep.mubr.f32.mxu0 0.0
        %v3586 = vand.u32 %v2537, 4294901760
        %3587 = vmatmul.mubr.f32.gmra.mrb[0].mxu0 %v3586
        %v3588 = vpop.f32.mrb[0].mxu0
        %v3589 = vadd.f32 %v3438, %v3588
        %v3590 = vpop.f32.mrb[0].mxu0
        %3591 = vdwg.mxu0
        %v3592 = vtanh.pop %v3517
        %v3593 = vtanh.pop %v3523
        %v3594 = vtanh.pop %v3529
        %v3595 = vtanh.pop %v3535
        %v3596 = vtanh.pop %v3541
        %v3597 = vtanh.pop %v3547
        %v3598 = vtanh.pop %v3553
        %v3599 = vtanh.pop %v3559
        %v3600 = vtanh.pop %v3565
        %v3601 = vtanh.pop %v3571
        %v3602 = vtanh.pop %v3577
        %v3603 = vtanh.pop %v3583
        %v3604 = vtanh.pop %v3589
        %v3605 = vmul.f32 %v3592, 2.0
        %v3606 = vmul.f32 %v3593, 2.0
        %v3607 = vmul.f32 %v3594, 2.0
        %v3608 = vmul.f32 %v3595, 2.0
        %v3609 = vmul.f32 %v3596, 2.0
        %v3610 = vmul.f32 %v3597, 2.0
        %v3611 = vmul.f32 %v3598, 2.0
        %v3612 = vmul.f32 %v3599, 2.0
        %v3613 = vmul.f32 %v3600, 2.0
        %v3614 = vmul.f32 %v3601, 2.0
        %v3615 = vmul.f32 %v3602, 2.0
        %v3616 = vmul.f32 %v3603, 2.0
        %v3617 = vmul.f32 %v3604, 2.0
        %vm3618 = vcmask 31744
        %3619 = vst.msk [vmem:[%s280] sm:$0xff] %vm3618, %v3605
        %3620 = vst.msk [vmem:[%s280 + $0x8] sm:$0xff] %vm3618, %v3606
        %3621 = vst.msk [vmem:[%s280 + $0x10] sm:$0xff] %vm3618, %v3607
        %3622 = vst.msk [vmem:[%s280 + $0x18] sm:$0xff] %vm3618, %v3608
        %3623 = vst.msk [vmem:[%s280 + $0x20] sm:$0xff] %vm3618, %v3609
        %3624 = vst.msk [vmem:[%s280 + $0x28] sm:$0xff] %vm3618, %v3610
        %3625 = vst.msk [vmem:[%s280 + $0x30] sm:$0xff] %vm3618, %v3611
        %3626 = vst.msk [vmem:[%s280 + $0x38] sm:$0xff] %vm3618, %v3612
        %3627 = vst.msk [vmem:[%s280 + $0x40] sm:$0xff] %vm3618, %v3613
        %3628 = vst.msk [vmem:[%s280 + $0x48] sm:$0xff] %vm3618, %v3614
        %3629 = vst.msk [vmem:[%s280 + $0x50] sm:$0xff] %vm3618, %v3615
        %3630 = vst.msk [vmem:[%s280 + $0x58] sm:$0xff] %vm3618, %v3616
        %3631 = vst.msk [vmem:[%s280 + $0x60] sm:$0xff] %vm3618, %v3617
        %s3632 = sand.u32 %s178, 1
        %s3633 = sand.u32 %s178, 1
        %s3634 = smul.addr %s3633, 104
        %s3635 = scalar_lea.vmem [#allocation2], %s3634
        // Predicated region
        $region49: #{actor_forward.1} parent=47 // pred_check
          %p3636 = pneg %p188
        $region50: #{actor_forward.1} parent=47 // pred_check_branch
          %3638 = sbr.rel (%p3636) target = $region52
        $region51: #{actor_forward.1} parent=47 // pred_region
          %s3639 = smul.u32 13, %s18
          %s3640 = ssub.s32 25, %s3639
          %p3641 = scmp.lt.s32.totalorder %s3640, 13
          %s3642 = scalar_select %p3641, %s3640, 13
          %s3643 = smul.u32 128, %s3642
          %p3644 = scmp.ne.s32.totalorder 0, %s3643
          %s3645 = smul.addr %s3639, 8
          %s3646 = scalar_lea.vmem %s7, %s3645
          // Predicated region
          $region53: #{actor_forward.1} parent=51 // pred_check
            %p3647 = pneg %p3644
          $region54: #{actor_forward.1} parent=51 // pred_check_branch
            %3649 = sbr.rel (%p3647) target = $region56
          $region55: #{actor_forward.1} parent=51 // pred_region
            // Predicated region
            $region57: #{actor_forward.1} parent=55 // pred_check
              _
            $region58: #{actor_forward.1} parent=55 // pred_check_branch
              %3651 = sbr.rel (0) target = $region60
            $region59: #{actor_forward.1} parent=55 // pred_region
              // Predicated region
              $region79: #{actor_forward.1} parent=59 // pred_check
                _
              $region80: #{actor_forward.1} parent=59 // pred_check_branch
                %3725 = sbr.rel (0) target = $region82
              $region81: #{actor_forward.1} parent=59 // pred_region
                %s3726 = sdiv.u32.pop %s3642, 13
                %s3727 = srem.u32.pop %s3642, 13
                // While loop
                $region83: #{actor_forward.1} parent=81 // loop_pre_header
                  _
                $region84: #{actor_forward.1} parent=81 // loop_header
                  %s3729 = sphi 0, %s3731
                  %p3730 = scmp.ge.s32.totalorder %s3729, %s3726
                  %s3734 = sphi 0, %s3765
                  %s3735 = sphi %s3635, %s3768
                  %s3736 = sphi %s3646, %s3769
                $region85: #{actor_forward.1} parent=81 // loop_header_branch
                  %3733 = sbr.rel (%p3730) target = $region89
                $region86: #{actor_forward.1} parent=81 // loop_body
                  %v3737 = vld [vmem:[%s3735] sm:$0xff]
                  %3738 = vst [vmem:[%s3736] sm:$0xff] %v3737
                  %v3739 = vld [vmem:[%s3735 + $0x8] sm:$0xff]
                  %3740 = vst [vmem:[%s3736 + $0x8] sm:$0xff] %v3739
                  %v3741 = vld [vmem:[%s3735 + $0x10] sm:$0xff]
                  %3742 = vst [vmem:[%s3736 + $0x10] sm:$0xff] %v3741
                  %v3743 = vld [vmem:[%s3735 + $0x18] sm:$0xff]
                  %3744 = vst [vmem:[%s3736 + $0x18] sm:$0xff] %v3743
                  %v3745 = vld [vmem:[%s3735 + $0x20] sm:$0xff]
                  %3746 = vst [vmem:[%s3736 + $0x20] sm:$0xff] %v3745
                  %v3747 = vld [vmem:[%s3735 + $0x28] sm:$0xff]
                  %3748 = vst [vmem:[%s3736 + $0x28] sm:$0xff] %v3747
                  %v3749 = vld [vmem:[%s3735 + $0x30] sm:$0xff]
                  %3750 = vst [vmem:[%s3736 + $0x30] sm:$0xff] %v3749
                  %v3751 = vld [vmem:[%s3735 + $0x38] sm:$0xff]
                  %3752 = vst [vmem:[%s3736 + $0x38] sm:$0xff] %v3751
                  %v3753 = vld [vmem:[%s3735 + $0x40] sm:$0xff]
                  %3754 = vst [vmem:[%s3736 + $0x40] sm:$0xff] %v3753
                  %v3755 = vld [vmem:[%s3735 + $0x48] sm:$0xff]
                  %3756 = vst [vmem:[%s3736 + $0x48] sm:$0xff] %v3755
                  %v3757 = vld [vmem:[%s3735 + $0x50] sm:$0xff]
                  %3758 = vst [vmem:[%s3736 + $0x50] sm:$0xff] %v3757
                  %v3759 = vld [vmem:[%s3735 + $0x58] sm:$0xff]
                  %3760 = vst [vmem:[%s3736 + $0x58] sm:$0xff] %v3759
                  %v3761 = vld [vmem:[%s3735 + $0x60] sm:$0xff]
                  %3762 = vst [vmem:[%s3736 + $0x60] sm:$0xff] %v3761
                  %s3763 = sadd.s32 1, %s3734
                  %p3764 = scmp.ge.s32.totalorder %s3763, %s3726
                  %s3765 = scalar_select %p3764, 0, %s3763
                  %s3766 = smul.u32 %s3765, 104
                  %s3767 = smul.u32 %s3765, 104
                  %s3768 = scalar_lea.vmem %s3635, %s3766 [#allocation2]
                  %s3769 = scalar_lea.vmem %s3646, %s3767
                $region87: #{actor_forward.1} parent=81 // loop_footer
                  %s3731 = sadd.s32 %s3729, 1
                $region88: #{actor_forward.1} parent=81 // loop_footer_branch
                  %3728 = sbr.rel target = $region84
                $region89: #{actor_forward.1} parent=81 // loop_exit
                  _
                %s3770 = sdiv.u32.pop %s3642, 13
                %s3771 = srem.u32.pop %s3642, 13
                %s3772 = smul.u32 %s3770, 13
                %s3773 = smul.u32 8, %s3772
                %s3774 = scalar_lea.vmem %s3635, %s3773 [#allocation2]
                %s3775 = smul.u32 8, %s3772
                %s3776 = scalar_lea.vmem %s3646, %s3775
                // While loop
                $region90: #{actor_forward.1} parent=81 // loop_pre_header
                  _
                $region91: #{actor_forward.1} parent=81 // loop_header
                  %s3778 = sphi 0, %s3780
                  %p3779 = scmp.ge.s32.totalorder %s3778, %s3771
                  %s3783 = sphi 0, %s3790
                  %s3784 = sphi %s3774, %s3793
                  %s3785 = sphi %s3776, %s3794
                $region92: #{actor_forward.1} parent=81 // loop_header_branch
                  %3782 = sbr.rel (%p3779) target = $region96
                $region93: #{actor_forward.1} parent=81 // loop_body
                  %v3786 = vld [vmem:[%s3784] sm:$0xff]
                  %3787 = vst [vmem:[%s3785] sm:$0xff] %v3786
                  %s3788 = sadd.s32 1, %s3783
                  %p3789 = scmp.ge.s32.totalorder %s3788, %s3771
                  %s3790 = scalar_select %p3789, 0, %s3788
                  %s3791 = smul.u32 %s3790, 8
                  %s3792 = smul.u32 %s3790, 8
                  %s3793 = scalar_lea.vmem %s3774, %s3791 [#allocation2]
                  %s3794 = scalar_lea.vmem %s3776, %s3792
                $region94: #{actor_forward.1} parent=81 // loop_footer
                  %s3780 = sadd.s32 %s3778, 1
                $region95: #{actor_forward.1} parent=81 // loop_footer_branch
                  %3777 = sbr.rel target = $region91
                $region96: #{actor_forward.1} parent=81 // loop_exit
                  _
              $region82: #{actor_forward.1} parent=59 // pred_fallthru
                _
              // Predicated region
              $region97: #{actor_forward.1} parent=59 // pred_check
                _
              $region98: #{actor_forward.1} parent=59 // pred_check_branch
                %3796 = sbr.rel target = $region100
              $region99: #{actor_forward.1} parent=59 // pred_region
                _
              $region100: #{actor_forward.1} parent=59 // pred_fallthru
                _
            $region60: #{actor_forward.1} parent=55 // pred_fallthru
              _
            // Predicated region
            $region61: #{actor_forward.1} parent=55 // pred_check
              _
            $region62: #{actor_forward.1} parent=55 // pred_check_branch
              %3653 = sbr.rel target = $region64
            $region63: #{actor_forward.1} parent=55 // pred_region
              %s3655 = sdiv.u32.pop %s3642, 13
              %s3656 = srem.u32.pop %s3642, 13
              // While loop
              $region65: #{actor_forward.1} parent=63 // loop_pre_header
                _
              $region66: #{actor_forward.1} parent=63 // loop_header
                %s3658 = sphi 0, %s3660
                %p3659 = scmp.ge.s32.totalorder %s3658, %s3655
                %s3663 = sphi 0, %s3694
                %s3664 = sphi %s3635, %s3697
                %s3665 = sphi %s3646, %s3698
              $region67: #{actor_forward.1} parent=63 // loop_header_branch
                %3662 = sbr.rel (%p3659) target = $region71
              $region68: #{actor_forward.1} parent=63 // loop_body
                %v3666 = vld [vmem:[%s3664] sm:$0xff]
                %3667 = vst [vmem:[%s3665] sm:$0xff] %v3666
                %v3668 = vld [vmem:[%s3664 + $0x8] sm:$0xff]
                %3669 = vst [vmem:[%s3665 + $0x8] sm:$0xff] %v3668
                %v3670 = vld [vmem:[%s3664 + $0x10] sm:$0xff]
                %3671 = vst [vmem:[%s3665 + $0x10] sm:$0xff] %v3670
                %v3672 = vld [vmem:[%s3664 + $0x18] sm:$0xff]
                %3673 = vst [vmem:[%s3665 + $0x18] sm:$0xff] %v3672
                %v3674 = vld [vmem:[%s3664 + $0x20] sm:$0xff]
                %3675 = vst [vmem:[%s3665 + $0x20] sm:$0xff] %v3674
                %v3676 = vld [vmem:[%s3664 + $0x28] sm:$0xff]
                %3677 = vst [vmem:[%s3665 + $0x28] sm:$0xff] %v3676
                %v3678 = vld [vmem:[%s3664 + $0x30] sm:$0xff]
                %3679 = vst [vmem:[%s3665 + $0x30] sm:$0xff] %v3678
                %v3680 = vld [vmem:[%s3664 + $0x38] sm:$0xff]
                %3681 = vst [vmem:[%s3665 + $0x38] sm:$0xff] %v3680
                %v3682 = vld [vmem:[%s3664 + $0x40] sm:$0xff]
                %3683 = vst [vmem:[%s3665 + $0x40] sm:$0xff] %v3682
                %v3684 = vld [vmem:[%s3664 + $0x48] sm:$0xff]
                %3685 = vst [vmem:[%s3665 + $0x48] sm:$0xff] %v3684
                %v3686 = vld [vmem:[%s3664 + $0x50] sm:$0xff]
                %3687 = vst [vmem:[%s3665 + $0x50] sm:$0xff] %v3686
                %v3688 = vld [vmem:[%s3664 + $0x58] sm:$0xff]
                %3689 = vst [vmem:[%s3665 + $0x58] sm:$0xff] %v3688
                %v3690 = vld [vmem:[%s3664 + $0x60] sm:$0xff]
                %3691 = vst [vmem:[%s3665 + $0x60] sm:$0xff] %v3690
                %s3692 = sadd.s32 1, %s3663
                %p3693 = scmp.ge.s32.totalorder %s3692, %s3655
                %s3694 = scalar_select %p3693, 0, %s3692
                %s3695 = smul.u32 %s3694, 104
                %s3696 = smul.u32 %s3694, 104
                %s3697 = scalar_lea.vmem %s3635, %s3695 [#allocation2]
                %s3698 = scalar_lea.vmem %s3646, %s3696
              $region69: #{actor_forward.1} parent=63 // loop_footer
                %s3660 = sadd.s32 %s3658, 1
              $region70: #{actor_forward.1} parent=63 // loop_footer_branch
                %3657 = sbr.rel target = $region66
              $region71: #{actor_forward.1} parent=63 // loop_exit
                _
              %s3699 = sdiv.u32.pop %s3642, 13
              %s3700 = srem.u32.pop %s3642, 13
              %s3701 = smul.u32 %s3699, 13
              %s3702 = smul.u32 8, %s3701
              %s3703 = scalar_lea.vmem %s3635, %s3702 [#allocation2]
              %s3704 = smul.u32 8, %s3701
              %s3705 = scalar_lea.vmem %s3646, %s3704
              // While loop
              $region72: #{actor_forward.1} parent=63 // loop_pre_header
                _
              $region73: #{actor_forward.1} parent=63 // loop_header
                %s3707 = sphi 0, %s3709
                %p3708 = scmp.ge.s32.totalorder %s3707, %s3700
                %s3712 = sphi 0, %s3719
                %s3713 = sphi %s3703, %s3722
                %s3714 = sphi %s3705, %s3723
              $region74: #{actor_forward.1} parent=63 // loop_header_branch
                %3711 = sbr.rel (%p3708) target = $region78
              $region75: #{actor_forward.1} parent=63 // loop_body
                %v3715 = vld [vmem:[%s3713] sm:$0xff]
                %3716 = vst [vmem:[%s3714] sm:$0xff] %v3715
                %s3717 = sadd.s32 1, %s3712
                %p3718 = scmp.ge.s32.totalorder %s3717, %s3700
                %s3719 = scalar_select %p3718, 0, %s3717
                %s3720 = smul.u32 %s3719, 8
                %s3721 = smul.u32 %s3719, 8
                %s3722 = scalar_lea.vmem %s3703, %s3720 [#allocation2]
                %s3723 = scalar_lea.vmem %s3705, %s3721
              $region76: #{actor_forward.1} parent=63 // loop_footer
                %s3709 = sadd.s32 %s3707, 1
              $region77: #{actor_forward.1} parent=63 // loop_footer_branch
                %3706 = sbr.rel target = $region73
              $region78: #{actor_forward.1} parent=63 // loop_exit
                _
            $region64: #{actor_forward.1} parent=55 // pred_fallthru
              _
          $region56: #{actor_forward.1} parent=51 // pred_fallthru
            _
          %3797 = vnop
        $region52: #{actor_forward.1} parent=47 // pred_fallthru
          _
      $region48: #{actor_forward.1} parent=5 // pred_fallthru
        _
      %p3798 = scmp.le.s32.totalorder 2, %s13
      // Predicated region
      $region101: #{actor_forward.1} parent=5 // pred_check
        %p3799 = pneg %p3798
      $region102: #{actor_forward.1} parent=5 // pred_check_branch
        %3801 = sbr.rel (%p3799) target = $region104
      $region103: #{actor_forward.1} parent=5 // pred_region
        %s3802 = ssub.s32 %s13, 2
        // Predicated region
        $region105: #{actor_forward.1} parent=103 // pred_check
          %p3803 = pneg %p194
        $region106: #{actor_forward.1} parent=103 // pred_check_branch
          %3805 = sbr.rel (%p3803) target = $region108
        $region107: #{actor_forward.1} parent=103 // pred_region
          %s3806 = sand.u32 %s179, 1
          %s3807 = sand.u32 %s179, 1
          %s3808 = smul.addr %s3807, 104
          %s3809 = scalar_lea.vmem [#allocation2], %s3808
        $region108: #{actor_forward.1} parent=103 // pred_fallthru
          _
      $region104: #{actor_forward.1} parent=5 // pred_fallthru
        _
    $region6: #{actor_forward.1} parent=1 // loop_footer
      %s17 = sadd.s32 1, %s13
    $region7: #{actor_forward.1} parent=1 // loop_footer_branch
      %12 = sbr.rel target = $region3
    $region8: #{actor_forward.1} parent=1 // loop_exit
      _

</llo_original>
